<compile_context>
chip_gen: v7x
topology: tpu7x:2x2x1
jax: 0.10.0
libtpu: 0.0.40
codegen_flags: <defaults>
</compile_context>

<pallas_src>
import functools

import numpy as np
import jax
import jax.numpy as jnp
from jax.experimental import pallas as pl
from jax.experimental.pallas import tpu as pltpu

_LOG2 = 0.6931471805599453
_LANE = 128


def _ssp(x):
    # shifted softplus: softplus(x) - log(2)   (stable form; ssp(0) == 0)
    return jnp.maximum(x, 0.0) + jnp.log(1.0 + jnp.exp(-jnp.abs(x))) - _LOG2


def _sigmoid(x):
    # d/dx softplus(x) = sigmoid(x); stable, exp/where only
    ex = jnp.exp(-jnp.abs(x))
    return jnp.where(x >= 0.0, 1.0 / (1.0 + ex), ex / (1.0 + ex))


# --------------------------------------------------------------- fused kernel

def _schnet_fused_kernel(*refs, num_layers, cutoff):
    n_in = 8 + 11 * num_layers + 5
    (ew_ref, irow_ref, icol_ref, jrow_ref, jcol_ref,
     h0_ref, off_ref, wid_ref) = refs[:8]
    layer_refs = refs[8:8 + 11 * num_layers]
    ow1_ref, ob1_ref, ow1t_ref, ow2t_ref, ob2_ref = refs[8 + 11 * num_layers:n_in]
    out_ref = refs[n_in]

    f32 = jnp.float32
    ew = ew_ref[...]                                   # (E, 128) zero-padded coords
    h = h0_ref[...]                                    # (N, Hp)
    off = off_ref[...]                                 # (1, Gp)
    wid = wid_ref[...]                                 # (1, Gp) (pads are 1.0)
    E = ew.shape[0]
    N = h.shape[0]

    dot = functools.partial(jnp.dot, preferred_element_type=f32)

    # one-hot gather / scatter operators: built ONCE, reused for every layer,
    # the backward pass and the force scatter.
    iota_ne = jax.lax.broadcasted_iota(jnp.int32, (N, E), 0)
    iota_en = jax.lax.broadcasted_iota(jnp.int32, (E, N), 1)
    sct_i = (iota_ne == irow_ref[...]).astype(f32)     # (N,E) scatter-add over i
    sct_j = (iota_ne == jrow_ref[...]).astype(f32)     # (N,E) scatter-add over j
    gth_i = (iota_en == icol_ref[...]).astype(f32)     # (E,N) gather rows by i
    gth_j = (iota_en == jcol_ref[...]).astype(f32)     # (E,N) gather rows by j

    # distances, RBF expansion, cosine cutoff (never materialized in HBM)
    d = jnp.sqrt(jnp.sum(ew * ew, axis=1, keepdims=True))          # (E,1)
    inv_w2 = 1.0 / (wid * wid)
    diff = d - off
    rbf = jnp.exp(-0.5 * inv_w2 * diff * diff)                     # (E,Gp)
    mask = (d <= cutoff).astype(f32)
    C = 0.5 * (jnp.cos(d * (np.pi / cutoff)) + 1.0) * mask         # (E,1)

    # ---------------- forward interaction layers (unrolled, VMEM-resident) --
    cache = []
    for l in range(num_layers):
        (w1, b1, w2, b2, l1, l2, l2b,
         w1t, w2t, l1t, l2t) = layer_refs[11 * l:11 * (l + 1)]
        z1 = dot(rbf, w1[...]) + b1[...]                           # (E,Fp)
        t1 = _ssp(z1)
        pre = dot(t1, w2[...]) + b2[...]                           # (E,Fp)
        W = pre * C                                                # (E,Fp)
        hW = dot(h, l1[...])                                       # (N,Fp)  lin1 BEFORE gather
        xjW = dot(gth_j, hW)                                       # (E,Fp)  gather h[j]·lin1
        msg = W * xjW                                              # (E,Fp)
        agg = dot(sct_i, msg)                                      # (N,Fp)  scatter-add over i
        z2 = dot(agg, l2[...]) + l2b[...]                          # (N,Hp)
        cache.append((z1, pre, W, xjW, z2))
        h = h + _ssp(z2)

    # ---------------- output head -------------------------------------------
    zo = dot(h, ow1_ref[...]) + ob1_ref[...]                       # (N,H2p)
    to = _ssp(zo)
    e = jnp.sum(to * ow2t_ref[...], axis=1, keepdims=True) + ob2_ref[...]   # (N,1)

    # ---------------- analytic backward: d(sum e)/d(edge_weight) ------------
    g_zo = ow2t_ref[...] * _sigmoid(zo)                            # (N,H2p)
    g_h = dot(g_zo, ow1t_ref[...])                                 # (N,Hp)

    g_rbf = jnp.zeros_like(rbf)
    g_C = jnp.zeros_like(C)
    for l in reversed(range(num_layers)):
        (w1, b1, w2, b2, l1, l2, l2b,
         w1t, w2t, l1t, l2t) = layer_refs[11 * l:11 * (l + 1)]
        z1, pre, W, xjW, z2 = cache[l]
        g_z2 = g_h * _sigmoid(z2)                                  # (N,Hp)
        g_agg = dot(g_z2, l2t[...])                                # (N,Fp)
        g_msg = dot(gth_i, g_agg)                                  # (E,Fp) gather by i
        g_W = g_msg * xjW
        g_xjW = g_msg * W
        g_hW = dot(sct_j, g_xjW)                                   # (N,Fp) scatter by j
        g_h = g_h + dot(g_hW, l1t[...])                            # skip + lin1 path
        g_pre = g_W * C
        g_C = g_C + jnp.sum(g_W * pre, axis=1, keepdims=True)
        g_t1 = dot(g_pre, w2t[...])
        g_z1 = g_t1 * _sigmoid(z1)
        g_rbf = g_rbf + dot(g_z1, w1t[...])                        # (E,Gp)

    g_d = jnp.sum(g_rbf * rbf * (-(d - off) * inv_w2), axis=1, keepdims=True)
    g_d = g_d + g_C * (-0.5 * (np.pi / cutoff)
                       * jnp.sin(d * (np.pi / cutoff)) * mask)
    inv_d = jnp.where(d > 0.0, 1.0 / d, 0.0)
    diff_E = g_d * ew * inv_d                                      # (E,128), pads stay 0

    # ---------------- forces + lane-dense packed output ---------------------
    # matches torch: scatter_i(diff_E) + scatter_j(-diff_E)
    forces = dot(sct_i, diff_E) - dot(sct_j, diff_E)               # (N,128) cols 0..2
    lane = jax.lax.broadcasted_iota(jnp.int32, forces.shape, 1)
    out_ref[...] = forces + jnp.where(lane == 3, e, 0.0)           # col 3 = per-node energy


# ----------------------------------------------------------------- wrappers

def _rpad(n, m=_LANE):
    return ((n + m - 1) // m) * m


def _pad2(x, rows, cols, fill=0.0):
    x = x.astype(jnp.float32)
    r, c = x.shape
    if (rows, cols) == (r, c):
        return x
    return jnp.pad(x, ((0, rows - r), (0, cols - c)), constant_values=fill)


def _vmem_specs(n):
    return [pl.BlockSpec(memory_space=pltpu.MemorySpace.VMEM) for _ in range(n)]


def schnet_forward(params, atom_types, i_idx, j_idx, edge_weight, cutoff):
    N = atom_types.shape[0]
    E = edge_weight.shape[0]
    H = params['embedding'].shape[1]
    G = params['rbf_offsets'].shape[1]
    H2 = params['out_w1'].shape[1]
    Hp, Gp, H2p = _rpad(H), _rpad(G), _rpad(H2)
    Fp = _rpad(params['interactions'][0]['mlp_w2'].shape[0])

    # embedding lookup stays in plain JAX (glue gather), then zero-pad lanes
    h0p = _pad2(params['embedding'][atom_types], N, Hp)
    ewp = _pad2(edge_weight, E, _LANE)

    i32 = jnp.int32
    i_row = i_idx.reshape(1, E).astype(i32)
    j_row = j_idx.reshape(1, E).astype(i32)
    i_col = i_idx.reshape(E, 1).astype(i32)
    j_col = j_idx.reshape(E, 1).astype(i32)

    off = _pad2(params['rbf_offsets'], 1, Gp, 0.0)
    wid = _pad2(params['rbf_widths'], 1, Gp, 1.0)    # pad widths with 1 -> finite rbf

    args = [ewp, i_row, i_col, j_row, j_col, h0p, off, wid]
    for blk in params['interactions']:
        w1 = _pad2(blk['mlp_w1'], Gp, Fp)
        b1 = _pad2(blk['mlp_b1'], 1, Fp)
        w2 = _pad2(blk['mlp_w2'], Fp, Fp)
        b2 = _pad2(blk['mlp_b2'], 1, Fp)
        l1 = _pad2(blk['lin1_w'], Hp, Fp)
        l2 = _pad2(blk['lin2_w'], Fp, Hp)
        l2b = _pad2(blk['lin2_b'], 1, Hp)
        # transposed copies supplied by the wrapper -> all in-kernel dots are plain matmuls
        args += [w1, b1, w2, b2, l1, l2, l2b, w1.T, w2.T, l1.T, l2.T]

    ow1 = _pad2(params['out_w1'], Hp, H2p)
    ob1 = _pad2(params['out_b1'], 1, H2p)
    ow2 = _pad2(params['out_w2'], H2p, 1)
    ob2 = params['out_b2'].astype(jnp.float32)
    args += [ow1, ob1, ow1.T, ow2.T, ob2]

    kernel = functools.partial(_schnet_fused_kernel,
                               num_layers=len(params['interactions']),
                               cutoff=float(cutoff))
    packed = pl.pallas_call(
        kernel,
        out_shape=jax.ShapeDtypeStruct((N, _LANE), jnp.float32),
        in_specs=_vmem_specs(len(args)),
        out_specs=pl.BlockSpec(memory_space=pltpu.MemorySpace.VMEM),
    )(*args)

    forces = packed[:, 0:3]
    energy = packed[:, 3:4]
    total_energy = jnp.sum(energy)
    return total_energy, forces, energy


# ----------------------------------------- pure-JAX reference (for testing)

def _energy_nodes_jax(edge_weight, h0, params, i_idx, j_idx, cutoff):
    d = jnp.sqrt(jnp.sum(edge_weight ** 2, axis=1, keepdims=True))
    off = params['rbf_offsets']
    wid = params['rbf_widths']
    rbf = jnp.exp((-0.5 / wid ** 2) * (d - off) ** 2)
    mask = (d <= cutoff).astype(jnp.float32)
    C = 0.5 * (jnp.cos(d * (np.pi / cutoff)) + 1.0) * mask
    h = h0
    N = h0.shape[0]
    for blk in params['interactions']:
        z1 = rbf @ blk['mlp_w1'] + blk['mlp_b1']
        W = (_ssp(z1) @ blk['mlp_w2'] + blk['mlp_b2']) * C
        msg = W * (h[j_idx] @ blk['lin1_w'])
        agg = jax.ops.segment_sum(msg, i_idx, num_segments=N)
        h = h + _ssp(agg @ blk['lin2_w'] + blk['lin2_b'])
    z = h @ params['out_w1'] + params['out_b1']
    return _ssp(z) @ params['out_w2'] + params['out_b2']


def _reference_jax(params, atom_types, i_idx, j_idx, edge_weight, cutoff):
    h0 = params['embedding'][atom_types]
    energy = _energy_nodes_jax(edge_weight, h0, params, i_idx, j_idx, cutoff)
    etot = lambda ew: jnp.sum(_energy_nodes_jax(ew, h0, params, i_idx, j_idx, cutoff))
    dE = jax.grad(etot)(edge_weight)
    N = h0.shape[0]
    forces = (jax.ops.segment_sum(dE, i_idx, num_segments=N)
              + jax.ops.segment_sum(-dE, j_idx, num_segments=N))
    return jnp.sum(energy), forces, energy


# ----------------------------------------------------------------- params

def _linear(key, fan_in, fan_out, bias=True):
    kw, kb = jax.random.split(key)
    bound = 1.0 / np.sqrt(fan_in)
    w = jax.random.uniform(kw, (fan_in, fan_out), jnp.float32, -bound, bound)
    if bias:
        b = jax.random.uniform(kb, (1, fan_out), jnp.float32, -bound, bound)
        return w, b
    return w, None


def init_params(key, hidden_dim, num_gaussians, num_filters, num_interactions,
                cutoff, type_num):
    keys = jax.random.split(key, 2 + num_interactions)
    params = {}
    params['embedding'] = jax.random.normal(keys[0], (type_num, hidden_dim), jnp.float32)
    params['rbf_offsets'] = jnp.linspace(0.0, cutoff, num_gaussians,
                                         dtype=jnp.float32).reshape(1, -1)
    params['rbf_widths'] = jnp.full((1, num_gaussians), cutoff / num_gaussians,
                                    dtype=jnp.float32)
    blocks = []
    for li in range(num_interactions):
        bk = jax.random.split(keys[1 + li], 4)
        w1, b1 = _linear(bk[0], num_gaussians, num_filters)
        w2, b2 = _linear(bk[1], num_filters, num_filters)
        l1, _ = _linear(bk[2], hidden_dim, num_filters, bias=False)
        l2w, l2b = _linear(bk[3], num_filters, hidden_dim)
        blocks.append(dict(mlp_w1=w1, mlp_b1=b1, mlp_w2=w2, mlp_b2=b2,
                           lin1_w=l1, lin2_w=l2w, lin2_b=l2b))
    params['interactions'] = blocks
    ko = jax.random.split(keys[-1], 2)
    params['out_w1'], params['out_b1'] = _linear(ko[0], hidden_dim, hidden_dim // 2)
    params['out_w2'], params['out_b2'] = _linear(ko[1], hidden_dim // 2, 1)
    return params


# --------------------------------------------------------------------- main

if __name__ == "__main__":
    hidden_dim = 32
    num_gaussians = 16
    num_filters = 16
    num_interactions = 2
    cutoff = 5.0
    type_num = 100
    N = 8     # atoms
    E = 16    # edges

    key = jax.random.PRNGKey(0)
    kp, kx, ki, kj, kw = jax.random.split(key, 5)
    params = init_params(kp, hidden_dim, num_gaussians, num_filters,
                         num_interactions, cutoff, type_num)

    atom_types = jax.random.randint(kx, (N,), 0, type_num, dtype=jnp.int32)
    # every node appears as a destination (matches the PyTorch scatter-without-
    # dim_size assumption inside the interaction block)
    i_idx = jnp.concatenate([jnp.arange(N, dtype=jnp.int32),
                             jax.random.randint(ki, (E - N,), 0, N, dtype=jnp.int32)])
    j_idx = jax.random.randint(kj, (E,), 0, N, dtype=jnp.int32)
    edge_weight = 1.5 * jax.random.normal(kw, (E, 3), jnp.float32)

    fwd = jax.jit(functools.partial(schnet_forward, cutoff=cutoff))
    total_energy, forces, energy = fwd(params, atom_types, i_idx, j_idx, edge_weight)
    jax.block_until_ready((total_energy, forces, energy))

    # correctness: fused Pallas forward + in-kernel analytic backward vs. a
    # pure-JAX autodiff reference
    ref_total, ref_forces, ref_energy = _reference_jax(
        params, atom_types, i_idx, j_idx, edge_weight, cutoff)
    assert np.allclose(np.asarray(total_energy), np.asarray(ref_total),
                       rtol=1e-3, atol=1e-3), (total_energy, ref_total)
    assert np.allclose(np.asarray(energy), np.asarray(ref_energy),
                       rtol=1e-3, atol=1e-3)
    assert np.allclose(np.asarray(forces), np.asarray(ref_forces),
                       rtol=1e-3, atol=1e-3)
    assert np.all(np.isfinite(np.asarray(forces)))
    print("KERNEL_OK")
</pallas_src>

<mosaic_0001>
module attributes {stable_mosaic.version = 11 : i64} {
  func.func @_schnet_fused_kernel(%arg0: memref<16x128xf32, #tpu.memory_space<vmem>>, %arg1: memref<1x16xi32, #tpu.memory_space<vmem>>, %arg2: memref<16x1xi32, #tpu.memory_space<vmem>>, %arg3: memref<1x16xi32, #tpu.memory_space<vmem>>, %arg4: memref<16x1xi32, #tpu.memory_space<vmem>>, %arg5: memref<8x128xf32, #tpu.memory_space<vmem>>, %arg6: memref<1x128xf32, #tpu.memory_space<vmem>>, %arg7: memref<1x128xf32, #tpu.memory_space<vmem>>, %arg8: memref<128x128xf32, #tpu.memory_space<vmem>>, %arg9: memref<1x128xf32, #tpu.memory_space<vmem>>, %arg10: memref<128x128xf32, #tpu.memory_space<vmem>>, %arg11: memref<1x128xf32, #tpu.memory_space<vmem>>, %arg12: memref<128x128xf32, #tpu.memory_space<vmem>>, %arg13: memref<128x128xf32, #tpu.memory_space<vmem>>, %arg14: memref<1x128xf32, #tpu.memory_space<vmem>>, %arg15: memref<128x128xf32, #tpu.memory_space<vmem>>, %arg16: memref<128x128xf32, #tpu.memory_space<vmem>>, %arg17: memref<128x128xf32, #tpu.memory_space<vmem>>, %arg18: memref<128x128xf32, #tpu.memory_space<vmem>>, %arg19: memref<128x128xf32, #tpu.memory_space<vmem>>, %arg20: memref<1x128xf32, #tpu.memory_space<vmem>>, %arg21: memref<128x128xf32, #tpu.memory_space<vmem>>, %arg22: memref<1x128xf32, #tpu.memory_space<vmem>>, %arg23: memref<128x128xf32, #tpu.memory_space<vmem>>, %arg24: memref<128x128xf32, #tpu.memory_space<vmem>>, %arg25: memref<1x128xf32, #tpu.memory_space<vmem>>, %arg26: memref<128x128xf32, #tpu.memory_space<vmem>>, %arg27: memref<128x128xf32, #tpu.memory_space<vmem>>, %arg28: memref<128x128xf32, #tpu.memory_space<vmem>>, %arg29: memref<128x128xf32, #tpu.memory_space<vmem>>, %arg30: memref<128x128xf32, #tpu.memory_space<vmem>>, %arg31: memref<1x128xf32, #tpu.memory_space<vmem>>, %arg32: memref<128x128xf32, #tpu.memory_space<vmem>>, %arg33: memref<1x128xf32, #tpu.memory_space<vmem>>, %arg34: memref<1x1xf32, #tpu.memory_space<vmem>>, %arg35: memref<8x128xf32, #tpu.memory_space<vmem>>) attributes {dimension_semantics = [], scalar_prefetch = 0 : i64, scratch_operands = 0 : i64, tpu.core_type = #tpu.core_type<tc>} {
    %c0 = arith.constant 0 : index
    %c0_0 = arith.constant 0 : index
    %0 = vector.load %arg0[%c0, %c0_0] : memref<16x128xf32, #tpu.memory_space<vmem>>, vector<16x128xf32>
    %c0_1 = arith.constant 0 : index
    %c0_2 = arith.constant 0 : index
    %1 = vector.load %arg5[%c0_1, %c0_2] : memref<8x128xf32, #tpu.memory_space<vmem>>, vector<8x128xf32>
    %c0_3 = arith.constant 0 : index
    %c0_4 = arith.constant 0 : index
    %2 = vector.load %arg6[%c0_3, %c0_4] : memref<1x128xf32, #tpu.memory_space<vmem>>, vector<1x128xf32>
    %c0_5 = arith.constant 0 : index
    %c0_6 = arith.constant 0 : index
    %3 = vector.load %arg7[%c0_5, %c0_6] : memref<1x128xf32, #tpu.memory_space<vmem>>, vector<1x128xf32>
    %4 = tpu.iota {dimensions = array<i32: 0>} : vector<8x16xi32>
    %5 = tpu.iota {dimensions = array<i32: 1>} : vector<16x8xi32>
    %c0_7 = arith.constant 0 : index
    %c0_8 = arith.constant 0 : index
    %6 = vector.load %arg1[%c0_7, %c0_8] : memref<1x16xi32, #tpu.memory_space<vmem>>, vector<1x16xi32>
    %7 = vector.broadcast %6 : vector<1x16xi32> to vector<8x16xi32>
    %8 = arith.cmpi eq, %4, %7 : vector<8x16xi32>
    %9 = arith.extui %8 : vector<8x16xi1> to vector<8x16xi32>
    %10 = arith.sitofp %9 : vector<8x16xi32> to vector<8x16xf32>
    %c0_9 = arith.constant 0 : index
    %c0_10 = arith.constant 0 : index
    %11 = vector.load %arg3[%c0_9, %c0_10] : memref<1x16xi32, #tpu.memory_space<vmem>>, vector<1x16xi32>
    %12 = vector.broadcast %11 : vector<1x16xi32> to vector<8x16xi32>
    %13 = arith.cmpi eq, %4, %12 : vector<8x16xi32>
    %14 = arith.extui %13 : vector<8x16xi1> to vector<8x16xi32>
    %15 = arith.sitofp %14 : vector<8x16xi32> to vector<8x16xf32>
    %c0_11 = arith.constant 0 : index
    %c0_12 = arith.constant 0 : index
    %16 = vector.load %arg2[%c0_11, %c0_12] : memref<16x1xi32, #tpu.memory_space<vmem>>, vector<16x1xi32>
    %17 = vector.broadcast %16 : vector<16x1xi32> to vector<16x8xi32>
    %18 = arith.cmpi eq, %5, %17 : vector<16x8xi32>
    %19 = arith.extui %18 : vector<16x8xi1> to vector<16x8xi32>
    %20 = arith.sitofp %19 : vector<16x8xi32> to vector<16x8xf32>
    %c0_13 = arith.constant 0 : index
    %c0_14 = arith.constant 0 : index
    %21 = vector.load %arg4[%c0_13, %c0_14] : memref<16x1xi32, #tpu.memory_space<vmem>>, vector<16x1xi32>
    %22 = vector.broadcast %21 : vector<16x1xi32> to vector<16x8xi32>
    %23 = arith.cmpi eq, %5, %22 : vector<16x8xi32>
    %24 = arith.extui %23 : vector<16x8xi1> to vector<16x8xi32>
    %25 = arith.sitofp %24 : vector<16x8xi32> to vector<16x8xf32>
    %26 = arith.mulf %0, %0 : vector<16x128xf32>
    %cst = arith.constant dense<0.000000e+00> : vector<16xf32>
    %27 = vector.multi_reduction <add>, %26, %cst [1] : vector<16x128xf32> to vector<16xf32>
    %28 = vector.shape_cast %27 : vector<16xf32> to vector<16x1xf32>
    %29 = math.sqrt %28 : vector<16x1xf32>
    %30 = arith.mulf %3, %3 : vector<1x128xf32>
    %cst_15 = arith.constant 1.000000e+00 : f32
    %31 = vector.broadcast %cst_15 : f32 to vector<1x128xf32>
    %32 = arith.divf %31, %30 : vector<1x128xf32>
    %33 = vector.broadcast %29 : vector<16x1xf32> to vector<16x128xf32>
    %34 = vector.broadcast %2 : vector<1x128xf32> to vector<16x128xf32>
    %35 = arith.subf %33, %34 : vector<16x128xf32>
    %cst_16 = arith.constant -5.000000e-01 : f32
    %36 = vector.broadcast %cst_16 : f32 to vector<1x128xf32>
    %37 = arith.mulf %36, %32 : vector<1x128xf32>
    %38 = vector.broadcast %37 : vector<1x128xf32> to vector<16x128xf32>
    %39 = arith.mulf %38, %35 : vector<16x128xf32>
    %40 = arith.mulf %39, %35 : vector<16x128xf32>
    %41 = math.exp %40 : vector<16x128xf32>
    %cst_17 = arith.constant 5.000000e+00 : f32
    %42 = vector.broadcast %cst_17 : f32 to vector<16x1xf32>
    %43 = arith.cmpf ole, %29, %42 : vector<16x1xf32>
    %44 = arith.extui %43 : vector<16x1xi1> to vector<16x1xi32>
    %45 = arith.sitofp %44 : vector<16x1xi32> to vector<16x1xf32>
    %cst_18 = arith.constant 0.628318548 : f32
    %46 = vector.broadcast %cst_18 : f32 to vector<16x1xf32>
    %47 = arith.mulf %29, %46 : vector<16x1xf32>
    %48 = math.cos %47 : vector<16x1xf32>
    %cst_19 = arith.constant 1.000000e+00 : f32
    %49 = vector.broadcast %cst_19 : f32 to vector<16x1xf32>
    %50 = arith.addf %48, %49 : vector<16x1xf32>
    %cst_20 = arith.constant 5.000000e-01 : f32
    %51 = vector.broadcast %cst_20 : f32 to vector<16x1xf32>
    %52 = arith.mulf %51, %50 : vector<16x1xf32>
    %53 = arith.mulf %52, %45 : vector<16x1xf32>
    %c0_21 = arith.constant 0 : index
    %c0_22 = arith.constant 0 : index
    %54 = vector.load %arg8[%c0_21, %c0_22] : memref<128x128xf32, #tpu.memory_space<vmem>>, vector<128x128xf32>
    %cst_23 = arith.constant dense<0.000000e+00> : vector<16x128xf32>
    %55 = tpu.matmul %41, %54, %cst_23 {dimension_numbers = #tpu.dot_dimension_numbers<[1], [0], [0], [1], [0, 0, 1, 1], [], []>} : vector<16x128xf32>, vector<128x128xf32>, vector<16x128xf32> -> vector<16x128xf32>
    %c0_24 = arith.constant 0 : index
    %c0_25 = arith.constant 0 : index
    %56 = vector.load %arg9[%c0_24, %c0_25] : memref<1x128xf32, #tpu.memory_space<vmem>>, vector<1x128xf32>
    %57 = vector.broadcast %56 : vector<1x128xf32> to vector<16x128xf32>
    %58 = arith.addf %55, %57 : vector<16x128xf32>
    %cst_26 = arith.constant 0.000000e+00 : f32
    %59 = vector.broadcast %cst_26 : f32 to vector<16x128xf32>
    %60 = arith.maximumf %58, %59 : vector<16x128xf32>
    %61 = math.absf %58 : vector<16x128xf32>
    %cst_27 = arith.constant 0.000000e+00 : f32
    %62 = vector.broadcast %cst_27 : f32 to vector<16x128xf32>
    %63 = arith.subf %62, %61 : vector<16x128xf32>
    %64 = math.exp %63 : vector<16x128xf32>
    %cst_28 = arith.constant 1.000000e+00 : f32
    %65 = vector.broadcast %cst_28 : f32 to vector<16x128xf32>
    %66 = arith.addf %65, %64 : vector<16x128xf32>
    %67 = math.log %66 : vector<16x128xf32>
    %68 = arith.addf %60, %67 : vector<16x128xf32>
    %cst_29 = arith.constant 0.693147182 : f32
    %69 = vector.broadcast %cst_29 : f32 to vector<16x128xf32>
    %70 = arith.subf %68, %69 : vector<16x128xf32>
    %c0_30 = arith.constant 0 : index
    %c0_31 = arith.constant 0 : index
    %71 = vector.load %arg10[%c0_30, %c0_31] : memref<128x128xf32, #tpu.memory_space<vmem>>, vector<128x128xf32>
    %cst_32 = arith.constant dense<0.000000e+00> : vector<16x128xf32>
    %72 = tpu.matmul %70, %71, %cst_32 {dimension_numbers = #tpu.dot_dimension_numbers<[1], [0], [0], [1], [0, 0, 1, 1], [], []>} : vector<16x128xf32>, vector<128x128xf32>, vector<16x128xf32> -> vector<16x128xf32>
    %c0_33 = arith.constant 0 : index
    %c0_34 = arith.constant 0 : index
    %73 = vector.load %arg11[%c0_33, %c0_34] : memref<1x128xf32, #tpu.memory_space<vmem>>, vector<1x128xf32>
    %74 = vector.broadcast %73 : vector<1x128xf32> to vector<16x128xf32>
    %75 = arith.addf %72, %74 : vector<16x128xf32>
    %76 = vector.broadcast %53 : vector<16x1xf32> to vector<16x128xf32>
    %77 = arith.mulf %75, %76 : vector<16x128xf32>
    %c0_35 = arith.constant 0 : index
    %c0_36 = arith.constant 0 : index
    %78 = vector.load %arg12[%c0_35, %c0_36] : memref<128x128xf32, #tpu.memory_space<vmem>>, vector<128x128xf32>
    %cst_37 = arith.constant dense<0.000000e+00> : vector<8x128xf32>
    %79 = tpu.matmul %1, %78, %cst_37 {dimension_numbers = #tpu.dot_dimension_numbers<[1], [0], [0], [1], [0, 0, 1, 1], [], []>} : vector<8x128xf32>, vector<128x128xf32>, vector<8x128xf32> -> vector<8x128xf32>
    %cst_38 = arith.constant dense<0.000000e+00> : vector<16x128xf32>
    %80 = tpu.matmul %25, %79, %cst_38 {dimension_numbers = #tpu.dot_dimension_numbers<[1], [0], [0], [1], [0, 0, 1, 1], [], []>} : vector<16x8xf32>, vector<8x128xf32>, vector<16x128xf32> -> vector<16x128xf32>
    %81 = arith.mulf %77, %80 : vector<16x128xf32>
    %cst_39 = arith.constant dense<0.000000e+00> : vector<8x128xf32>
    %82 = tpu.matmul %10, %81, %cst_39 {dimension_numbers = #tpu.dot_dimension_numbers<[1], [0], [0], [1], [0, 0, 1, 1], [], []>} : vector<8x16xf32>, vector<16x128xf32>, vector<8x128xf32> -> vector<8x128xf32>
    %c0_40 = arith.constant 0 : index
    %c0_41 = arith.constant 0 : index
    %83 = vector.load %arg13[%c0_40, %c0_41] : memref<128x128xf32, #tpu.memory_space<vmem>>, vector<128x128xf32>
    %cst_42 = arith.constant dense<0.000000e+00> : vector<8x128xf32>
    %84 = tpu.matmul %82, %83, %cst_42 {dimension_numbers = #tpu.dot_dimension_numbers<[1], [0], [0], [1], [0, 0, 1, 1], [], []>} : vector<8x128xf32>, vector<128x128xf32>, vector<8x128xf32> -> vector<8x128xf32>
    %c0_43 = arith.constant 0 : index
    %c0_44 = arith.constant 0 : index
    %85 = vector.load %arg14[%c0_43, %c0_44] : memref<1x128xf32, #tpu.memory_space<vmem>>, vector<1x128xf32>
    %86 = vector.broadcast %85 : vector<1x128xf32> to vector<8x128xf32>
    %87 = arith.addf %84, %86 : vector<8x128xf32>
    %cst_45 = arith.constant 0.000000e+00 : f32
    %88 = vector.broadcast %cst_45 : f32 to vector<8x128xf32>
    %89 = arith.maximumf %87, %88 : vector<8x128xf32>
    %90 = math.absf %87 : vector<8x128xf32>
    %cst_46 = arith.constant 0.000000e+00 : f32
    %91 = vector.broadcast %cst_46 : f32 to vector<8x128xf32>
    %92 = arith.subf %91, %90 : vector<8x128xf32>
    %93 = math.exp %92 : vector<8x128xf32>
    %cst_47 = arith.constant 1.000000e+00 : f32
    %94 = vector.broadcast %cst_47 : f32 to vector<8x128xf32>
    %95 = arith.addf %94, %93 : vector<8x128xf32>
    %96 = math.log %95 : vector<8x128xf32>
    %97 = arith.addf %89, %96 : vector<8x128xf32>
    %cst_48 = arith.constant 0.693147182 : f32
    %98 = vector.broadcast %cst_48 : f32 to vector<8x128xf32>
    %99 = arith.subf %97, %98 : vector<8x128xf32>
    %100 = arith.addf %1, %99 : vector<8x128xf32>
    %c0_49 = arith.constant 0 : index
    %c0_50 = arith.constant 0 : index
    %101 = vector.load %arg19[%c0_49, %c0_50] : memref<128x128xf32, #tpu.memory_space<vmem>>, vector<128x128xf32>
    %cst_51 = arith.constant dense<0.000000e+00> : vector<16x128xf32>
    %102 = tpu.matmul %41, %101, %cst_51 {dimension_numbers = #tpu.dot_dimension_numbers<[1], [0], [0], [1], [0, 0, 1, 1], [], []>} : vector<16x128xf32>, vector<128x128xf32>, vector<16x128xf32> -> vector<16x128xf32>
    %c0_52 = arith.constant 0 : index
    %c0_53 = arith.constant 0 : index
    %103 = vector.load %arg20[%c0_52, %c0_53] : memref<1x128xf32, #tpu.memory_space<vmem>>, vector<1x128xf32>
    %104 = vector.broadcast %103 : vector<1x128xf32> to vector<16x128xf32>
    %105 = arith.addf %102, %104 : vector<16x128xf32>
    %cst_54 = arith.constant 0.000000e+00 : f32
    %106 = vector.broadcast %cst_54 : f32 to vector<16x128xf32>
    %107 = arith.maximumf %105, %106 : vector<16x128xf32>
    %108 = math.absf %105 : vector<16x128xf32>
    %cst_55 = arith.constant 0.000000e+00 : f32
    %109 = vector.broadcast %cst_55 : f32 to vector<16x128xf32>
    %110 = arith.subf %109, %108 : vector<16x128xf32>
    %111 = math.exp %110 : vector<16x128xf32>
    %cst_56 = arith.constant 1.000000e+00 : f32
    %112 = vector.broadcast %cst_56 : f32 to vector<16x128xf32>
    %113 = arith.addf %112, %111 : vector<16x128xf32>
    %114 = math.log %113 : vector<16x128xf32>
    %115 = arith.addf %107, %114 : vector<16x128xf32>
    %cst_57 = arith.constant 0.693147182 : f32
    %116 = vector.broadcast %cst_57 : f32 to vector<16x128xf32>
    %117 = arith.subf %115, %116 : vector<16x128xf32>
    %c0_58 = arith.constant 0 : index
    %c0_59 = arith.constant 0 : index
    %118 = vector.load %arg21[%c0_58, %c0_59] : memref<128x128xf32, #tpu.memory_space<vmem>>, vector<128x128xf32>
    %cst_60 = arith.constant dense<0.000000e+00> : vector<16x128xf32>
    %119 = tpu.matmul %117, %118, %cst_60 {dimension_numbers = #tpu.dot_dimension_numbers<[1], [0], [0], [1], [0, 0, 1, 1], [], []>} : vector<16x128xf32>, vector<128x128xf32>, vector<16x128xf32> -> vector<16x128xf32>
    %c0_61 = arith.constant 0 : index
    %c0_62 = arith.constant 0 : index
    %120 = vector.load %arg22[%c0_61, %c0_62] : memref<1x128xf32, #tpu.memory_space<vmem>>, vector<1x128xf32>
    %121 = vector.broadcast %120 : vector<1x128xf32> to vector<16x128xf32>
    %122 = arith.addf %119, %121 : vector<16x128xf32>
    %123 = vector.broadcast %53 : vector<16x1xf32> to vector<16x128xf32>
    %124 = arith.mulf %122, %123 : vector<16x128xf32>
    %c0_63 = arith.constant 0 : index
    %c0_64 = arith.constant 0 : index
    %125 = vector.load %arg23[%c0_63, %c0_64] : memref<128x128xf32, #tpu.memory_space<vmem>>, vector<128x128xf32>
    %cst_65 = arith.constant dense<0.000000e+00> : vector<8x128xf32>
    %126 = tpu.matmul %100, %125, %cst_65 {dimension_numbers = #tpu.dot_dimension_numbers<[1], [0], [0], [1], [0, 0, 1, 1], [], []>} : vector<8x128xf32>, vector<128x128xf32>, vector<8x128xf32> -> vector<8x128xf32>
    %cst_66 = arith.constant dense<0.000000e+00> : vector<16x128xf32>
    %127 = tpu.matmul %25, %126, %cst_66 {dimension_numbers = #tpu.dot_dimension_numbers<[1], [0], [0], [1], [0, 0, 1, 1], [], []>} : vector<16x8xf32>, vector<8x128xf32>, vector<16x128xf32> -> vector<16x128xf32>
    %128 = arith.mulf %124, %127 : vector<16x128xf32>
    %cst_67 = arith.constant dense<0.000000e+00> : vector<8x128xf32>
    %129 = tpu.matmul %10, %128, %cst_67 {dimension_numbers = #tpu.dot_dimension_numbers<[1], [0], [0], [1], [0, 0, 1, 1], [], []>} : vector<8x16xf32>, vector<16x128xf32>, vector<8x128xf32> -> vector<8x128xf32>
    %c0_68 = arith.constant 0 : index
    %c0_69 = arith.constant 0 : index
    %130 = vector.load %arg24[%c0_68, %c0_69] : memref<128x128xf32, #tpu.memory_space<vmem>>, vector<128x128xf32>
    %cst_70 = arith.constant dense<0.000000e+00> : vector<8x128xf32>
    %131 = tpu.matmul %129, %130, %cst_70 {dimension_numbers = #tpu.dot_dimension_numbers<[1], [0], [0], [1], [0, 0, 1, 1], [], []>} : vector<8x128xf32>, vector<128x128xf32>, vector<8x128xf32> -> vector<8x128xf32>
    %c0_71 = arith.constant 0 : index
    %c0_72 = arith.constant 0 : index
    %132 = vector.load %arg25[%c0_71, %c0_72] : memref<1x128xf32, #tpu.memory_space<vmem>>, vector<1x128xf32>
    %133 = vector.broadcast %132 : vector<1x128xf32> to vector<8x128xf32>
    %134 = arith.addf %131, %133 : vector<8x128xf32>
    %cst_73 = arith.constant 0.000000e+00 : f32
    %135 = vector.broadcast %cst_73 : f32 to vector<8x128xf32>
    %136 = arith.maximumf %134, %135 : vector<8x128xf32>
    %137 = math.absf %134 : vector<8x128xf32>
    %cst_74 = arith.constant 0.000000e+00 : f32
    %138 = vector.broadcast %cst_74 : f32 to vector<8x128xf32>
    %139 = arith.subf %138, %137 : vector<8x128xf32>
    %140 = math.exp %139 : vector<8x128xf32>
    %cst_75 = arith.constant 1.000000e+00 : f32
    %141 = vector.broadcast %cst_75 : f32 to vector<8x128xf32>
    %142 = arith.addf %141, %140 : vector<8x128xf32>
    %143 = math.log %142 : vector<8x128xf32>
    %144 = arith.addf %136, %143 : vector<8x128xf32>
    %cst_76 = arith.constant 0.693147182 : f32
    %145 = vector.broadcast %cst_76 : f32 to vector<8x128xf32>
    %146 = arith.subf %144, %145 : vector<8x128xf32>
    %147 = arith.addf %100, %146 : vector<8x128xf32>
    %c0_77 = arith.constant 0 : index
    %c0_78 = arith.constant 0 : index
    %148 = vector.load %arg30[%c0_77, %c0_78] : memref<128x128xf32, #tpu.memory_space<vmem>>, vector<128x128xf32>
    %cst_79 = arith.constant dense<0.000000e+00> : vector<8x128xf32>
    %149 = tpu.matmul %147, %148, %cst_79 {dimension_numbers = #tpu.dot_dimension_numbers<[1], [0], [0], [1], [0, 0, 1, 1], [], []>} : vector<8x128xf32>, vector<128x128xf32>, vector<8x128xf32> -> vector<8x128xf32>
    %c0_80 = arith.constant 0 : index
    %c0_81 = arith.constant 0 : index
    %150 = vector.load %arg31[%c0_80, %c0_81] : memref<1x128xf32, #tpu.memory_space<vmem>>, vector<1x128xf32>
    %151 = vector.broadcast %150 : vector<1x128xf32> to vector<8x128xf32>
    %152 = arith.addf %149, %151 : vector<8x128xf32>
    %cst_82 = arith.constant 0.000000e+00 : f32
    %153 = vector.broadcast %cst_82 : f32 to vector<8x128xf32>
    %154 = arith.maximumf %152, %153 : vector<8x128xf32>
    %155 = math.absf %152 : vector<8x128xf32>
    %cst_83 = arith.constant 0.000000e+00 : f32
    %156 = vector.broadcast %cst_83 : f32 to vector<8x128xf32>
    %157 = arith.subf %156, %155 : vector<8x128xf32>
    %158 = math.exp %157 : vector<8x128xf32>
    %cst_84 = arith.constant 1.000000e+00 : f32
    %159 = vector.broadcast %cst_84 : f32 to vector<8x128xf32>
    %160 = arith.addf %159, %158 : vector<8x128xf32>
    %161 = math.log %160 : vector<8x128xf32>
    %162 = arith.addf %154, %161 : vector<8x128xf32>
    %cst_85 = arith.constant 0.693147182 : f32
    %163 = vector.broadcast %cst_85 : f32 to vector<8x128xf32>
    %164 = arith.subf %162, %163 : vector<8x128xf32>
    %c0_86 = arith.constant 0 : index
    %c0_87 = arith.constant 0 : index
    %165 = vector.load %arg33[%c0_86, %c0_87] : memref<1x128xf32, #tpu.memory_space<vmem>>, vector<1x128xf32>
    %166 = vector.broadcast %165 : vector<1x128xf32> to vector<8x128xf32>
    %167 = arith.mulf %164, %166 : vector<8x128xf32>
    %cst_88 = arith.constant dense<0.000000e+00> : vector<8xf32>
    %168 = vector.multi_reduction <add>, %167, %cst_88 [1] : vector<8x128xf32> to vector<8xf32>
    %169 = vector.shape_cast %168 : vector<8xf32> to vector<8x1xf32>
    %c0_89 = arith.constant 0 : index
    %c0_90 = arith.constant 0 : index
    %170 = vector.load %arg34[%c0_89, %c0_90] : memref<1x1xf32, #tpu.memory_space<vmem>>, vector<1x1xf32>
    %171 = vector.broadcast %170 : vector<1x1xf32> to vector<8x1xf32>
    %172 = arith.addf %169, %171 : vector<8x1xf32>
    %c0_91 = arith.constant 0 : index
    %c0_92 = arith.constant 0 : index
    %173 = vector.load %arg33[%c0_91, %c0_92] : memref<1x128xf32, #tpu.memory_space<vmem>>, vector<1x128xf32>
    %174 = math.absf %152 : vector<8x128xf32>
    %cst_93 = arith.constant 0.000000e+00 : f32
    %175 = vector.broadcast %cst_93 : f32 to vector<8x128xf32>
    %176 = arith.subf %175, %174 : vector<8x128xf32>
    %177 = math.exp %176 : vector<8x128xf32>
    %cst_94 = arith.constant 0.000000e+00 : f32
    %178 = vector.broadcast %cst_94 : f32 to vector<8x128xf32>
    %179 = arith.cmpf oge, %152, %178 : vector<8x128xf32>
    %cst_95 = arith.constant 1.000000e+00 : f32
    %180 = vector.broadcast %cst_95 : f32 to vector<8x128xf32>
    %181 = arith.addf %180, %177 : vector<8x128xf32>
    %cst_96 = arith.constant 1.000000e+00 : f32
    %182 = vector.broadcast %cst_96 : f32 to vector<8x128xf32>
    %183 = arith.divf %182, %181 : vector<8x128xf32>
    %cst_97 = arith.constant 1.000000e+00 : f32
    %184 = vector.broadcast %cst_97 : f32 to vector<8x128xf32>
    %185 = arith.addf %184, %177 : vector<8x128xf32>
    %186 = arith.divf %177, %185 : vector<8x128xf32>
    %187 = arith.select %179, %183, %186 : vector<8x128xi1>, vector<8x128xf32>
    %188 = vector.broadcast %173 : vector<1x128xf32> to vector<8x128xf32>
    %189 = arith.mulf %188, %187 : vector<8x128xf32>
    %c0_98 = arith.constant 0 : index
    %c0_99 = arith.constant 0 : index
    %190 = vector.load %arg32[%c0_98, %c0_99] : memref<128x128xf32, #tpu.memory_space<vmem>>, vector<128x128xf32>
    %cst_100 = arith.constant dense<0.000000e+00> : vector<8x128xf32>
    %191 = tpu.matmul %189, %190, %cst_100 {dimension_numbers = #tpu.dot_dimension_numbers<[1], [0], [0], [1], [0, 0, 1, 1], [], []>} : vector<8x128xf32>, vector<128x128xf32>, vector<8x128xf32> -> vector<8x128xf32>
    %cst_101 = arith.constant 0.000000e+00 : f32
    %192 = vector.broadcast %cst_101 : f32 to vector<16x128xf32>
    %cst_102 = arith.constant 0.000000e+00 : f32
    %193 = vector.broadcast %cst_102 : f32 to vector<16x1xf32>
    %194 = math.absf %134 : vector<8x128xf32>
    %cst_103 = arith.constant 0.000000e+00 : f32
    %195 = vector.broadcast %cst_103 : f32 to vector<8x128xf32>
    %196 = arith.subf %195, %194 : vector<8x128xf32>
    %197 = math.exp %196 : vector<8x128xf32>
    %cst_104 = arith.constant 0.000000e+00 : f32
    %198 = vector.broadcast %cst_104 : f32 to vector<8x128xf32>
    %199 = arith.cmpf oge, %134, %198 : vector<8x128xf32>
    %cst_105 = arith.constant 1.000000e+00 : f32
    %200 = vector.broadcast %cst_105 : f32 to vector<8x128xf32>
    %201 = arith.addf %200, %197 : vector<8x128xf32>
    %cst_106 = arith.constant 1.000000e+00 : f32
    %202 = vector.broadcast %cst_106 : f32 to vector<8x128xf32>
    %203 = arith.divf %202, %201 : vector<8x128xf32>
    %cst_107 = arith.constant 1.000000e+00 : f32
    %204 = vector.broadcast %cst_107 : f32 to vector<8x128xf32>
    %205 = arith.addf %204, %197 : vector<8x128xf32>
    %206 = arith.divf %197, %205 : vector<8x128xf32>
    %207 = arith.select %199, %203, %206 : vector<8x128xi1>, vector<8x128xf32>
    %208 = arith.mulf %191, %207 : vector<8x128xf32>
    %c0_108 = arith.constant 0 : index
    %c0_109 = arith.constant 0 : index
    %209 = vector.load %arg29[%c0_108, %c0_109] : memref<128x128xf32, #tpu.memory_space<vmem>>, vector<128x128xf32>
    %cst_110 = arith.constant dense<0.000000e+00> : vector<8x128xf32>
    %210 = tpu.matmul %208, %209, %cst_110 {dimension_numbers = #tpu.dot_dimension_numbers<[1], [0], [0], [1], [0, 0, 1, 1], [], []>} : vector<8x128xf32>, vector<128x128xf32>, vector<8x128xf32> -> vector<8x128xf32>
    %cst_111 = arith.constant dense<0.000000e+00> : vector<16x128xf32>
    %211 = tpu.matmul %20, %210, %cst_111 {dimension_numbers = #tpu.dot_dimension_numbers<[1], [0], [0], [1], [0, 0, 1, 1], [], []>} : vector<16x8xf32>, vector<8x128xf32>, vector<16x128xf32> -> vector<16x128xf32>
    %212 = arith.mulf %211, %127 : vector<16x128xf32>
    %213 = arith.mulf %211, %124 : vector<16x128xf32>
    %cst_112 = arith.constant dense<0.000000e+00> : vector<8x128xf32>
    %214 = tpu.matmul %15, %213, %cst_112 {dimension_numbers = #tpu.dot_dimension_numbers<[1], [0], [0], [1], [0, 0, 1, 1], [], []>} : vector<8x16xf32>, vector<16x128xf32>, vector<8x128xf32> -> vector<8x128xf32>
    %c0_113 = arith.constant 0 : index
    %c0_114 = arith.constant 0 : index
    %215 = vector.load %arg28[%c0_113, %c0_114] : memref<128x128xf32, #tpu.memory_space<vmem>>, vector<128x128xf32>
    %cst_115 = arith.constant dense<0.000000e+00> : vector<8x128xf32>
    %216 = tpu.matmul %214, %215, %cst_115 {dimension_numbers = #tpu.dot_dimension_numbers<[1], [0], [0], [1], [0, 0, 1, 1], [], []>} : vector<8x128xf32>, vector<128x128xf32>, vector<8x128xf32> -> vector<8x128xf32>
    %217 = arith.addf %191, %216 : vector<8x128xf32>
    %218 = vector.broadcast %53 : vector<16x1xf32> to vector<16x128xf32>
    %219 = arith.mulf %212, %218 : vector<16x128xf32>
    %220 = arith.mulf %212, %122 : vector<16x128xf32>
    %cst_116 = arith.constant dense<0.000000e+00> : vector<16xf32>
    %221 = vector.multi_reduction <add>, %220, %cst_116 [1] : vector<16x128xf32> to vector<16xf32>
    %222 = vector.shape_cast %221 : vector<16xf32> to vector<16x1xf32>
    %223 = arith.addf %193, %222 : vector<16x1xf32>
    %c0_117 = arith.constant 0 : index
    %c0_118 = arith.constant 0 : index
    %224 = vector.load %arg27[%c0_117, %c0_118] : memref<128x128xf32, #tpu.memory_space<vmem>>, vector<128x128xf32>
    %cst_119 = arith.constant dense<0.000000e+00> : vector<16x128xf32>
    %225 = tpu.matmul %219, %224, %cst_119 {dimension_numbers = #tpu.dot_dimension_numbers<[1], [0], [0], [1], [0, 0, 1, 1], [], []>} : vector<16x128xf32>, vector<128x128xf32>, vector<16x128xf32> -> vector<16x128xf32>
    %226 = math.absf %105 : vector<16x128xf32>
    %cst_120 = arith.constant 0.000000e+00 : f32
    %227 = vector.broadcast %cst_120 : f32 to vector<16x128xf32>
    %228 = arith.subf %227, %226 : vector<16x128xf32>
    %229 = math.exp %228 : vector<16x128xf32>
    %cst_121 = arith.constant 0.000000e+00 : f32
    %230 = vector.broadcast %cst_121 : f32 to vector<16x128xf32>
    %231 = arith.cmpf oge, %105, %230 : vector<16x128xf32>
    %cst_122 = arith.constant 1.000000e+00 : f32
    %232 = vector.broadcast %cst_122 : f32 to vector<16x128xf32>
    %233 = arith.addf %232, %229 : vector<16x128xf32>
    %cst_123 = arith.constant 1.000000e+00 : f32
    %234 = vector.broadcast %cst_123 : f32 to vector<16x128xf32>
    %235 = arith.divf %234, %233 : vector<16x128xf32>
    %cst_124 = arith.constant 1.000000e+00 : f32
    %236 = vector.broadcast %cst_124 : f32 to vector<16x128xf32>
    %237 = arith.addf %236, %229 : vector<16x128xf32>
    %238 = arith.divf %229, %237 : vector<16x128xf32>
    %239 = arith.select %231, %235, %238 : vector<16x128xi1>, vector<16x128xf32>
    %240 = arith.mulf %225, %239 : vector<16x128xf32>
    %c0_125 = arith.constant 0 : index
    %c0_126 = arith.constant 0 : index
    %241 = vector.load %arg26[%c0_125, %c0_126] : memref<128x128xf32, #tpu.memory_space<vmem>>, vector<128x128xf32>
    %cst_127 = arith.constant dense<0.000000e+00> : vector<16x128xf32>
    %242 = tpu.matmul %240, %241, %cst_127 {dimension_numbers = #tpu.dot_dimension_numbers<[1], [0], [0], [1], [0, 0, 1, 1], [], []>} : vector<16x128xf32>, vector<128x128xf32>, vector<16x128xf32> -> vector<16x128xf32>
    %243 = arith.addf %192, %242 : vector<16x128xf32>
    %244 = math.absf %87 : vector<8x128xf32>
    %cst_128 = arith.constant 0.000000e+00 : f32
    %245 = vector.broadcast %cst_128 : f32 to vector<8x128xf32>
    %246 = arith.subf %245, %244 : vector<8x128xf32>
    %247 = math.exp %246 : vector<8x128xf32>
    %cst_129 = arith.constant 0.000000e+00 : f32
    %248 = vector.broadcast %cst_129 : f32 to vector<8x128xf32>
    %249 = arith.cmpf oge, %87, %248 : vector<8x128xf32>
    %cst_130 = arith.constant 1.000000e+00 : f32
    %250 = vector.broadcast %cst_130 : f32 to vector<8x128xf32>
    %251 = arith.addf %250, %247 : vector<8x128xf32>
    %cst_131 = arith.constant 1.000000e+00 : f32
    %252 = vector.broadcast %cst_131 : f32 to vector<8x128xf32>
    %253 = arith.divf %252, %251 : vector<8x128xf32>
    %cst_132 = arith.constant 1.000000e+00 : f32
    %254 = vector.broadcast %cst_132 : f32 to vector<8x128xf32>
    %255 = arith.addf %254, %247 : vector<8x128xf32>
    %256 = arith.divf %247, %255 : vector<8x128xf32>
    %257 = arith.select %249, %253, %256 : vector<8x128xi1>, vector<8x128xf32>
    %258 = arith.mulf %217, %257 : vector<8x128xf32>
    %c0_133 = arith.constant 0 : index
    %c0_134 = arith.constant 0 : index
    %259 = vector.load %arg18[%c0_133, %c0_134] : memref<128x128xf32, #tpu.memory_space<vmem>>, vector<128x128xf32>
    %cst_135 = arith.constant dense<0.000000e+00> : vector<8x128xf32>
    %260 = tpu.matmul %258, %259, %cst_135 {dimension_numbers = #tpu.dot_dimension_numbers<[1], [0], [0], [1], [0, 0, 1, 1], [], []>} : vector<8x128xf32>, vector<128x128xf32>, vector<8x128xf32> -> vector<8x128xf32>
    %cst_136 = arith.constant dense<0.000000e+00> : vector<16x128xf32>
    %261 = tpu.matmul %20, %260, %cst_136 {dimension_numbers = #tpu.dot_dimension_numbers<[1], [0], [0], [1], [0, 0, 1, 1], [], []>} : vector<16x8xf32>, vector<8x128xf32>, vector<16x128xf32> -> vector<16x128xf32>
    %262 = arith.mulf %261, %80 : vector<16x128xf32>
    %263 = vector.broadcast %53 : vector<16x1xf32> to vector<16x128xf32>
    %264 = arith.mulf %262, %263 : vector<16x128xf32>
    %265 = arith.mulf %262, %75 : vector<16x128xf32>
    %cst_137 = arith.constant dense<0.000000e+00> : vector<16xf32>
    %266 = vector.multi_reduction <add>, %265, %cst_137 [1] : vector<16x128xf32> to vector<16xf32>
    %267 = vector.shape_cast %266 : vector<16xf32> to vector<16x1xf32>
    %268 = arith.addf %223, %267 : vector<16x1xf32>
    %c0_138 = arith.constant 0 : index
    %c0_139 = arith.constant 0 : index
    %269 = vector.load %arg16[%c0_138, %c0_139] : memref<128x128xf32, #tpu.memory_space<vmem>>, vector<128x128xf32>
    %cst_140 = arith.constant dense<0.000000e+00> : vector<16x128xf32>
    %270 = tpu.matmul %264, %269, %cst_140 {dimension_numbers = #tpu.dot_dimension_numbers<[1], [0], [0], [1], [0, 0, 1, 1], [], []>} : vector<16x128xf32>, vector<128x128xf32>, vector<16x128xf32> -> vector<16x128xf32>
    %271 = math.absf %58 : vector<16x128xf32>
    %cst_141 = arith.constant 0.000000e+00 : f32
    %272 = vector.broadcast %cst_141 : f32 to vector<16x128xf32>
    %273 = arith.subf %272, %271 : vector<16x128xf32>
    %274 = math.exp %273 : vector<16x128xf32>
    %cst_142 = arith.constant 0.000000e+00 : f32
    %275 = vector.broadcast %cst_142 : f32 to vector<16x128xf32>
    %276 = arith.cmpf oge, %58, %275 : vector<16x128xf32>
    %cst_143 = arith.constant 1.000000e+00 : f32
    %277 = vector.broadcast %cst_143 : f32 to vector<16x128xf32>
    %278 = arith.addf %277, %274 : vector<16x128xf32>
    %cst_144 = arith.constant 1.000000e+00 : f32
    %279 = vector.broadcast %cst_144 : f32 to vector<16x128xf32>
    %280 = arith.divf %279, %278 : vector<16x128xf32>
    %cst_145 = arith.constant 1.000000e+00 : f32
    %281 = vector.broadcast %cst_145 : f32 to vector<16x128xf32>
    %282 = arith.addf %281, %274 : vector<16x128xf32>
    %283 = arith.divf %274, %282 : vector<16x128xf32>
    %284 = arith.select %276, %280, %283 : vector<16x128xi1>, vector<16x128xf32>
    %285 = arith.mulf %270, %284 : vector<16x128xf32>
    %c0_146 = arith.constant 0 : index
    %c0_147 = arith.constant 0 : index
    %286 = vector.load %arg15[%c0_146, %c0_147] : memref<128x128xf32, #tpu.memory_space<vmem>>, vector<128x128xf32>
    %cst_148 = arith.constant dense<0.000000e+00> : vector<16x128xf32>
    %287 = tpu.matmul %285, %286, %cst_148 {dimension_numbers = #tpu.dot_dimension_numbers<[1], [0], [0], [1], [0, 0, 1, 1], [], []>} : vector<16x128xf32>, vector<128x128xf32>, vector<16x128xf32> -> vector<16x128xf32>
    %288 = arith.addf %243, %287 : vector<16x128xf32>
    %289 = arith.mulf %288, %41 : vector<16x128xf32>
    %290 = vector.broadcast %29 : vector<16x1xf32> to vector<16x128xf32>
    %291 = vector.broadcast %2 : vector<1x128xf32> to vector<16x128xf32>
    %292 = arith.subf %290, %291 : vector<16x128xf32>
    %cst_149 = arith.constant 0.000000e+00 : f32
    %293 = vector.broadcast %cst_149 : f32 to vector<16x128xf32>
    %294 = arith.subf %293, %292 : vector<16x128xf32>
    %295 = vector.broadcast %32 : vector<1x128xf32> to vector<16x128xf32>
    %296 = arith.mulf %294, %295 : vector<16x128xf32>
    %297 = arith.mulf %289, %296 : vector<16x128xf32>
    %cst_150 = arith.constant dense<0.000000e+00> : vector<16xf32>
    %298 = vector.multi_reduction <add>, %297, %cst_150 [1] : vector<16x128xf32> to vector<16xf32>
    %299 = vector.shape_cast %298 : vector<16xf32> to vector<16x1xf32>
    %cst_151 = arith.constant 0.628318548 : f32
    %300 = vector.broadcast %cst_151 : f32 to vector<16x1xf32>
    %301 = arith.mulf %29, %300 : vector<16x1xf32>
    %302 = math.sin %301 : vector<16x1xf32>
    %cst_152 = arith.constant -0.314159274 : f32
    %303 = vector.broadcast %cst_152 : f32 to vector<16x1xf32>
    %304 = arith.mulf %303, %302 : vector<16x1xf32>
    %305 = arith.mulf %304, %45 : vector<16x1xf32>
    %306 = arith.mulf %268, %305 : vector<16x1xf32>
    %307 = arith.addf %299, %306 : vector<16x1xf32>
    %cst_153 = arith.constant 0.000000e+00 : f32
    %308 = vector.broadcast %cst_153 : f32 to vector<16x1xf32>
    %309 = arith.cmpf ogt, %29, %308 : vector<16x1xf32>
    %cst_154 = arith.constant 1.000000e+00 : f32
    %310 = vector.broadcast %cst_154 : f32 to vector<16x1xf32>
    %311 = arith.divf %310, %29 : vector<16x1xf32>
    %cst_155 = arith.constant 0.000000e+00 : f32
    %312 = vector.broadcast %cst_155 : f32 to vector<16x1xf32>
    %313 = arith.select %309, %311, %312 : vector<16x1xi1>, vector<16x1xf32>
    %314 = vector.broadcast %307 : vector<16x1xf32> to vector<16x128xf32>
    %315 = arith.mulf %314, %0 : vector<16x128xf32>
    %316 = vector.broadcast %313 : vector<16x1xf32> to vector<16x128xf32>
    %317 = arith.mulf %315, %316 : vector<16x128xf32>
    %cst_156 = arith.constant dense<0.000000e+00> : vector<8x128xf32>
    %318 = tpu.matmul %10, %317, %cst_156 {dimension_numbers = #tpu.dot_dimension_numbers<[1], [0], [0], [1], [0, 0, 1, 1], [], []>} : vector<8x16xf32>, vector<16x128xf32>, vector<8x128xf32> -> vector<8x128xf32>
    %cst_157 = arith.constant dense<0.000000e+00> : vector<8x128xf32>
    %319 = tpu.matmul %15, %317, %cst_157 {dimension_numbers = #tpu.dot_dimension_numbers<[1], [0], [0], [1], [0, 0, 1, 1], [], []>} : vector<8x16xf32>, vector<16x128xf32>, vector<8x128xf32> -> vector<8x128xf32>
    %320 = arith.subf %318, %319 : vector<8x128xf32>
    %321 = tpu.iota {dimensions = array<i32: 1>} : vector<8x128xi32>
    %c3_i32 = arith.constant 3 : i32
    %322 = vector.broadcast %c3_i32 : i32 to vector<8x128xi32>
    %323 = arith.cmpi eq, %321, %322 : vector<8x128xi32>
    %cst_158 = arith.constant 0.000000e+00 : f32
    %324 = vector.shape_cast %172 : vector<8x1xf32> to vector<8x1xf32>
    %325 = vector.broadcast %324 : vector<8x1xf32> to vector<8x128xf32>
    %326 = vector.broadcast %cst_158 : f32 to vector<8x128xf32>
    %327 = arith.select %323, %325, %326 : vector<8x128xi1>, vector<8x128xf32>
    %328 = arith.addf %320, %327 : vector<8x128xf32>
    %c0_159 = arith.constant 0 : index
    %c0_160 = arith.constant 0 : index
    %329 = vector.load %arg35[%c0_159, %c0_160] : memref<8x128xf32, #tpu.memory_space<vmem>>, vector<8x128xf32>
    tpu.vector_store %arg35[%c0_159, %c0_160], %328 {strides = array<i32>} : memref<8x128xf32, #tpu.memory_space<vmem>>, vector<8x128xf32>,
    return
  }
}

</mosaic_0001>

<llo_original>
// kernel: schnet_forward.1
$region0: #{schnet_forward.1}
  #allocation0 [shape = 'u32[]', space=smem, size = 0x4, offset = 0x4, fixed_abs, tag = 'smem constant byte address 0x4 - core index']
  #allocation1 [shape = 'u32[144,128]{1,0:T(1,128)}', space=vmem, size = 0x12000, scoped, tag = 'internal scratch']
  #allocation2 [shape = 'f32[1,1]{1,0:T(1,128)S(1)}', space=vmem, size = 0x200, scoped, tag = 'scoped memory for schnet_forward.1']
  %s0 = inlined_call_operand.smem [shape: u32[36], index: -1, kind: input, shape index: {}]
  %s1 = sld [smem:[%s0]]
  %s2 = scalar_lea.smem %s0, 1
  %s3 = sld [smem:[%s2]]
  %s4 = scalar_lea.smem %s0, 2
  %s5 = sld [smem:[%s4]]
  %s6 = scalar_lea.smem %s0, 3
  %s7 = sld [smem:[%s6]]
  %s8 = scalar_lea.smem %s0, 4
  %s9 = sld [smem:[%s8]]
  %s10 = scalar_lea.smem %s0, 5
  %s11 = sld [smem:[%s10]]
  %s12 = scalar_lea.smem %s0, 6
  %s13 = sld [smem:[%s12]]
  %s14 = scalar_lea.smem %s0, 7
  %s15 = sld [smem:[%s14]]
  %s16 = scalar_lea.smem %s0, 8
  %s17 = sld [smem:[%s16]]
  %s18 = scalar_lea.smem %s0, 9
  %s19 = sld [smem:[%s18]]
  %s20 = scalar_lea.smem %s0, 10
  %s21 = sld [smem:[%s20]]
  %s22 = scalar_lea.smem %s0, 11
  %s23 = sld [smem:[%s22]]
  %s24 = scalar_lea.smem %s0, 12
  %s25 = sld [smem:[%s24]]
  %s26 = scalar_lea.smem %s0, 13
  %s27 = sld [smem:[%s26]]
  %s28 = scalar_lea.smem %s0, 14
  %s29 = sld [smem:[%s28]]
  %s30 = scalar_lea.smem %s0, 15
  %s31 = sld [smem:[%s30]]
  %s32 = scalar_lea.smem %s0, 16
  %s33 = sld [smem:[%s32]]
  %s34 = scalar_lea.smem %s0, 17
  %s35 = sld [smem:[%s34]]
  %s36 = scalar_lea.smem %s0, 18
  %s37 = sld [smem:[%s36]]
  %s38 = scalar_lea.smem %s0, 19
  %s39 = sld [smem:[%s38]]
  %s40 = scalar_lea.smem %s0, 20
  %s41 = sld [smem:[%s40]]
  %s42 = scalar_lea.smem %s0, 21
  %s43 = sld [smem:[%s42]]
  %s44 = scalar_lea.smem %s0, 22
  %s45 = sld [smem:[%s44]]
  %s46 = scalar_lea.smem %s0, 23
  %s47 = sld [smem:[%s46]]
  %s48 = scalar_lea.smem %s0, 24
  %s49 = sld [smem:[%s48]]
  %s50 = scalar_lea.smem %s0, 25
  %s51 = sld [smem:[%s50]]
  %s52 = scalar_lea.smem %s0, 26
  %s53 = sld [smem:[%s52]]
  %s54 = scalar_lea.smem %s0, 27
  %s55 = sld [smem:[%s54]]
  %s56 = scalar_lea.smem %s0, 28
  %s57 = sld [smem:[%s56]]
  %s58 = scalar_lea.smem %s0, 29
  %s59 = sld [smem:[%s58]]
  %s60 = scalar_lea.smem %s0, 30
  %s61 = sld [smem:[%s60]]
  %s62 = scalar_lea.smem %s0, 31
  %s63 = sld [smem:[%s62]]
  %s64 = scalar_lea.smem %s0, 32
  %s65 = sld [smem:[%s64]]
  %s66 = scalar_lea.smem %s0, 33
  %s67 = sld [smem:[%s66]]
  %s68 = scalar_lea.smem %s0, 34
  %s69 = sld [smem:[%s68]]
  %s70 = scalar_lea.smem %s0, 35
  %s71 = sld [smem:[%s70]]
  %s72 = sld [smem:[#allocation0]]
  $region150: #{schnet_forward.1} parent=0
    _
  %s74 = ssub.s32 1, %s72
  %s75 = scalar_select 0, %s74, %s72
  %v76 = vstv %s69
  %77 = vst [vmem:[#allocation2] sm:$0x1] %v76
  // Predicated region
  $region2: #{schnet_forward.1} parent=0 // pred_check
    _
  $region3: #{schnet_forward.1} parent=0 // pred_check_branch
    %79 = sbr.rel (0) target = $region5
  $region4: #{schnet_forward.1} parent=0 // pred_region
    _
  $region5: #{schnet_forward.1} parent=0 // pred_fallthru
    _
  // Predicated region
  $region6: #{schnet_forward.1} parent=0 // pred_check
    _
  $region7: #{schnet_forward.1} parent=0 // pred_check_branch
    %81 = sbr.rel (0) target = $region9
  $region8: #{schnet_forward.1} parent=0 // pred_region
    _
  $region9: #{schnet_forward.1} parent=0 // pred_fallthru
    _
  // Predicated region
  $region10: #{schnet_forward.1} parent=0 // pred_check
    _
  $region11: #{schnet_forward.1} parent=0 // pred_check_branch
    %83 = sbr.rel (0) target = $region13
  $region12: #{schnet_forward.1} parent=0 // pred_region
    _
  $region13: #{schnet_forward.1} parent=0 // pred_fallthru
    _
  // Predicated region
  $region14: #{schnet_forward.1} parent=0 // pred_check
    _
  $region15: #{schnet_forward.1} parent=0 // pred_check_branch
    %85 = sbr.rel (0) target = $region17
  $region16: #{schnet_forward.1} parent=0 // pred_region
    _
  $region17: #{schnet_forward.1} parent=0 // pred_fallthru
    _
  // Predicated region
  $region18: #{schnet_forward.1} parent=0 // pred_check
    _
  $region19: #{schnet_forward.1} parent=0 // pred_check_branch
    %87 = sbr.rel (0) target = $region21
  $region20: #{schnet_forward.1} parent=0 // pred_region
    _
  $region21: #{schnet_forward.1} parent=0 // pred_fallthru
    _
  // Predicated region
  $region22: #{schnet_forward.1} parent=0 // pred_check
    _
  $region23: #{schnet_forward.1} parent=0 // pred_check_branch
    %89 = sbr.rel (0) target = $region25
  $region24: #{schnet_forward.1} parent=0 // pred_region
    _
  $region25: #{schnet_forward.1} parent=0 // pred_fallthru
    _
  // Predicated region
  $region26: #{schnet_forward.1} parent=0 // pred_check
    _
  $region27: #{schnet_forward.1} parent=0 // pred_check_branch
    %91 = sbr.rel (0) target = $region29
  $region28: #{schnet_forward.1} parent=0 // pred_region
    _
  $region29: #{schnet_forward.1} parent=0 // pred_fallthru
    _
  // Predicated region
  $region30: #{schnet_forward.1} parent=0 // pred_check
    _
  $region31: #{schnet_forward.1} parent=0 // pred_check_branch
    %93 = sbr.rel (0) target = $region33
  $region32: #{schnet_forward.1} parent=0 // pred_region
    _
  $region33: #{schnet_forward.1} parent=0 // pred_fallthru
    _
  // Predicated region
  $region34: #{schnet_forward.1} parent=0 // pred_check
    _
  $region35: #{schnet_forward.1} parent=0 // pred_check_branch
    %95 = sbr.rel (0) target = $region37
  $region36: #{schnet_forward.1} parent=0 // pred_region
    _
  $region37: #{schnet_forward.1} parent=0 // pred_fallthru
    _
  // Predicated region
  $region38: #{schnet_forward.1} parent=0 // pred_check
    _
  $region39: #{schnet_forward.1} parent=0 // pred_check_branch
    %97 = sbr.rel (0) target = $region41
  $region40: #{schnet_forward.1} parent=0 // pred_region
    _
  $region41: #{schnet_forward.1} parent=0 // pred_fallthru
    _
  // Predicated region
  $region42: #{schnet_forward.1} parent=0 // pred_check
    _
  $region43: #{schnet_forward.1} parent=0 // pred_check_branch
    %99 = sbr.rel (0) target = $region45
  $region44: #{schnet_forward.1} parent=0 // pred_region
    _
  $region45: #{schnet_forward.1} parent=0 // pred_fallthru
    _
  // Predicated region
  $region46: #{schnet_forward.1} parent=0 // pred_check
    _
  $region47: #{schnet_forward.1} parent=0 // pred_check_branch
    %101 = sbr.rel (0) target = $region49
  $region48: #{schnet_forward.1} parent=0 // pred_region
    _
  $region49: #{schnet_forward.1} parent=0 // pred_fallthru
    _
  // Predicated region
  $region50: #{schnet_forward.1} parent=0 // pred_check
    _
  $region51: #{schnet_forward.1} parent=0 // pred_check_branch
    %103 = sbr.rel (0) target = $region53
  $region52: #{schnet_forward.1} parent=0 // pred_region
    _
  $region53: #{schnet_forward.1} parent=0 // pred_fallthru
    _
  // Predicated region
  $region54: #{schnet_forward.1} parent=0 // pred_check
    _
  $region55: #{schnet_forward.1} parent=0 // pred_check_branch
    %105 = sbr.rel (0) target = $region57
  $region56: #{schnet_forward.1} parent=0 // pred_region
    _
  $region57: #{schnet_forward.1} parent=0 // pred_fallthru
    _
  // Predicated region
  $region58: #{schnet_forward.1} parent=0 // pred_check
    _
  $region59: #{schnet_forward.1} parent=0 // pred_check_branch
    %107 = sbr.rel (0) target = $region61
  $region60: #{schnet_forward.1} parent=0 // pred_region
    _
  $region61: #{schnet_forward.1} parent=0 // pred_fallthru
    _
  // Predicated region
  $region62: #{schnet_forward.1} parent=0 // pred_check
    _
  $region63: #{schnet_forward.1} parent=0 // pred_check_branch
    %109 = sbr.rel (0) target = $region65
  $region64: #{schnet_forward.1} parent=0 // pred_region
    _
  $region65: #{schnet_forward.1} parent=0 // pred_fallthru
    _
  // Predicated region
  $region66: #{schnet_forward.1} parent=0 // pred_check
    _
  $region67: #{schnet_forward.1} parent=0 // pred_check_branch
    %111 = sbr.rel (0) target = $region69
  $region68: #{schnet_forward.1} parent=0 // pred_region
    _
  $region69: #{schnet_forward.1} parent=0 // pred_fallthru
    _
  // Predicated region
  $region70: #{schnet_forward.1} parent=0 // pred_check
    _
  $region71: #{schnet_forward.1} parent=0 // pred_check_branch
    %113 = sbr.rel (0) target = $region73
  $region72: #{schnet_forward.1} parent=0 // pred_region
    _
  $region73: #{schnet_forward.1} parent=0 // pred_fallthru
    _
  // Predicated region
  $region74: #{schnet_forward.1} parent=0 // pred_check
    _
  $region75: #{schnet_forward.1} parent=0 // pred_check_branch
    %115 = sbr.rel (0) target = $region77
  $region76: #{schnet_forward.1} parent=0 // pred_region
    _
  $region77: #{schnet_forward.1} parent=0 // pred_fallthru
    _
  // Predicated region
  $region78: #{schnet_forward.1} parent=0 // pred_check
    _
  $region79: #{schnet_forward.1} parent=0 // pred_check_branch
    %117 = sbr.rel (0) target = $region81
  $region80: #{schnet_forward.1} parent=0 // pred_region
    _
  $region81: #{schnet_forward.1} parent=0 // pred_fallthru
    _
  // Predicated region
  $region82: #{schnet_forward.1} parent=0 // pred_check
    _
  $region83: #{schnet_forward.1} parent=0 // pred_check_branch
    %119 = sbr.rel (0) target = $region85
  $region84: #{schnet_forward.1} parent=0 // pred_region
    _
  $region85: #{schnet_forward.1} parent=0 // pred_fallthru
    _
  // Predicated region
  $region86: #{schnet_forward.1} parent=0 // pred_check
    _
  $region87: #{schnet_forward.1} parent=0 // pred_check_branch
    %121 = sbr.rel (0) target = $region89
  $region88: #{schnet_forward.1} parent=0 // pred_region
    _
  $region89: #{schnet_forward.1} parent=0 // pred_fallthru
    _
  // Predicated region
  $region90: #{schnet_forward.1} parent=0 // pred_check
    _
  $region91: #{schnet_forward.1} parent=0 // pred_check_branch
    %123 = sbr.rel (0) target = $region93
  $region92: #{schnet_forward.1} parent=0 // pred_region
    _
  $region93: #{schnet_forward.1} parent=0 // pred_fallthru
    _
  // Predicated region
  $region94: #{schnet_forward.1} parent=0 // pred_check
    _
  $region95: #{schnet_forward.1} parent=0 // pred_check_branch
    %125 = sbr.rel (0) target = $region97
  $region96: #{schnet_forward.1} parent=0 // pred_region
    _
  $region97: #{schnet_forward.1} parent=0 // pred_fallthru
    _
  // Predicated region
  $region98: #{schnet_forward.1} parent=0 // pred_check
    _
  $region99: #{schnet_forward.1} parent=0 // pred_check_branch
    %127 = sbr.rel (0) target = $region101
  $region100: #{schnet_forward.1} parent=0 // pred_region
    _
  $region101: #{schnet_forward.1} parent=0 // pred_fallthru
    _
  // Predicated region
  $region102: #{schnet_forward.1} parent=0 // pred_check
    _
  $region103: #{schnet_forward.1} parent=0 // pred_check_branch
    %129 = sbr.rel (0) target = $region105
  $region104: #{schnet_forward.1} parent=0 // pred_region
    _
  $region105: #{schnet_forward.1} parent=0 // pred_fallthru
    _
  // Predicated region
  $region106: #{schnet_forward.1} parent=0 // pred_check
    _
  $region107: #{schnet_forward.1} parent=0 // pred_check_branch
    %131 = sbr.rel (0) target = $region109
  $region108: #{schnet_forward.1} parent=0 // pred_region
    _
  $region109: #{schnet_forward.1} parent=0 // pred_fallthru
    _
  // Predicated region
  $region110: #{schnet_forward.1} parent=0 // pred_check
    _
  $region111: #{schnet_forward.1} parent=0 // pred_check_branch
    %133 = sbr.rel (0) target = $region113
  $region112: #{schnet_forward.1} parent=0 // pred_region
    _
  $region113: #{schnet_forward.1} parent=0 // pred_fallthru
    _
  // Predicated region
  $region114: #{schnet_forward.1} parent=0 // pred_check
    _
  $region115: #{schnet_forward.1} parent=0 // pred_check_branch
    %135 = sbr.rel (0) target = $region117
  $region116: #{schnet_forward.1} parent=0 // pred_region
    _
  $region117: #{schnet_forward.1} parent=0 // pred_fallthru
    _
  // Predicated region
  $region118: #{schnet_forward.1} parent=0 // pred_check
    _
  $region119: #{schnet_forward.1} parent=0 // pred_check_branch
    %137 = sbr.rel (0) target = $region121
  $region120: #{schnet_forward.1} parent=0 // pred_region
    _
  $region121: #{schnet_forward.1} parent=0 // pred_fallthru
    _
  // Predicated region
  $region122: #{schnet_forward.1} parent=0 // pred_check
    _
  $region123: #{schnet_forward.1} parent=0 // pred_check_branch
    %139 = sbr.rel (0) target = $region125
  $region124: #{schnet_forward.1} parent=0 // pred_region
    _
  $region125: #{schnet_forward.1} parent=0 // pred_fallthru
    _
  // Predicated region
  $region126: #{schnet_forward.1} parent=0 // pred_check
    _
  $region127: #{schnet_forward.1} parent=0 // pred_check_branch
    %141 = sbr.rel (0) target = $region129
  $region128: #{schnet_forward.1} parent=0 // pred_region
    _
  $region129: #{schnet_forward.1} parent=0 // pred_fallthru
    _
  // Predicated region
  $region130: #{schnet_forward.1} parent=0 // pred_check
    _
  $region131: #{schnet_forward.1} parent=0 // pred_check_branch
    %143 = sbr.rel (0) target = $region133
  $region132: #{schnet_forward.1} parent=0 // pred_region
    _
  $region133: #{schnet_forward.1} parent=0 // pred_fallthru
    _
  // Predicated region
  $region134: #{schnet_forward.1} parent=0 // pred_check
    _
  $region135: #{schnet_forward.1} parent=0 // pred_check_branch
    %145 = sbr.rel (0) target = $region137
  $region136: #{schnet_forward.1} parent=0 // pred_region
    _
  $region137: #{schnet_forward.1} parent=0 // pred_fallthru
    _
  // Predicated region
  $region138: #{schnet_forward.1} parent=0 // pred_check
    _
  $region139: #{schnet_forward.1} parent=0 // pred_check_branch
    %147 = sbr.rel (0) target = $region141
  $region140: #{schnet_forward.1} parent=0 // pred_region
    _
  $region141: #{schnet_forward.1} parent=0 // pred_fallthru
    _
  %v148 = vld [vmem:[%s1] sm:$0xff]
  %v149 = vld [vmem:[%s1 + $0x8] sm:$0xff]
  %v150 = vld [vmem:[%s11] sm:$0xff]
  %v151 = vld [vmem:[%s13] sm:$0x1]
  %v152 = vld [vmem:[%s15] sm:$0x1]
  %v153 = vlaneseq
  %v154 = vshrl.u32 %v153, 7
  %v155 = vlaneseq
  %v156 = vand.u32 %v155, 127
  %v157 = vld [vmem:[%s3] sm:$0x1]
  %v158 = vlaneseq
  %v159 = vshrl.u32 %v158, 7
  %v160 = vsub.s32 0, %v159
  %v161 = vrot.slane %v157, %v160
  %vm162 = vcmp.eq.s32.totalorder %v154, %v161
  %v163 = vsel %vm162, 1, 0
  %v164 = vcvt.s32.f32 %v163
  %v165 = vld [vmem:[%s7] sm:$0x1]
  %v166 = vlaneseq
  %v167 = vshrl.u32 %v166, 7
  %v168 = vsub.s32 0, %v167
  %v169 = vrot.slane %v165, %v168
  %vm170 = vcmp.eq.s32.totalorder %v154, %v169
  %v171 = vsel %vm170, 1, 0
  %v172 = vcvt.s32.f32 %v171
  %v173 = vld [vmem:[%s5] sm:$0xff]
  %v174 = vld [vmem:[%s5 + $0x8] sm:$0xff]
  %175 = vset.pattern.permute.xlu0 0
  %176 = vperm.xlu0 %175, %v173
  %v177 = vpop.permute.xlu0 %176
  %178 = vset.pattern.permute.xlu0 0
  %179 = vperm.xlu0 %178, %v174
  %v180 = vpop.permute.xlu0 %179
  %vm181 = vcmp.eq.s32.totalorder %v156, %v177
  %vm182 = vcmp.eq.s32.totalorder %v156, %v180
  %v183 = vsel %vm181, 1, 0
  %v184 = vsel %vm182, 1, 0
  %v185 = vcvt.s32.f32 %v183
  %v186 = vcvt.s32.f32 %v184
  %v187 = vld [vmem:[%s9] sm:$0xff]
  %v188 = vld [vmem:[%s9 + $0x8] sm:$0xff]
  %189 = vset.pattern.permute.xlu0 0
  %190 = vperm.xlu0 %189, %v187
  %v191 = vpop.permute.xlu0 %190
  %192 = vset.pattern.permute.xlu0 0
  %193 = vperm.xlu0 %192, %v188
  %v194 = vpop.permute.xlu0 %193
  %vm195 = vcmp.eq.s32.totalorder %v156, %v191
  %vm196 = vcmp.eq.s32.totalorder %v156, %v194
  %v197 = vsel %vm195, 1, 0
  %v198 = vsel %vm196, 1, 0
  %v199 = vcvt.s32.f32 %v197
  %v200 = vcvt.s32.f32 %v198
  %v201 = vmul.f32 %v148, %v148
  %v202 = vmul.f32 %v149, %v149
  %203 = vadd.xlane.f32.xlu0 %v201
  %v204 = vpop.xlane.xlu0 %203
  %205 = vadd.xlane.f32.xlu0 %v202
  %v206 = vpop.xlane.xlu0 %205
  %v207 = vrsqrt.pop %v204
  %v208 = vmul.f32 %v204, %v207
  %vm209 = vcmp.eq.f32.partialorder %v204, inf
  %v210 = vsel %vm209, %v204, %v208
  %vm211 = vcmp.eq.f32.partialorder %v204, 0.0
  %v212 = vand.u32 %v204, 2147483648
  %v213 = vsel %vm211, %v212, %v210
  %v214 = vrsqrt.pop %v206
  %v215 = vmul.f32 %v206, %v214
  %vm216 = vcmp.eq.f32.partialorder %v206, inf
  %v217 = vsel %vm216, %v206, %v215
  %vm218 = vcmp.eq.f32.partialorder %v206, 0.0
  %v219 = vand.u32 %v206, 2147483648
  %v220 = vsel %vm218, %v219, %v217
  %v221 = vmul.f32 %v152, %v152
  %v222 = vrcp.pop %v221
  %v223 = vmul.f32 1.0, %v222
  %v225 = vlaneseq
  %v226 = vshrl.u32 %v225, 7
  %v227 = vsub.s32 0, %v226
  %v228 = vrot.slane %v151, %v227
  %v230 = vsub.f32 %v213, %v228
  %v231 = vsub.f32 %v220, %v228
  %v232 = vmul.f32 %v223, -0.5
  %v234 = vlaneseq
  %v235 = vshrl.u32 %v234, 7
  %v236 = vsub.s32 0, %v235
  %v237 = vrot.slane %v232, %v236
  %v239 = vmul.f32 %v237, %v230
  %v240 = vmul.f32 %v237, %v231
  %v241 = vmul.f32 %v239, %v230
  %v242 = vmul.f32 %v240, %v231
  %v243 = vmul.f32 %v241, 1.442695
  %v244 = vpow.pop %v243
  %v245 = vmul.f32 %v242, 1.442695
  %v246 = vpow.pop %v245
  %vm247 = vcmp.le.f32.partialorder %v213, 5.0
  %vm248 = vcmp.le.f32.partialorder %v220, 5.0
  %v249 = vsel %vm247, 1, 0
  %v250 = vsel %vm248, 1, 0
  %v251 = vcvt.s32.f32 %v249
  %v252 = vcvt.s32.f32 %v250
  %v253 = vmul.f32 %v213, 0.62831855
  %v254 = vmul.f32 %v220, 0.62831855
  %v255 = vand.u32 2147483647, %v253
  %vm256 = vcmp.le.f32.partialorder %v255, 0.7853982
  %vm257 = vcmp.lt.s32.totalorder %v253, 0
  %v258 = vand.u32 %v253, 2139095040
  %v259 = vshrl.u32 %v258, 23
  %v260 = vsub.s32 %v259, 127
  %v261 = vand.u32 2147483647, %v253
  %v262 = vand.u32 %v261, 8388607
  %v263 = vor.u32 %v262, 8388608
  %v264 = vsub.s32 0, %v263
  %v265 = vadd.s32 %v260, 1
  %vm266 = vcmp.gt.s32.totalorder %v265, 0
  %v267 = vsel %vm266, %v265, 0
  %v268 = vshrl.u32 %v267, 5
  %v269 = vand.u32 %v267, 31
  %v270 = vsub.s32 32, %v269
  %v271 = vshrl.u32 683565275, %v270
  %v272 = vshll.u32 683565275, %v269
  %v273 = vshrl.u32 2475754826, %v270
  %v274 = vor.u32 %v272, %v273
  %v275 = vshll.u32 2475754826, %v269
  %v276 = vshrl.u32 2131351028, %v270
  %v277 = vor.u32 %v275, %v276
  %v278 = vshll.u32 2131351028, %v269
  %v279 = vshrl.u32 2102212464, %v270
  %v280 = vor.u32 %v278, %v279
  %v281 = vshll.u32 2102212464, %v269
  %v282 = vshrl.u32 920167782, %v270
  %v283 = vor.u32 %v281, %v282
  %v284 = vshll.u32 920167782, %v269
  %v285 = vshrl.u32 1326507024, %v270
  %v286 = vor.u32 %v284, %v285
  %vm287 = vcmp.lt.s32.totalorder %v268, 1
  %vm288 = vcmp.lt.s32.totalorder %v268, 2
  %vm289 = vcmp.lt.s32.totalorder %v268, 3
  %vm290 = vcmp.lt.s32.totalorder %v268, 4
  %v291 = vsel %vm287, %v271, %v274
  %v292 = vsel %vm290, %v280, 2102212464
  %v293 = vsel %vm289, %v277, %v292
  %v294 = vsel %vm288, %v291, %v293
  %v295 = vsel %vm287, %v274, %v277
  %v296 = vsel %vm290, %v283, 920167782
  %v297 = vsel %vm289, %v280, %v296
  %v298 = vsel %vm288, %v295, %v297
  %v299 = vsel %vm287, %v277, %v280
  %v300 = vsel %vm290, %v286, 1326507024
  %v301 = vsel %vm289, %v283, %v300
  %v302 = vsel %vm288, %v299, %v301
  %v303 = vshll.u32 %v263, 8
  %v304 = vmul.u32.u64.compose %v303, %v302
  %v305 = vextract.low.u32 %v304
  %v306 = vextract.high.u32 %v304
  %v307 = vmul.u32.u64.compose %v303, %v298
  %v308 = vextract.low.u32 %v307
  %v309 = vextract.high.u32 %v307
  %v310 = vmul.u32 %v303, %v294
  %v311 = vadd.s32 %v306, %v308
  %vm312 = vc.u32 %v306, %v308
  %v313 = vadd.s32 %v309, 1
  %v314 = vsel %vm312, %v313, %v309
  %v315 = vadd.s32 %v310, %v314
  %v316 = vadd.s32 %v315, 536870912
  %v317 = vshrl.u32 %v316, 30
  %v318 = vshll.u32 %v317, 30
  %v319 = vsub.s32 %v315, %v318
  %vm320 = vcmp.lt.s32.totalorder %v319, 0
  %v321 = vsub.s32 0, %v319
  %v322 = vsel %vm320, %v321, %v319
  %v323 = vclz %v322
  %v324 = vsub.s32 %v323, 2
  %vm325 = vcmp.gt.s32.totalorder 0, %v324
  %v326 = vsel %vm325, 0, %v324
  %v327 = vsub.s32 32, %v326
  %v328 = vshll.u32 %v319, %v326
  %v329 = vshrl.u32 %v311, %v327
  %v330 = vor.u32 %v328, %v329
  %v331 = vsub.s32 4294967266, %v326
  %v332 = vadd.s32 %v331, 127
  %v333 = vshll.u32 %v332, 23
  %v334 = vor.u32 4788187, %v333
  %v335 = vand.u32 2147483647, %v334
  %v337 = vcvt.s32.f32 %v330
  %v338 = vmul.f32 %v337, %v335
  %v339 = vxor.u32 %v338, 2147483648
  %v340 = vsel %vm257, %v339, %v338
  %v341 = vsub.s32 4, %v317
  %v342 = vsel %vm257, %v341, %v317
  %v343 = vsel %vm256, %v253, %v340
  %v344 = vsel %vm256, 0, %v342
  %v345 = vcosq.f32.pop %v343
  %v346 = vsinq.f32.pop %v343
  %vm347 = vweird.f32 %v253
  %v348 = vand.u32 %v344, 3
  %vm349 = vcmp.lt.s32.totalorder %v348, 2
  %vm350 = vcmp.eq.s32.totalorder %v348, 0
  %v351 = vxor.u32 %v346, 2147483648
  %v352 = vsel %vm350, %v345, %v351
  %vm353 = vcmp.eq.s32.totalorder %v348, 2
  %v354 = vxor.u32 %v345, 2147483648
  %v355 = vsel %vm353, %v354, %v346
  %v356 = vsel %vm349, %v352, %v355
  %v357 = vsel %vm347, nan, %v356
  %v358 = vand.u32 2147483647, %v254
  %vm359 = vcmp.le.f32.partialorder %v358, 0.7853982
  %vm360 = vcmp.lt.s32.totalorder %v254, 0
  %v361 = vand.u32 %v254, 2139095040
  %v362 = vshrl.u32 %v361, 23
  %v363 = vsub.s32 %v362, 127
  %v364 = vand.u32 2147483647, %v254
  %v365 = vand.u32 %v364, 8388607
  %v366 = vor.u32 %v365, 8388608
  %v367 = vsub.s32 0, %v366
  %v368 = vadd.s32 %v363, 1
  %vm369 = vcmp.gt.s32.totalorder %v368, 0
  %v370 = vsel %vm369, %v368, 0
  %v371 = vshrl.u32 %v370, 5
  %v372 = vand.u32 %v370, 31
  %v373 = vsub.s32 32, %v372
  %v374 = vshrl.u32 683565275, %v373
  %v375 = vshll.u32 683565275, %v372
  %v376 = vshrl.u32 2475754826, %v373
  %v377 = vor.u32 %v375, %v376
  %v378 = vshll.u32 2475754826, %v372
  %v379 = vshrl.u32 2131351028, %v373
  %v380 = vor.u32 %v378, %v379
  %v381 = vshll.u32 2131351028, %v372
  %v382 = vshrl.u32 2102212464, %v373
  %v383 = vor.u32 %v381, %v382
  %v384 = vshll.u32 2102212464, %v372
  %v385 = vshrl.u32 920167782, %v373
  %v386 = vor.u32 %v384, %v385
  %v387 = vshll.u32 920167782, %v372
  %v388 = vshrl.u32 1326507024, %v373
  %v389 = vor.u32 %v387, %v388
  %vm390 = vcmp.lt.s32.totalorder %v371, 1
  %vm391 = vcmp.lt.s32.totalorder %v371, 2
  %vm392 = vcmp.lt.s32.totalorder %v371, 3
  %vm393 = vcmp.lt.s32.totalorder %v371, 4
  %v394 = vsel %vm390, %v374, %v377
  %v395 = vsel %vm393, %v383, 2102212464
  %v396 = vsel %vm392, %v380, %v395
  %v397 = vsel %vm391, %v394, %v396
  %v398 = vsel %vm390, %v377, %v380
  %v399 = vsel %vm393, %v386, 920167782
  %v400 = vsel %vm392, %v383, %v399
  %v401 = vsel %vm391, %v398, %v400
  %v402 = vsel %vm390, %v380, %v383
  %v403 = vsel %vm393, %v389, 1326507024
  %v404 = vsel %vm392, %v386, %v403
  %v405 = vsel %vm391, %v402, %v404
  %v406 = vshll.u32 %v366, 8
  %v407 = vmul.u32.u64.compose %v406, %v405
  %v408 = vextract.low.u32 %v407
  %v409 = vextract.high.u32 %v407
  %v410 = vmul.u32.u64.compose %v406, %v401
  %v411 = vextract.low.u32 %v410
  %v412 = vextract.high.u32 %v410
  %v413 = vmul.u32 %v406, %v397
  %v414 = vadd.s32 %v409, %v411
  %vm415 = vc.u32 %v409, %v411
  %v416 = vadd.s32 %v412, 1
  %v417 = vsel %vm415, %v416, %v412
  %v418 = vadd.s32 %v413, %v417
  %v419 = vadd.s32 %v418, 536870912
  %v420 = vshrl.u32 %v419, 30
  %v421 = vshll.u32 %v420, 30
  %v422 = vsub.s32 %v418, %v421
  %vm423 = vcmp.lt.s32.totalorder %v422, 0
  %v424 = vsub.s32 0, %v422
  %v425 = vsel %vm423, %v424, %v422
  %v426 = vclz %v425
  %v427 = vsub.s32 %v426, 2
  %vm428 = vcmp.gt.s32.totalorder 0, %v427
  %v429 = vsel %vm428, 0, %v427
  %v430 = vsub.s32 32, %v429
  %v431 = vshll.u32 %v422, %v429
  %v432 = vshrl.u32 %v414, %v430
  %v433 = vor.u32 %v431, %v432
  %v434 = vsub.s32 4294967266, %v429
  %v435 = vadd.s32 %v434, 127
  %v436 = vshll.u32 %v435, 23
  %v437 = vor.u32 4788187, %v436
  %v438 = vand.u32 2147483647, %v437
  %v440 = vcvt.s32.f32 %v433
  %v441 = vmul.f32 %v440, %v438
  %v442 = vxor.u32 %v441, 2147483648
  %v443 = vsel %vm360, %v442, %v441
  %v444 = vsub.s32 4, %v420
  %v445 = vsel %vm360, %v444, %v420
  %v446 = vsel %vm359, %v254, %v443
  %v447 = vsel %vm359, 0, %v445
  %v448 = vcosq.f32.pop %v446
  %v449 = vsinq.f32.pop %v446
  %vm450 = vweird.f32 %v254
  %v451 = vand.u32 %v447, 3
  %vm452 = vcmp.lt.s32.totalorder %v451, 2
  %vm453 = vcmp.eq.s32.totalorder %v451, 0
  %v454 = vxor.u32 %v449, 2147483648
  %v455 = vsel %vm453, %v448, %v454
  %vm456 = vcmp.eq.s32.totalorder %v451, 2
  %v457 = vxor.u32 %v448, 2147483648
  %v458 = vsel %vm456, %v457, %v449
  %v459 = vsel %vm452, %v455, %v458
  %v460 = vsel %vm450, nan, %v459
  %v461 = vadd.f32 %v357, 1.0
  %v462 = vadd.f32 %v460, 1.0
  %v463 = vmul.f32 %v461, 0.5
  %v464 = vmul.f32 %v462, 0.5
  %v465 = vmul.f32 %v463, %v251
  %v466 = vmul.f32 %v464, %v252
  %v467 = vld [vmem:[%s17] sm:$0xff]
  %v468 = vld [vmem:[%s17 + $0x8] sm:$0xff]
  %v469 = vld [vmem:[%s17 + $0x10] sm:$0xff]
  %v470 = vld [vmem:[%s17 + $0x18] sm:$0xff]
  %v471 = vld [vmem:[%s17 + $0x20] sm:$0xff]
  %v472 = vld [vmem:[%s17 + $0x28] sm:$0xff]
  %v473 = vld [vmem:[%s17 + $0x30] sm:$0xff]
  %v474 = vld [vmem:[%s17 + $0x38] sm:$0xff]
  %v475 = vld [vmem:[%s17 + $0x40] sm:$0xff]
  %v476 = vld [vmem:[%s17 + $0x48] sm:$0xff]
  %v477 = vld [vmem:[%s17 + $0x50] sm:$0xff]
  %v478 = vld [vmem:[%s17 + $0x58] sm:$0xff]
  %v479 = vld [vmem:[%s17 + $0x60] sm:$0xff]
  %v480 = vld [vmem:[%s17 + $0x68] sm:$0xff]
  %v481 = vld [vmem:[%s17 + $0x70] sm:$0xff]
  %v482 = vld [vmem:[%s17 + $0x78] sm:$0xff]
  %v483 = vld [vmem:[%s19] sm:$0x1]
  %v485 = vlaneseq
  %v486 = vshrl.u32 %v485, 7
  %v487 = vsub.s32 0, %v486
  %v488 = vrot.slane %v483, %v487
  %490 = vmatprep.subr.mxu0 0.0
  %491 = vmatpush1.msra.mxu0 %v467
  %492 = vmatprep.subr.mxu0 0.0
  %493 = vmatpush1.msra.mxu0 %v468
  %494 = vmatprep.subr.mxu0 0.0
  %495 = vmatpush1.msra.mxu0 %v469
  %496 = vmatprep.subr.mxu0 0.0
  %497 = vmatpush1.msra.mxu0 %v470
  %498 = vmatprep.subr.mxu0 0.0
  %499 = vmatpush1.msra.mxu0 %v471
  %500 = vmatprep.subr.mxu0 0.0
  %501 = vmatpush1.msra.mxu0 %v472
  %502 = vmatprep.subr.mxu0 0.0
  %503 = vmatpush1.msra.mxu0 %v473
  %504 = vmatprep.subr.mxu0 0.0
  %505 = vmatpush1.msra.mxu0 %v474
  %506 = vmatprep.subr.mxu0 0.0
  %507 = vmatpush1.msra.mxu0 %v475
  %508 = vmatprep.subr.mxu0 0.0
  %509 = vmatpush1.msra.mxu0 %v476
  %510 = vmatprep.subr.mxu0 0.0
  %511 = vmatpush1.msra.mxu0 %v477
  %512 = vmatprep.subr.mxu0 0.0
  %513 = vmatpush1.msra.mxu0 %v478
  %514 = vmatprep.subr.mxu0 0.0
  %515 = vmatpush1.msra.mxu0 %v479
  %516 = vmatprep.subr.mxu0 0.0
  %517 = vmatpush1.msra.mxu0 %v480
  %518 = vmatprep.subr.mxu0 0.0
  %519 = vmatpush1.msra.mxu0 %v481
  %520 = vmatprep.subr.mxu0 0.0
  %521 = vmatpush1.msra.mxu0 %v482
  %522 = vmatprep.subr.mxu0 0.0
  %523 = vmatpush1.msra.mxu0 0.0
  %524 = vmatprep.subr.mxu0 0.0
  %525 = vmatpush1.msra.mxu0 0.0
  %526 = vmatprep.subr.mxu0 0.0
  %527 = vmatpush1.msra.mxu0 0.0
  %528 = vmatprep.subr.mxu0 0.0
  %529 = vmatpush1.msra.mxu0 0.0
  %530 = vmatprep.subr.mxu0 0.0
  %531 = vmatpush1.msra.mxu0 0.0
  %532 = vmatprep.subr.mxu0 0.0
  %533 = vmatpush1.msra.mxu0 0.0
  %534 = vmatprep.subr.mxu0 0.0
  %535 = vmatpush1.msra.mxu0 0.0
  %536 = vmatprep.subr.mxu0 0.0
  %537 = vmatpush1.msra.mxu0 0.0
  %538 = vmatprep.subr.mxu0 0.0
  %539 = vmatpush1.msra.mxu0 0.0
  %540 = vmatprep.subr.mxu0 0.0
  %541 = vmatpush1.msra.mxu0 0.0
  %542 = vmatprep.subr.mxu0 0.0
  %543 = vmatpush1.msra.mxu0 0.0
  %544 = vmatprep.subr.mxu0 0.0
  %545 = vmatpush1.msra.mxu0 0.0
  %546 = vmatprep.subr.mxu0 0.0
  %547 = vmatpush1.msra.mxu0 0.0
  %548 = vmatprep.subr.mxu0 0.0
  %549 = vmatpush1.msra.mxu0 0.0
  %550 = vmatprep.subr.mxu0 0.0
  %551 = vmatpush1.msra.mxu0 0.0
  %552 = vmatprep.subr.mxu0 0.0
  %553 = vmatpush1.msra.mxu0 0.0
  %554 = vmatprep.mubr.f32.mxu0 0.0
  %555 = vmatmul.mubr.f32.gmra.mrb[0].mxu0 %v244
  %v556 = vpop.f32.mrb[0].mxu0
  %v557 = vadd.f32 %v488, %v556
  %v558 = vpop.f32.mrb[0].mxu0
  %559 = vmatprep.mubr.f32.mxu0 0.0
  %560 = vmatmul.mubr.f32.gmra.mrb[0].mxu0 %v246
  %v561 = vpop.f32.mrb[0].mxu0
  %v562 = vadd.f32 %v488, %v561
  %v563 = vpop.f32.mrb[0].mxu0
  %564 = vdwg.mxu0
  %v565 = vmax.f32 %v557, 0.0
  %v566 = vmax.f32 %v562, 0.0
  %v567 = vand.u32 2147483647, %v557
  %v568 = vand.u32 2147483647, %v562
  %v569 = vsub.f32 0.0, %v567
  %v570 = vsub.f32 0.0, %v568
  %v571 = vmul.f32 %v569, 1.442695
  %v572 = vpow.pop %v571
  %v573 = vmul.f32 %v570, 1.442695
  %v574 = vpow.pop %v573
  %v575 = vadd.f32 %v572, 1.0
  %v576 = vadd.f32 %v574, 1.0
  %v577 = vlog2.pop %v575
  %v578 = vmul.f32 %v577, 0.6931472
  %v579 = vlog2.pop %v576
  %v580 = vmul.f32 %v579, 0.6931472
  %v581 = vadd.f32 %v565, %v578
  %v582 = vadd.f32 %v566, %v580
  %v583 = vsub.f32 %v581, 0.6931472
  %v584 = vsub.f32 %v582, 0.6931472
  %v585 = vld [vmem:[%s21] sm:$0xff]
  %v586 = vld [vmem:[%s21 + $0x8] sm:$0xff]
  %v587 = vld [vmem:[%s21 + $0x10] sm:$0xff]
  %v588 = vld [vmem:[%s21 + $0x18] sm:$0xff]
  %v589 = vld [vmem:[%s21 + $0x20] sm:$0xff]
  %v590 = vld [vmem:[%s21 + $0x28] sm:$0xff]
  %v591 = vld [vmem:[%s21 + $0x30] sm:$0xff]
  %v592 = vld [vmem:[%s21 + $0x38] sm:$0xff]
  %v593 = vld [vmem:[%s21 + $0x40] sm:$0xff]
  %v594 = vld [vmem:[%s21 + $0x48] sm:$0xff]
  %v595 = vld [vmem:[%s21 + $0x50] sm:$0xff]
  %v596 = vld [vmem:[%s21 + $0x58] sm:$0xff]
  %v597 = vld [vmem:[%s21 + $0x60] sm:$0xff]
  %v598 = vld [vmem:[%s21 + $0x68] sm:$0xff]
  %v599 = vld [vmem:[%s21 + $0x70] sm:$0xff]
  %v600 = vld [vmem:[%s21 + $0x78] sm:$0xff]
  %v601 = vld [vmem:[%s23] sm:$0x1]
  %v603 = vlaneseq
  %v604 = vshrl.u32 %v603, 7
  %v605 = vsub.s32 0, %v604
  %v606 = vrot.slane %v601, %v605
  %608 = vmatprep.subr.mxu0 0.0
  %609 = vmatpush1.msra.mxu0 %v585
  %610 = vmatprep.subr.mxu0 0.0
  %611 = vmatpush1.msra.mxu0 %v586
  %612 = vmatprep.subr.mxu0 0.0
  %613 = vmatpush1.msra.mxu0 %v587
  %614 = vmatprep.subr.mxu0 0.0
  %615 = vmatpush1.msra.mxu0 %v588
  %616 = vmatprep.subr.mxu0 0.0
  %617 = vmatpush1.msra.mxu0 %v589
  %618 = vmatprep.subr.mxu0 0.0
  %619 = vmatpush1.msra.mxu0 %v590
  %620 = vmatprep.subr.mxu0 0.0
  %621 = vmatpush1.msra.mxu0 %v591
  %622 = vmatprep.subr.mxu0 0.0
  %623 = vmatpush1.msra.mxu0 %v592
  %624 = vmatprep.subr.mxu0 0.0
  %625 = vmatpush1.msra.mxu0 %v593
  %626 = vmatprep.subr.mxu0 0.0
  %627 = vmatpush1.msra.mxu0 %v594
  %628 = vmatprep.subr.mxu0 0.0
  %629 = vmatpush1.msra.mxu0 %v595
  %630 = vmatprep.subr.mxu0 0.0
  %631 = vmatpush1.msra.mxu0 %v596
  %632 = vmatprep.subr.mxu0 0.0
  %633 = vmatpush1.msra.mxu0 %v597
  %634 = vmatprep.subr.mxu0 0.0
  %635 = vmatpush1.msra.mxu0 %v598
  %636 = vmatprep.subr.mxu0 0.0
  %637 = vmatpush1.msra.mxu0 %v599
  %638 = vmatprep.subr.mxu0 0.0
  %639 = vmatpush1.msra.mxu0 %v600
  %640 = vmatprep.subr.mxu0 0.0
  %641 = vmatpush1.msra.mxu0 0.0
  %642 = vmatprep.subr.mxu0 0.0
  %643 = vmatpush1.msra.mxu0 0.0
  %644 = vmatprep.subr.mxu0 0.0
  %645 = vmatpush1.msra.mxu0 0.0
  %646 = vmatprep.subr.mxu0 0.0
  %647 = vmatpush1.msra.mxu0 0.0
  %648 = vmatprep.subr.mxu0 0.0
  %649 = vmatpush1.msra.mxu0 0.0
  %650 = vmatprep.subr.mxu0 0.0
  %651 = vmatpush1.msra.mxu0 0.0
  %652 = vmatprep.subr.mxu0 0.0
  %653 = vmatpush1.msra.mxu0 0.0
  %654 = vmatprep.subr.mxu0 0.0
  %655 = vmatpush1.msra.mxu0 0.0
  %656 = vmatprep.subr.mxu0 0.0
  %657 = vmatpush1.msra.mxu0 0.0
  %658 = vmatprep.subr.mxu0 0.0
  %659 = vmatpush1.msra.mxu0 0.0
  %660 = vmatprep.subr.mxu0 0.0
  %661 = vmatpush1.msra.mxu0 0.0
  %662 = vmatprep.subr.mxu0 0.0
  %663 = vmatpush1.msra.mxu0 0.0
  %664 = vmatprep.subr.mxu0 0.0
  %665 = vmatpush1.msra.mxu0 0.0
  %666 = vmatprep.subr.mxu0 0.0
  %667 = vmatpush1.msra.mxu0 0.0
  %668 = vmatprep.subr.mxu0 0.0
  %669 = vmatpush1.msra.mxu0 0.0
  %670 = vmatprep.subr.mxu0 0.0
  %671 = vmatpush1.msra.mxu0 0.0
  %672 = vmatprep.mubr.f32.mxu0 0.0
  %673 = vmatmul.mubr.f32.gmra.mrb[0].mxu0 %v583
  %v674 = vpop.f32.mrb[0].mxu0
  %v675 = vadd.f32 %v606, %v674
  %v676 = vpop.f32.mrb[0].mxu0
  %677 = vmatprep.mubr.f32.mxu0 0.0
  %678 = vmatmul.mubr.f32.gmra.mrb[0].mxu0 %v584
  %v679 = vpop.f32.mrb[0].mxu0
  %v680 = vadd.f32 %v606, %v679
  %v681 = vpop.f32.mrb[0].mxu0
  %682 = vdwg.mxu0
  %v683 = vmul.f32 %v675, %v465
  %v684 = vmul.f32 %v680, %v466
  %v685 = vld [vmem:[%s25] sm:$0xff]
  %v686 = vld [vmem:[%s25 + $0x8] sm:$0xff]
  %v687 = vld [vmem:[%s25 + $0x10] sm:$0xff]
  %v688 = vld [vmem:[%s25 + $0x18] sm:$0xff]
  %v689 = vld [vmem:[%s25 + $0x20] sm:$0xff]
  %v690 = vld [vmem:[%s25 + $0x28] sm:$0xff]
  %v691 = vld [vmem:[%s25 + $0x30] sm:$0xff]
  %v692 = vld [vmem:[%s25 + $0x38] sm:$0xff]
  %v693 = vld [vmem:[%s25 + $0x40] sm:$0xff]
  %v694 = vld [vmem:[%s25 + $0x48] sm:$0xff]
  %v695 = vld [vmem:[%s25 + $0x50] sm:$0xff]
  %v696 = vld [vmem:[%s25 + $0x58] sm:$0xff]
  %v697 = vld [vmem:[%s25 + $0x60] sm:$0xff]
  %v698 = vld [vmem:[%s25 + $0x68] sm:$0xff]
  %v699 = vld [vmem:[%s25 + $0x70] sm:$0xff]
  %v700 = vld [vmem:[%s25 + $0x78] sm:$0xff]
  %701 = vmatprep.subr.mxu0 0.0
  %702 = vmatpush1.msra.mxu0 %v685
  %703 = vmatprep.subr.mxu0 0.0
  %704 = vmatpush1.msra.mxu0 %v686
  %705 = vmatprep.subr.mxu0 0.0
  %706 = vmatpush1.msra.mxu0 %v687
  %707 = vmatprep.subr.mxu0 0.0
  %708 = vmatpush1.msra.mxu0 %v688
  %709 = vmatprep.subr.mxu0 0.0
  %710 = vmatpush1.msra.mxu0 %v689
  %711 = vmatprep.subr.mxu0 0.0
  %712 = vmatpush1.msra.mxu0 %v690
  %713 = vmatprep.subr.mxu0 0.0
  %714 = vmatpush1.msra.mxu0 %v691
  %715 = vmatprep.subr.mxu0 0.0
  %716 = vmatpush1.msra.mxu0 %v692
  %717 = vmatprep.subr.mxu0 0.0
  %718 = vmatpush1.msra.mxu0 %v693
  %719 = vmatprep.subr.mxu0 0.0
  %720 = vmatpush1.msra.mxu0 %v694
  %721 = vmatprep.subr.mxu0 0.0
  %722 = vmatpush1.msra.mxu0 %v695
  %723 = vmatprep.subr.mxu0 0.0
  %724 = vmatpush1.msra.mxu0 %v696
  %725 = vmatprep.subr.mxu0 0.0
  %726 = vmatpush1.msra.mxu0 %v697
  %727 = vmatprep.subr.mxu0 0.0
  %728 = vmatpush1.msra.mxu0 %v698
  %729 = vmatprep.subr.mxu0 0.0
  %730 = vmatpush1.msra.mxu0 %v699
  %731 = vmatprep.subr.mxu0 0.0
  %732 = vmatpush1.msra.mxu0 %v700
  %733 = vmatprep.subr.mxu0 0.0
  %734 = vmatpush1.msra.mxu0 0.0
  %735 = vmatprep.subr.mxu0 0.0
  %736 = vmatpush1.msra.mxu0 0.0
  %737 = vmatprep.subr.mxu0 0.0
  %738 = vmatpush1.msra.mxu0 0.0
  %739 = vmatprep.subr.mxu0 0.0
  %740 = vmatpush1.msra.mxu0 0.0
  %741 = vmatprep.subr.mxu0 0.0
  %742 = vmatpush1.msra.mxu0 0.0
  %743 = vmatprep.subr.mxu0 0.0
  %744 = vmatpush1.msra.mxu0 0.0
  %745 = vmatprep.subr.mxu0 0.0
  %746 = vmatpush1.msra.mxu0 0.0
  %747 = vmatprep.subr.mxu0 0.0
  %748 = vmatpush1.msra.mxu0 0.0
  %749 = vmatprep.subr.mxu0 0.0
  %750 = vmatpush1.msra.mxu0 0.0
  %751 = vmatprep.subr.mxu0 0.0
  %752 = vmatpush1.msra.mxu0 0.0
  %753 = vmatprep.subr.mxu0 0.0
  %754 = vmatpush1.msra.mxu0 0.0
  %755 = vmatprep.subr.mxu0 0.0
  %756 = vmatpush1.msra.mxu0 0.0
  %757 = vmatprep.subr.mxu0 0.0
  %758 = vmatpush1.msra.mxu0 0.0
  %759 = vmatprep.subr.mxu0 0.0
  %760 = vmatpush1.msra.mxu0 0.0
  %761 = vmatprep.subr.mxu0 0.0
  %762 = vmatpush1.msra.mxu0 0.0
  %763 = vmatprep.subr.mxu0 0.0
  %764 = vmatpush1.msra.mxu0 0.0
  %765 = vmatprep.mubr.f32.mxu0 0.0
  %766 = vmatmul.mubr.f32.gmra.mrb[0].mxu0 %v150
  %v767 = vpop.f32.mrb[0].mxu0
  %v768 = vadd.f32 0.0, %v767
  %v769 = vpop.f32.mrb[0].mxu0
  %770 = vdwg.mxu0
  %vm771 = vcmask 64512
  %v773 = vsel %vm771, %v199, 0
  %v776 = vsel %vm771, %v200, 0
  %778 = vmatprep.subr.mxu0 0.0
  %779 = vmatpush1.msra.mxu0 %v768
  %780 = vmatprep.subr.mxu0 0.0
  %781 = vmatpush1.msra.mxu0 0.0
  %782 = vmatprep.subr.mxu0 0.0
  %783 = vmatpush1.msra.mxu0 0.0
  %784 = vmatprep.subr.mxu0 0.0
  %785 = vmatpush1.msra.mxu0 0.0
  %786 = vmatprep.subr.mxu0 0.0
  %787 = vmatpush1.msra.mxu0 0.0
  %788 = vmatprep.subr.mxu0 0.0
  %789 = vmatpush1.msra.mxu0 0.0
  %790 = vmatprep.subr.mxu0 0.0
  %791 = vmatpush1.msra.mxu0 0.0
  %792 = vmatprep.subr.mxu0 0.0
  %793 = vmatpush1.msra.mxu0 0.0
  %794 = vmatprep.subr.mxu0 0.0
  %795 = vmatpush1.msra.mxu0 0.0
  %796 = vmatprep.subr.mxu0 0.0
  %797 = vmatpush1.msra.mxu0 0.0
  %798 = vmatprep.subr.mxu0 0.0
  %799 = vmatpush1.msra.mxu0 0.0
  %800 = vmatprep.subr.mxu0 0.0
  %801 = vmatpush1.msra.mxu0 0.0
  %802 = vmatprep.subr.mxu0 0.0
  %803 = vmatpush1.msra.mxu0 0.0
  %804 = vmatprep.subr.mxu0 0.0
  %805 = vmatpush1.msra.mxu0 0.0
  %806 = vmatprep.subr.mxu0 0.0
  %807 = vmatpush1.msra.mxu0 0.0
  %808 = vmatprep.subr.mxu0 0.0
  %809 = vmatpush1.msra.mxu0 0.0
  %810 = vmatprep.subr.mxu0 0.0
  %811 = vmatpush1.msra.mxu0 0.0
  %812 = vmatprep.subr.mxu0 0.0
  %813 = vmatpush1.msra.mxu0 0.0
  %814 = vmatprep.subr.mxu0 0.0
  %815 = vmatpush1.msra.mxu0 0.0
  %816 = vmatprep.subr.mxu0 0.0
  %817 = vmatpush1.msra.mxu0 0.0
  %818 = vmatprep.subr.mxu0 0.0
  %819 = vmatpush1.msra.mxu0 0.0
  %820 = vmatprep.subr.mxu0 0.0
  %821 = vmatpush1.msra.mxu0 0.0
  %822 = vmatprep.subr.mxu0 0.0
  %823 = vmatpush1.msra.mxu0 0.0
  %824 = vmatprep.subr.mxu0 0.0
  %825 = vmatpush1.msra.mxu0 0.0
  %826 = vmatprep.subr.mxu0 0.0
  %827 = vmatpush1.msra.mxu0 0.0
  %828 = vmatprep.subr.mxu0 0.0
  %829 = vmatpush1.msra.mxu0 0.0
  %830 = vmatprep.subr.mxu0 0.0
  %831 = vmatpush1.msra.mxu0 0.0
  %832 = vmatprep.subr.mxu0 0.0
  %833 = vmatpush1.msra.mxu0 0.0
  %834 = vmatprep.subr.mxu0 0.0
  %835 = vmatpush1.msra.mxu0 0.0
  %836 = vmatprep.subr.mxu0 0.0
  %837 = vmatpush1.msra.mxu0 0.0
  %838 = vmatprep.subr.mxu0 0.0
  %839 = vmatpush1.msra.mxu0 0.0
  %840 = vmatprep.subr.mxu0 0.0
  %841 = vmatpush1.msra.mxu0 0.0
  %842 = vmatprep.mubr.f32.mxu0 0.0
  %843 = vmatmul.mubr.f32.gmra.mrb[0].mxu0 %v773
  %v844 = vpop.f32.mrb[0].mxu0
  %v845 = vadd.f32 0.0, %v844
  %v846 = vpop.f32.mrb[0].mxu0
  %847 = vmatprep.mubr.f32.mxu0 0.0
  %848 = vmatmul.mubr.f32.gmra.mrb[0].mxu0 %v776
  %v849 = vpop.f32.mrb[0].mxu0
  %v850 = vadd.f32 0.0, %v849
  %v851 = vpop.f32.mrb[0].mxu0
  %852 = vdwg.mxu0
  %v853 = vmul.f32 %v683, %v845
  %v854 = vmul.f32 %v684, %v850
  %vm855 = vcmask 130048
  %v857 = vsel %vm855, %v164, 0
  %859 = vmatprep.subr.mxu0 0.0
  %860 = vmatpush1.msra.mxu0 %v853
  %861 = vmatprep.subr.mxu0 0.0
  %862 = vmatpush1.msra.mxu0 %v854
  %863 = vmatprep.subr.mxu0 0.0
  %864 = vmatpush1.msra.mxu0 0.0
  %865 = vmatprep.subr.mxu0 0.0
  %866 = vmatpush1.msra.mxu0 0.0
  %867 = vmatprep.subr.mxu0 0.0
  %868 = vmatpush1.msra.mxu0 0.0
  %869 = vmatprep.subr.mxu0 0.0
  %870 = vmatpush1.msra.mxu0 0.0
  %871 = vmatprep.subr.mxu0 0.0
  %872 = vmatpush1.msra.mxu0 0.0
  %873 = vmatprep.subr.mxu0 0.0
  %874 = vmatpush1.msra.mxu0 0.0
  %875 = vmatprep.subr.mxu0 0.0
  %876 = vmatpush1.msra.mxu0 0.0
  %877 = vmatprep.subr.mxu0 0.0
  %878 = vmatpush1.msra.mxu0 0.0
  %879 = vmatprep.subr.mxu0 0.0
  %880 = vmatpush1.msra.mxu0 0.0
  %881 = vmatprep.subr.mxu0 0.0
  %882 = vmatpush1.msra.mxu0 0.0
  %883 = vmatprep.subr.mxu0 0.0
  %884 = vmatpush1.msra.mxu0 0.0
  %885 = vmatprep.subr.mxu0 0.0
  %886 = vmatpush1.msra.mxu0 0.0
  %887 = vmatprep.subr.mxu0 0.0
  %888 = vmatpush1.msra.mxu0 0.0
  %889 = vmatprep.subr.mxu0 0.0
  %890 = vmatpush1.msra.mxu0 0.0
  %891 = vmatprep.subr.mxu0 0.0
  %892 = vmatpush1.msra.mxu0 0.0
  %893 = vmatprep.subr.mxu0 0.0
  %894 = vmatpush1.msra.mxu0 0.0
  %895 = vmatprep.subr.mxu0 0.0
  %896 = vmatpush1.msra.mxu0 0.0
  %897 = vmatprep.subr.mxu0 0.0
  %898 = vmatpush1.msra.mxu0 0.0
  %899 = vmatprep.subr.mxu0 0.0
  %900 = vmatpush1.msra.mxu0 0.0
  %901 = vmatprep.subr.mxu0 0.0
  %902 = vmatpush1.msra.mxu0 0.0
  %903 = vmatprep.subr.mxu0 0.0
  %904 = vmatpush1.msra.mxu0 0.0
  %905 = vmatprep.subr.mxu0 0.0
  %906 = vmatpush1.msra.mxu0 0.0
  %907 = vmatprep.subr.mxu0 0.0
  %908 = vmatpush1.msra.mxu0 0.0
  %909 = vmatprep.subr.mxu0 0.0
  %910 = vmatpush1.msra.mxu0 0.0
  %911 = vmatprep.subr.mxu0 0.0
  %912 = vmatpush1.msra.mxu0 0.0
  %913 = vmatprep.subr.mxu0 0.0
  %914 = vmatpush1.msra.mxu0 0.0
  %915 = vmatprep.subr.mxu0 0.0
  %916 = vmatpush1.msra.mxu0 0.0
  %917 = vmatprep.subr.mxu0 0.0
  %918 = vmatpush1.msra.mxu0 0.0
  %919 = vmatprep.subr.mxu0 0.0
  %920 = vmatpush1.msra.mxu0 0.0
  %921 = vmatprep.subr.mxu0 0.0
  %922 = vmatpush1.msra.mxu0 0.0
  %923 = vmatprep.mubr.f32.mxu0 0.0
  %924 = vmatmul.mubr.f32.gmra.mrb[0].mxu0 %v857
  %v925 = vpop.f32.mrb[0].mxu0
  %v926 = vadd.f32 0.0, %v925
  %v927 = vpop.f32.mrb[0].mxu0
  %928 = vdwg.mxu0
  %v929 = vld [vmem:[%s27] sm:$0xff]
  %v930 = vld [vmem:[%s27 + $0x8] sm:$0xff]
  %v931 = vld [vmem:[%s27 + $0x10] sm:$0xff]
  %v932 = vld [vmem:[%s27 + $0x18] sm:$0xff]
  %v933 = vld [vmem:[%s27 + $0x20] sm:$0xff]
  %v934 = vld [vmem:[%s27 + $0x28] sm:$0xff]
  %v935 = vld [vmem:[%s27 + $0x30] sm:$0xff]
  %v936 = vld [vmem:[%s27 + $0x38] sm:$0xff]
  %v937 = vld [vmem:[%s27 + $0x40] sm:$0xff]
  %v938 = vld [vmem:[%s27 + $0x48] sm:$0xff]
  %v939 = vld [vmem:[%s27 + $0x50] sm:$0xff]
  %v940 = vld [vmem:[%s27 + $0x58] sm:$0xff]
  %v941 = vld [vmem:[%s27 + $0x60] sm:$0xff]
  %v942 = vld [vmem:[%s27 + $0x68] sm:$0xff]
  %v943 = vld [vmem:[%s27 + $0x70] sm:$0xff]
  %v944 = vld [vmem:[%s27 + $0x78] sm:$0xff]
  %v945 = vld [vmem:[%s29] sm:$0x1]
  %v947 = vlaneseq
  %v948 = vshrl.u32 %v947, 7
  %v949 = vsub.s32 0, %v948
  %v950 = vrot.slane %v945, %v949
  %952 = vmatprep.subr.mxu0 0.0
  %953 = vmatpush1.msra.mxu0 %v929
  %954 = vmatprep.subr.mxu0 0.0
  %955 = vmatpush1.msra.mxu0 %v930
  %956 = vmatprep.subr.mxu0 0.0
  %957 = vmatpush1.msra.mxu0 %v931
  %958 = vmatprep.subr.mxu0 0.0
  %959 = vmatpush1.msra.mxu0 %v932
  %960 = vmatprep.subr.mxu0 0.0
  %961 = vmatpush1.msra.mxu0 %v933
  %962 = vmatprep.subr.mxu0 0.0
  %963 = vmatpush1.msra.mxu0 %v934
  %964 = vmatprep.subr.mxu0 0.0
  %965 = vmatpush1.msra.mxu0 %v935
  %966 = vmatprep.subr.mxu0 0.0
  %967 = vmatpush1.msra.mxu0 %v936
  %968 = vmatprep.subr.mxu0 0.0
  %969 = vmatpush1.msra.mxu0 %v937
  %970 = vmatprep.subr.mxu0 0.0
  %971 = vmatpush1.msra.mxu0 %v938
  %972 = vmatprep.subr.mxu0 0.0
  %973 = vmatpush1.msra.mxu0 %v939
  %974 = vmatprep.subr.mxu0 0.0
  %975 = vmatpush1.msra.mxu0 %v940
  %976 = vmatprep.subr.mxu0 0.0
  %977 = vmatpush1.msra.mxu0 %v941
  %978 = vmatprep.subr.mxu0 0.0
  %979 = vmatpush1.msra.mxu0 %v942
  %980 = vmatprep.subr.mxu0 0.0
  %981 = vmatpush1.msra.mxu0 %v943
  %982 = vmatprep.subr.mxu0 0.0
  %983 = vmatpush1.msra.mxu0 %v944
  %984 = vmatprep.subr.mxu0 0.0
  %985 = vmatpush1.msra.mxu0 0.0
  %986 = vmatprep.subr.mxu0 0.0
  %987 = vmatpush1.msra.mxu0 0.0
  %988 = vmatprep.subr.mxu0 0.0
  %989 = vmatpush1.msra.mxu0 0.0
  %990 = vmatprep.subr.mxu0 0.0
  %991 = vmatpush1.msra.mxu0 0.0
  %992 = vmatprep.subr.mxu0 0.0
  %993 = vmatpush1.msra.mxu0 0.0
  %994 = vmatprep.subr.mxu0 0.0
  %995 = vmatpush1.msra.mxu0 0.0
  %996 = vmatprep.subr.mxu0 0.0
  %997 = vmatpush1.msra.mxu0 0.0
  %998 = vmatprep.subr.mxu0 0.0
  %999 = vmatpush1.msra.mxu0 0.0
  %1000 = vmatprep.subr.mxu0 0.0
  %1001 = vmatpush1.msra.mxu0 0.0
  %1002 = vmatprep.subr.mxu0 0.0
  %1003 = vmatpush1.msra.mxu0 0.0
  %1004 = vmatprep.subr.mxu0 0.0
  %1005 = vmatpush1.msra.mxu0 0.0
  %1006 = vmatprep.subr.mxu0 0.0
  %1007 = vmatpush1.msra.mxu0 0.0
  %1008 = vmatprep.subr.mxu0 0.0
  %1009 = vmatpush1.msra.mxu0 0.0
  %1010 = vmatprep.subr.mxu0 0.0
  %1011 = vmatpush1.msra.mxu0 0.0
  %1012 = vmatprep.subr.mxu0 0.0
  %1013 = vmatpush1.msra.mxu0 0.0
  %1014 = vmatprep.subr.mxu0 0.0
  %1015 = vmatpush1.msra.mxu0 0.0
  %1016 = vmatprep.mubr.f32.mxu0 0.0
  %1017 = vmatmul.mubr.f32.gmra.mrb[0].mxu0 %v926
  %v1018 = vpop.f32.mrb[0].mxu0
  %v1019 = vadd.f32 %v950, %v1018
  %v1020 = vpop.f32.mrb[0].mxu0
  %1021 = vdwg.mxu0
  %v1022 = vmax.f32 %v1019, 0.0
  %v1023 = vand.u32 2147483647, %v1019
  %v1024 = vsub.f32 0.0, %v1023
  %v1025 = vmul.f32 %v1024, 1.442695
  %v1026 = vpow.pop %v1025
  %v1027 = vadd.f32 %v1026, 1.0
  %v1028 = vlog2.pop %v1027
  %v1029 = vmul.f32 %v1028, 0.6931472
  %v1030 = vadd.f32 %v1022, %v1029
  %v1031 = vsub.f32 %v1030, 0.6931472
  %v1032 = vadd.f32 %v150, %v1031
  %v1033 = vld [vmem:[%s39] sm:$0xff]
  %v1034 = vld [vmem:[%s39 + $0x8] sm:$0xff]
  %v1035 = vld [vmem:[%s39 + $0x10] sm:$0xff]
  %v1036 = vld [vmem:[%s39 + $0x18] sm:$0xff]
  %v1037 = vld [vmem:[%s39 + $0x20] sm:$0xff]
  %v1038 = vld [vmem:[%s39 + $0x28] sm:$0xff]
  %v1039 = vld [vmem:[%s39 + $0x30] sm:$0xff]
  %v1040 = vld [vmem:[%s39 + $0x38] sm:$0xff]
  %v1041 = vld [vmem:[%s39 + $0x40] sm:$0xff]
  %v1042 = vld [vmem:[%s39 + $0x48] sm:$0xff]
  %v1043 = vld [vmem:[%s39 + $0x50] sm:$0xff]
  %v1044 = vld [vmem:[%s39 + $0x58] sm:$0xff]
  %v1045 = vld [vmem:[%s39 + $0x60] sm:$0xff]
  %v1046 = vld [vmem:[%s39 + $0x68] sm:$0xff]
  %v1047 = vld [vmem:[%s39 + $0x70] sm:$0xff]
  %v1048 = vld [vmem:[%s39 + $0x78] sm:$0xff]
  %v1049 = vld [vmem:[%s41] sm:$0x1]
  %v1051 = vlaneseq
  %v1052 = vshrl.u32 %v1051, 7
  %v1053 = vsub.s32 0, %v1052
  %v1054 = vrot.slane %v1049, %v1053
  %1056 = vmatprep.subr.mxu0 0.0
  %1057 = vmatpush1.msra.mxu0 %v1033
  %1058 = vmatprep.subr.mxu0 0.0
  %1059 = vmatpush1.msra.mxu0 %v1034
  %1060 = vmatprep.subr.mxu0 0.0
  %1061 = vmatpush1.msra.mxu0 %v1035
  %1062 = vmatprep.subr.mxu0 0.0
  %1063 = vmatpush1.msra.mxu0 %v1036
  %1064 = vmatprep.subr.mxu0 0.0
  %1065 = vmatpush1.msra.mxu0 %v1037
  %1066 = vmatprep.subr.mxu0 0.0
  %1067 = vmatpush1.msra.mxu0 %v1038
  %1068 = vmatprep.subr.mxu0 0.0
  %1069 = vmatpush1.msra.mxu0 %v1039
  %1070 = vmatprep.subr.mxu0 0.0
  %1071 = vmatpush1.msra.mxu0 %v1040
  %1072 = vmatprep.subr.mxu0 0.0
  %1073 = vmatpush1.msra.mxu0 %v1041
  %1074 = vmatprep.subr.mxu0 0.0
  %1075 = vmatpush1.msra.mxu0 %v1042
  %1076 = vmatprep.subr.mxu0 0.0
  %1077 = vmatpush1.msra.mxu0 %v1043
  %1078 = vmatprep.subr.mxu0 0.0
  %1079 = vmatpush1.msra.mxu0 %v1044
  %1080 = vmatprep.subr.mxu0 0.0
  %1081 = vmatpush1.msra.mxu0 %v1045
  %1082 = vmatprep.subr.mxu0 0.0
  %1083 = vmatpush1.msra.mxu0 %v1046
  %1084 = vmatprep.subr.mxu0 0.0
  %1085 = vmatpush1.msra.mxu0 %v1047
  %1086 = vmatprep.subr.mxu0 0.0
  %1087 = vmatpush1.msra.mxu0 %v1048
  %1088 = vmatprep.subr.mxu0 0.0
  %1089 = vmatpush1.msra.mxu0 0.0
  %1090 = vmatprep.subr.mxu0 0.0
  %1091 = vmatpush1.msra.mxu0 0.0
  %1092 = vmatprep.subr.mxu0 0.0
  %1093 = vmatpush1.msra.mxu0 0.0
  %1094 = vmatprep.subr.mxu0 0.0
  %1095 = vmatpush1.msra.mxu0 0.0
  %1096 = vmatprep.subr.mxu0 0.0
  %1097 = vmatpush1.msra.mxu0 0.0
  %1098 = vmatprep.subr.mxu0 0.0
  %1099 = vmatpush1.msra.mxu0 0.0
  %1100 = vmatprep.subr.mxu0 0.0
  %1101 = vmatpush1.msra.mxu0 0.0
  %1102 = vmatprep.subr.mxu0 0.0
  %1103 = vmatpush1.msra.mxu0 0.0
  %1104 = vmatprep.subr.mxu0 0.0
  %1105 = vmatpush1.msra.mxu0 0.0
  %1106 = vmatprep.subr.mxu0 0.0
  %1107 = vmatpush1.msra.mxu0 0.0
  %1108 = vmatprep.subr.mxu0 0.0
  %1109 = vmatpush1.msra.mxu0 0.0
  %1110 = vmatprep.subr.mxu0 0.0
  %1111 = vmatpush1.msra.mxu0 0.0
  %1112 = vmatprep.subr.mxu0 0.0
  %1113 = vmatpush1.msra.mxu0 0.0
  %1114 = vmatprep.subr.mxu0 0.0
  %1115 = vmatpush1.msra.mxu0 0.0
  %1116 = vmatprep.subr.mxu0 0.0
  %1117 = vmatpush1.msra.mxu0 0.0
  %1118 = vmatprep.subr.mxu0 0.0
  %1119 = vmatpush1.msra.mxu0 0.0
  %1120 = vmatprep.mubr.f32.mxu0 0.0
  %1121 = vmatmul.mubr.f32.gmra.mrb[0].mxu0 %v244
  %v1122 = vpop.f32.mrb[0].mxu0
  %v1123 = vadd.f32 %v1054, %v1122
  %v1124 = vpop.f32.mrb[0].mxu0
  %1125 = vmatprep.mubr.f32.mxu0 0.0
  %1126 = vmatmul.mubr.f32.gmra.mrb[0].mxu0 %v246
  %v1127 = vpop.f32.mrb[0].mxu0
  %v1128 = vadd.f32 %v1054, %v1127
  %v1129 = vpop.f32.mrb[0].mxu0
  %1130 = vdwg.mxu0
  %v1131 = vmax.f32 %v1123, 0.0
  %v1132 = vmax.f32 %v1128, 0.0
  %v1133 = vand.u32 2147483647, %v1123
  %v1134 = vand.u32 2147483647, %v1128
  %v1135 = vsub.f32 0.0, %v1133
  %v1136 = vsub.f32 0.0, %v1134
  %v1137 = vmul.f32 %v1135, 1.442695
  %v1138 = vpow.pop %v1137
  %v1139 = vmul.f32 %v1136, 1.442695
  %v1140 = vpow.pop %v1139
  %v1141 = vadd.f32 %v1138, 1.0
  %v1142 = vadd.f32 %v1140, 1.0
  %v1143 = vlog2.pop %v1141
  %v1144 = vmul.f32 %v1143, 0.6931472
  %v1145 = vlog2.pop %v1142
  %v1146 = vmul.f32 %v1145, 0.6931472
  %v1147 = vadd.f32 %v1131, %v1144
  %v1148 = vadd.f32 %v1132, %v1146
  %v1149 = vsub.f32 %v1147, 0.6931472
  %v1150 = vsub.f32 %v1148, 0.6931472
  %v1151 = vld [vmem:[%s43] sm:$0xff]
  %v1152 = vld [vmem:[%s43 + $0x8] sm:$0xff]
  %v1153 = vld [vmem:[%s43 + $0x10] sm:$0xff]
  %v1154 = vld [vmem:[%s43 + $0x18] sm:$0xff]
  %v1155 = vld [vmem:[%s43 + $0x20] sm:$0xff]
  %v1156 = vld [vmem:[%s43 + $0x28] sm:$0xff]
  %v1157 = vld [vmem:[%s43 + $0x30] sm:$0xff]
  %v1158 = vld [vmem:[%s43 + $0x38] sm:$0xff]
  %v1159 = vld [vmem:[%s43 + $0x40] sm:$0xff]
  %v1160 = vld [vmem:[%s43 + $0x48] sm:$0xff]
  %v1161 = vld [vmem:[%s43 + $0x50] sm:$0xff]
  %v1162 = vld [vmem:[%s43 + $0x58] sm:$0xff]
  %v1163 = vld [vmem:[%s43 + $0x60] sm:$0xff]
  %v1164 = vld [vmem:[%s43 + $0x68] sm:$0xff]
  %v1165 = vld [vmem:[%s43 + $0x70] sm:$0xff]
  %v1166 = vld [vmem:[%s43 + $0x78] sm:$0xff]
  %v1167 = vld [vmem:[%s45] sm:$0x1]
  %v1169 = vlaneseq
  %v1170 = vshrl.u32 %v1169, 7
  %v1171 = vsub.s32 0, %v1170
  %v1172 = vrot.slane %v1167, %v1171
  %1174 = vmatprep.subr.mxu0 0.0
  %1175 = vmatpush1.msra.mxu0 %v1151
  %1176 = vmatprep.subr.mxu0 0.0
  %1177 = vmatpush1.msra.mxu0 %v1152
  %1178 = vmatprep.subr.mxu0 0.0
  %1179 = vmatpush1.msra.mxu0 %v1153
  %1180 = vmatprep.subr.mxu0 0.0
  %1181 = vmatpush1.msra.mxu0 %v1154
  %1182 = vmatprep.subr.mxu0 0.0
  %1183 = vmatpush1.msra.mxu0 %v1155
  %1184 = vmatprep.subr.mxu0 0.0
  %1185 = vmatpush1.msra.mxu0 %v1156
  %1186 = vmatprep.subr.mxu0 0.0
  %1187 = vmatpush1.msra.mxu0 %v1157
  %1188 = vmatprep.subr.mxu0 0.0
  %1189 = vmatpush1.msra.mxu0 %v1158
  %1190 = vmatprep.subr.mxu0 0.0
  %1191 = vmatpush1.msra.mxu0 %v1159
  %1192 = vmatprep.subr.mxu0 0.0
  %1193 = vmatpush1.msra.mxu0 %v1160
  %1194 = vmatprep.subr.mxu0 0.0
  %1195 = vmatpush1.msra.mxu0 %v1161
  %1196 = vmatprep.subr.mxu0 0.0
  %1197 = vmatpush1.msra.mxu0 %v1162
  %1198 = vmatprep.subr.mxu0 0.0
  %1199 = vmatpush1.msra.mxu0 %v1163
  %1200 = vmatprep.subr.mxu0 0.0
  %1201 = vmatpush1.msra.mxu0 %v1164
  %1202 = vmatprep.subr.mxu0 0.0
  %1203 = vmatpush1.msra.mxu0 %v1165
  %1204 = vmatprep.subr.mxu0 0.0
  %1205 = vmatpush1.msra.mxu0 %v1166
  %1206 = vmatprep.subr.mxu0 0.0
  %1207 = vmatpush1.msra.mxu0 0.0
  %1208 = vmatprep.subr.mxu0 0.0
  %1209 = vmatpush1.msra.mxu0 0.0
  %1210 = vmatprep.subr.mxu0 0.0
  %1211 = vmatpush1.msra.mxu0 0.0
  %1212 = vmatprep.subr.mxu0 0.0
  %1213 = vmatpush1.msra.mxu0 0.0
  %1214 = vmatprep.subr.mxu0 0.0
  %1215 = vmatpush1.msra.mxu0 0.0
  %1216 = vmatprep.subr.mxu0 0.0
  %1217 = vmatpush1.msra.mxu0 0.0
  %1218 = vmatprep.subr.mxu0 0.0
  %1219 = vmatpush1.msra.mxu0 0.0
  %1220 = vmatprep.subr.mxu0 0.0
  %1221 = vmatpush1.msra.mxu0 0.0
  %1222 = vmatprep.subr.mxu0 0.0
  %1223 = vmatpush1.msra.mxu0 0.0
  %1224 = vmatprep.subr.mxu0 0.0
  %1225 = vmatpush1.msra.mxu0 0.0
  %1226 = vmatprep.subr.mxu0 0.0
  %1227 = vmatpush1.msra.mxu0 0.0
  %1228 = vmatprep.subr.mxu0 0.0
  %1229 = vmatpush1.msra.mxu0 0.0
  %1230 = vmatprep.subr.mxu0 0.0
  %1231 = vmatpush1.msra.mxu0 0.0
  %1232 = vmatprep.subr.mxu0 0.0
  %1233 = vmatpush1.msra.mxu0 0.0
  %1234 = vmatprep.subr.mxu0 0.0
  %1235 = vmatpush1.msra.mxu0 0.0
  %1236 = vmatprep.subr.mxu0 0.0
  %1237 = vmatpush1.msra.mxu0 0.0
  %1238 = vmatprep.mubr.f32.mxu0 0.0
  %1239 = vmatmul.mubr.f32.gmra.mrb[0].mxu0 %v1149
  %v1240 = vpop.f32.mrb[0].mxu0
  %v1241 = vadd.f32 %v1172, %v1240
  %v1242 = vpop.f32.mrb[0].mxu0
  %1243 = vmatprep.mubr.f32.mxu0 0.0
  %1244 = vmatmul.mubr.f32.gmra.mrb[0].mxu0 %v1150
  %v1245 = vpop.f32.mrb[0].mxu0
  %v1246 = vadd.f32 %v1172, %v1245
  %v1247 = vpop.f32.mrb[0].mxu0
  %1248 = vdwg.mxu0
  %v1249 = vmul.f32 %v1241, %v465
  %v1250 = vmul.f32 %v1246, %v466
  %v1251 = vld [vmem:[%s47] sm:$0xff]
  %v1252 = vld [vmem:[%s47 + $0x8] sm:$0xff]
  %v1253 = vld [vmem:[%s47 + $0x10] sm:$0xff]
  %v1254 = vld [vmem:[%s47 + $0x18] sm:$0xff]
  %v1255 = vld [vmem:[%s47 + $0x20] sm:$0xff]
  %v1256 = vld [vmem:[%s47 + $0x28] sm:$0xff]
  %v1257 = vld [vmem:[%s47 + $0x30] sm:$0xff]
  %v1258 = vld [vmem:[%s47 + $0x38] sm:$0xff]
  %v1259 = vld [vmem:[%s47 + $0x40] sm:$0xff]
  %v1260 = vld [vmem:[%s47 + $0x48] sm:$0xff]
  %v1261 = vld [vmem:[%s47 + $0x50] sm:$0xff]
  %v1262 = vld [vmem:[%s47 + $0x58] sm:$0xff]
  %v1263 = vld [vmem:[%s47 + $0x60] sm:$0xff]
  %v1264 = vld [vmem:[%s47 + $0x68] sm:$0xff]
  %v1265 = vld [vmem:[%s47 + $0x70] sm:$0xff]
  %v1266 = vld [vmem:[%s47 + $0x78] sm:$0xff]
  %1267 = vmatprep.subr.mxu0 0.0
  %1268 = vmatpush1.msra.mxu0 %v1251
  %1269 = vmatprep.subr.mxu0 0.0
  %1270 = vmatpush1.msra.mxu0 %v1252
  %1271 = vmatprep.subr.mxu0 0.0
  %1272 = vmatpush1.msra.mxu0 %v1253
  %1273 = vmatprep.subr.mxu0 0.0
  %1274 = vmatpush1.msra.mxu0 %v1254
  %1275 = vmatprep.subr.mxu0 0.0
  %1276 = vmatpush1.msra.mxu0 %v1255
  %1277 = vmatprep.subr.mxu0 0.0
  %1278 = vmatpush1.msra.mxu0 %v1256
  %1279 = vmatprep.subr.mxu0 0.0
  %1280 = vmatpush1.msra.mxu0 %v1257
  %1281 = vmatprep.subr.mxu0 0.0
  %1282 = vmatpush1.msra.mxu0 %v1258
  %1283 = vmatprep.subr.mxu0 0.0
  %1284 = vmatpush1.msra.mxu0 %v1259
  %1285 = vmatprep.subr.mxu0 0.0
  %1286 = vmatpush1.msra.mxu0 %v1260
  %1287 = vmatprep.subr.mxu0 0.0
  %1288 = vmatpush1.msra.mxu0 %v1261
  %1289 = vmatprep.subr.mxu0 0.0
  %1290 = vmatpush1.msra.mxu0 %v1262
  %1291 = vmatprep.subr.mxu0 0.0
  %1292 = vmatpush1.msra.mxu0 %v1263
  %1293 = vmatprep.subr.mxu0 0.0
  %1294 = vmatpush1.msra.mxu0 %v1264
  %1295 = vmatprep.subr.mxu0 0.0
  %1296 = vmatpush1.msra.mxu0 %v1265
  %1297 = vmatprep.subr.mxu0 0.0
  %1298 = vmatpush1.msra.mxu0 %v1266
  %1299 = vmatprep.subr.mxu0 0.0
  %1300 = vmatpush1.msra.mxu0 0.0
  %1301 = vmatprep.subr.mxu0 0.0
  %1302 = vmatpush1.msra.mxu0 0.0
  %1303 = vmatprep.subr.mxu0 0.0
  %1304 = vmatpush1.msra.mxu0 0.0
  %1305 = vmatprep.subr.mxu0 0.0
  %1306 = vmatpush1.msra.mxu0 0.0
  %1307 = vmatprep.subr.mxu0 0.0
  %1308 = vmatpush1.msra.mxu0 0.0
  %1309 = vmatprep.subr.mxu0 0.0
  %1310 = vmatpush1.msra.mxu0 0.0
  %1311 = vmatprep.subr.mxu0 0.0
  %1312 = vmatpush1.msra.mxu0 0.0
  %1313 = vmatprep.subr.mxu0 0.0
  %1314 = vmatpush1.msra.mxu0 0.0
  %1315 = vmatprep.subr.mxu0 0.0
  %1316 = vmatpush1.msra.mxu0 0.0
  %1317 = vmatprep.subr.mxu0 0.0
  %1318 = vmatpush1.msra.mxu0 0.0
  %1319 = vmatprep.subr.mxu0 0.0
  %1320 = vmatpush1.msra.mxu0 0.0
  %1321 = vmatprep.subr.mxu0 0.0
  %1322 = vmatpush1.msra.mxu0 0.0
  %1323 = vmatprep.subr.mxu0 0.0
  %1324 = vmatpush1.msra.mxu0 0.0
  %1325 = vmatprep.subr.mxu0 0.0
  %1326 = vmatpush1.msra.mxu0 0.0
  %1327 = vmatprep.subr.mxu0 0.0
  %1328 = vmatpush1.msra.mxu0 0.0
  %1329 = vmatprep.subr.mxu0 0.0
  %1330 = vmatpush1.msra.mxu0 0.0
  %1331 = vmatprep.mubr.f32.mxu0 0.0
  %1332 = vmatmul.mubr.f32.gmra.mrb[0].mxu0 %v1032
  %v1333 = vpop.f32.mrb[0].mxu0
  %v1334 = vadd.f32 0.0, %v1333
  %v1335 = vpop.f32.mrb[0].mxu0
  %1336 = vdwg.mxu0
  %1337 = vmatprep.subr.mxu0 0.0
  %1338 = vmatpush1.msra.mxu0 %v1334
  %1339 = vmatprep.subr.mxu0 0.0
  %1340 = vmatpush1.msra.mxu0 0.0
  %1341 = vmatprep.subr.mxu0 0.0
  %1342 = vmatpush1.msra.mxu0 0.0
  %1343 = vmatprep.subr.mxu0 0.0
  %1344 = vmatpush1.msra.mxu0 0.0
  %1345 = vmatprep.subr.mxu0 0.0
  %1346 = vmatpush1.msra.mxu0 0.0
  %1347 = vmatprep.subr.mxu0 0.0
  %1348 = vmatpush1.msra.mxu0 0.0
  %1349 = vmatprep.subr.mxu0 0.0
  %1350 = vmatpush1.msra.mxu0 0.0
  %1351 = vmatprep.subr.mxu0 0.0
  %1352 = vmatpush1.msra.mxu0 0.0
  %1353 = vmatprep.subr.mxu0 0.0
  %1354 = vmatpush1.msra.mxu0 0.0
  %1355 = vmatprep.subr.mxu0 0.0
  %1356 = vmatpush1.msra.mxu0 0.0
  %1357 = vmatprep.subr.mxu0 0.0
  %1358 = vmatpush1.msra.mxu0 0.0
  %1359 = vmatprep.subr.mxu0 0.0
  %1360 = vmatpush1.msra.mxu0 0.0
  %1361 = vmatprep.subr.mxu0 0.0
  %1362 = vmatpush1.msra.mxu0 0.0
  %1363 = vmatprep.subr.mxu0 0.0
  %1364 = vmatpush1.msra.mxu0 0.0
  %1365 = vmatprep.subr.mxu0 0.0
  %1366 = vmatpush1.msra.mxu0 0.0
  %1367 = vmatprep.subr.mxu0 0.0
  %1368 = vmatpush1.msra.mxu0 0.0
  %1369 = vmatprep.subr.mxu0 0.0
  %1370 = vmatpush1.msra.mxu0 0.0
  %1371 = vmatprep.subr.mxu0 0.0
  %1372 = vmatpush1.msra.mxu0 0.0
  %1373 = vmatprep.subr.mxu0 0.0
  %1374 = vmatpush1.msra.mxu0 0.0
  %1375 = vmatprep.subr.mxu0 0.0
  %1376 = vmatpush1.msra.mxu0 0.0
  %1377 = vmatprep.subr.mxu0 0.0
  %1378 = vmatpush1.msra.mxu0 0.0
  %1379 = vmatprep.subr.mxu0 0.0
  %1380 = vmatpush1.msra.mxu0 0.0
  %1381 = vmatprep.subr.mxu0 0.0
  %1382 = vmatpush1.msra.mxu0 0.0
  %1383 = vmatprep.subr.mxu0 0.0
  %1384 = vmatpush1.msra.mxu0 0.0
  %1385 = vmatprep.subr.mxu0 0.0
  %1386 = vmatpush1.msra.mxu0 0.0
  %1387 = vmatprep.subr.mxu0 0.0
  %1388 = vmatpush1.msra.mxu0 0.0
  %1389 = vmatprep.subr.mxu0 0.0
  %1390 = vmatpush1.msra.mxu0 0.0
  %1391 = vmatprep.subr.mxu0 0.0
  %1392 = vmatpush1.msra.mxu0 0.0
  %1393 = vmatprep.subr.mxu0 0.0
  %1394 = vmatpush1.msra.mxu0 0.0
  %1395 = vmatprep.subr.mxu0 0.0
  %1396 = vmatpush1.msra.mxu0 0.0
  %1397 = vmatprep.subr.mxu0 0.0
  %1398 = vmatpush1.msra.mxu0 0.0
  %1399 = vmatprep.subr.mxu0 0.0
  %1400 = vmatpush1.msra.mxu0 0.0
  %1401 = vmatprep.mubr.f32.mxu0 0.0
  %1402 = vmatmul.mubr.f32.gmra.mrb[0].mxu0 %v773
  %v1403 = vpop.f32.mrb[0].mxu0
  %v1404 = vadd.f32 0.0, %v1403
  %v1405 = vpop.f32.mrb[0].mxu0
  %1406 = vmatprep.mubr.f32.mxu0 0.0
  %1407 = vmatmul.mubr.f32.gmra.mrb[0].mxu0 %v776
  %v1408 = vpop.f32.mrb[0].mxu0
  %v1409 = vadd.f32 0.0, %v1408
  %v1410 = vpop.f32.mrb[0].mxu0
  %1411 = vdwg.mxu0
  %v1412 = vmul.f32 %v1249, %v1404
  %v1413 = vmul.f32 %v1250, %v1409
  %1414 = vmatprep.subr.mxu0 0.0
  %1415 = vmatpush1.msra.mxu0 %v1412
  %1416 = vmatprep.subr.mxu0 0.0
  %1417 = vmatpush1.msra.mxu0 %v1413
  %1418 = vmatprep.subr.mxu0 0.0
  %1419 = vmatpush1.msra.mxu0 0.0
  %1420 = vmatprep.subr.mxu0 0.0
  %1421 = vmatpush1.msra.mxu0 0.0
  %1422 = vmatprep.subr.mxu0 0.0
  %1423 = vmatpush1.msra.mxu0 0.0
  %1424 = vmatprep.subr.mxu0 0.0
  %1425 = vmatpush1.msra.mxu0 0.0
  %1426 = vmatprep.subr.mxu0 0.0
  %1427 = vmatpush1.msra.mxu0 0.0
  %1428 = vmatprep.subr.mxu0 0.0
  %1429 = vmatpush1.msra.mxu0 0.0
  %1430 = vmatprep.subr.mxu0 0.0
  %1431 = vmatpush1.msra.mxu0 0.0
  %1432 = vmatprep.subr.mxu0 0.0
  %1433 = vmatpush1.msra.mxu0 0.0
  %1434 = vmatprep.subr.mxu0 0.0
  %1435 = vmatpush1.msra.mxu0 0.0
  %1436 = vmatprep.subr.mxu0 0.0
  %1437 = vmatpush1.msra.mxu0 0.0
  %1438 = vmatprep.subr.mxu0 0.0
  %1439 = vmatpush1.msra.mxu0 0.0
  %1440 = vmatprep.subr.mxu0 0.0
  %1441 = vmatpush1.msra.mxu0 0.0
  %1442 = vmatprep.subr.mxu0 0.0
  %1443 = vmatpush1.msra.mxu0 0.0
  %1444 = vmatprep.subr.mxu0 0.0
  %1445 = vmatpush1.msra.mxu0 0.0
  %1446 = vmatprep.subr.mxu0 0.0
  %1447 = vmatpush1.msra.mxu0 0.0
  %1448 = vmatprep.subr.mxu0 0.0
  %1449 = vmatpush1.msra.mxu0 0.0
  %1450 = vmatprep.subr.mxu0 0.0
  %1451 = vmatpush1.msra.mxu0 0.0
  %1452 = vmatprep.subr.mxu0 0.0
  %1453 = vmatpush1.msra.mxu0 0.0
  %1454 = vmatprep.subr.mxu0 0.0
  %1455 = vmatpush1.msra.mxu0 0.0
  %1456 = vmatprep.subr.mxu0 0.0
  %1457 = vmatpush1.msra.mxu0 0.0
  %1458 = vmatprep.subr.mxu0 0.0
  %1459 = vmatpush1.msra.mxu0 0.0
  %1460 = vmatprep.subr.mxu0 0.0
  %1461 = vmatpush1.msra.mxu0 0.0
  %1462 = vmatprep.subr.mxu0 0.0
  %1463 = vmatpush1.msra.mxu0 0.0
  %1464 = vmatprep.subr.mxu0 0.0
  %1465 = vmatpush1.msra.mxu0 0.0
  %1466 = vmatprep.subr.mxu0 0.0
  %1467 = vmatpush1.msra.mxu0 0.0
  %1468 = vmatprep.subr.mxu0 0.0
  %1469 = vmatpush1.msra.mxu0 0.0
  %1470 = vmatprep.subr.mxu0 0.0
  %1471 = vmatpush1.msra.mxu0 0.0
  %1472 = vmatprep.subr.mxu0 0.0
  %1473 = vmatpush1.msra.mxu0 0.0
  %1474 = vmatprep.subr.mxu0 0.0
  %1475 = vmatpush1.msra.mxu0 0.0
  %1476 = vmatprep.subr.mxu0 0.0
  %1477 = vmatpush1.msra.mxu0 0.0
  %1478 = vmatprep.mubr.f32.mxu0 0.0
  %1479 = vmatmul.mubr.f32.gmra.mrb[0].mxu0 %v857
  %v1480 = vpop.f32.mrb[0].mxu0
  %v1481 = vadd.f32 0.0, %v1480
  %v1482 = vpop.f32.mrb[0].mxu0
  %1483 = vdwg.mxu0
  %v1484 = vld [vmem:[%s49] sm:$0xff]
  %v1485 = vld [vmem:[%s49 + $0x8] sm:$0xff]
  %v1486 = vld [vmem:[%s49 + $0x10] sm:$0xff]
  %v1487 = vld [vmem:[%s49 + $0x18] sm:$0xff]
  %v1488 = vld [vmem:[%s49 + $0x20] sm:$0xff]
  %v1489 = vld [vmem:[%s49 + $0x28] sm:$0xff]
  %v1490 = vld [vmem:[%s49 + $0x30] sm:$0xff]
  %v1491 = vld [vmem:[%s49 + $0x38] sm:$0xff]
  %v1492 = vld [vmem:[%s49 + $0x40] sm:$0xff]
  %v1493 = vld [vmem:[%s49 + $0x48] sm:$0xff]
  %v1494 = vld [vmem:[%s49 + $0x50] sm:$0xff]
  %v1495 = vld [vmem:[%s49 + $0x58] sm:$0xff]
  %v1496 = vld [vmem:[%s49 + $0x60] sm:$0xff]
  %v1497 = vld [vmem:[%s49 + $0x68] sm:$0xff]
  %v1498 = vld [vmem:[%s49 + $0x70] sm:$0xff]
  %v1499 = vld [vmem:[%s49 + $0x78] sm:$0xff]
  %v1500 = vld [vmem:[%s51] sm:$0x1]
  %v1502 = vlaneseq
  %v1503 = vshrl.u32 %v1502, 7
  %v1504 = vsub.s32 0, %v1503
  %v1505 = vrot.slane %v1500, %v1504
  %1507 = vmatprep.subr.mxu0 0.0
  %1508 = vmatpush1.msra.mxu0 %v1484
  %1509 = vmatprep.subr.mxu0 0.0
  %1510 = vmatpush1.msra.mxu0 %v1485
  %1511 = vmatprep.subr.mxu0 0.0
  %1512 = vmatpush1.msra.mxu0 %v1486
  %1513 = vmatprep.subr.mxu0 0.0
  %1514 = vmatpush1.msra.mxu0 %v1487
  %1515 = vmatprep.subr.mxu0 0.0
  %1516 = vmatpush1.msra.mxu0 %v1488
  %1517 = vmatprep.subr.mxu0 0.0
  %1518 = vmatpush1.msra.mxu0 %v1489
  %1519 = vmatprep.subr.mxu0 0.0
  %1520 = vmatpush1.msra.mxu0 %v1490
  %1521 = vmatprep.subr.mxu0 0.0
  %1522 = vmatpush1.msra.mxu0 %v1491
  %1523 = vmatprep.subr.mxu0 0.0
  %1524 = vmatpush1.msra.mxu0 %v1492
  %1525 = vmatprep.subr.mxu0 0.0
  %1526 = vmatpush1.msra.mxu0 %v1493
  %1527 = vmatprep.subr.mxu0 0.0
  %1528 = vmatpush1.msra.mxu0 %v1494
  %1529 = vmatprep.subr.mxu0 0.0
  %1530 = vmatpush1.msra.mxu0 %v1495
  %1531 = vmatprep.subr.mxu0 0.0
  %1532 = vmatpush1.msra.mxu0 %v1496
  %1533 = vmatprep.subr.mxu0 0.0
  %1534 = vmatpush1.msra.mxu0 %v1497
  %1535 = vmatprep.subr.mxu0 0.0
  %1536 = vmatpush1.msra.mxu0 %v1498
  %1537 = vmatprep.subr.mxu0 0.0
  %1538 = vmatpush1.msra.mxu0 %v1499
  %1539 = vmatprep.subr.mxu0 0.0
  %1540 = vmatpush1.msra.mxu0 0.0
  %1541 = vmatprep.subr.mxu0 0.0
  %1542 = vmatpush1.msra.mxu0 0.0
  %1543 = vmatprep.subr.mxu0 0.0
  %1544 = vmatpush1.msra.mxu0 0.0
  %1545 = vmatprep.subr.mxu0 0.0
  %1546 = vmatpush1.msra.mxu0 0.0
  %1547 = vmatprep.subr.mxu0 0.0
  %1548 = vmatpush1.msra.mxu0 0.0
  %1549 = vmatprep.subr.mxu0 0.0
  %1550 = vmatpush1.msra.mxu0 0.0
  %1551 = vmatprep.subr.mxu0 0.0
  %1552 = vmatpush1.msra.mxu0 0.0
  %1553 = vmatprep.subr.mxu0 0.0
  %1554 = vmatpush1.msra.mxu0 0.0
  %1555 = vmatprep.subr.mxu0 0.0
  %1556 = vmatpush1.msra.mxu0 0.0
  %1557 = vmatprep.subr.mxu0 0.0
  %1558 = vmatpush1.msra.mxu0 0.0
  %1559 = vmatprep.subr.mxu0 0.0
  %1560 = vmatpush1.msra.mxu0 0.0
  %1561 = vmatprep.subr.mxu0 0.0
  %1562 = vmatpush1.msra.mxu0 0.0
  %1563 = vmatprep.subr.mxu0 0.0
  %1564 = vmatpush1.msra.mxu0 0.0
  %1565 = vmatprep.subr.mxu0 0.0
  %1566 = vmatpush1.msra.mxu0 0.0
  %1567 = vmatprep.subr.mxu0 0.0
  %1568 = vmatpush1.msra.mxu0 0.0
  %1569 = vmatprep.subr.mxu0 0.0
  %1570 = vmatpush1.msra.mxu0 0.0
  %1571 = vmatprep.mubr.f32.mxu0 0.0
  %1572 = vmatmul.mubr.f32.gmra.mrb[0].mxu0 %v1481
  %v1573 = vpop.f32.mrb[0].mxu0
  %v1574 = vadd.f32 %v1505, %v1573
  %v1575 = vpop.f32.mrb[0].mxu0
  %1576 = vdwg.mxu0
  %v1577 = vmax.f32 %v1574, 0.0
  %v1578 = vand.u32 2147483647, %v1574
  %v1579 = vsub.f32 0.0, %v1578
  %v1580 = vmul.f32 %v1579, 1.442695
  %v1581 = vpow.pop %v1580
  %v1582 = vadd.f32 %v1581, 1.0
  %v1583 = vlog2.pop %v1582
  %v1584 = vmul.f32 %v1583, 0.6931472
  %v1585 = vadd.f32 %v1577, %v1584
  %v1586 = vsub.f32 %v1585, 0.6931472
  %v1587 = vadd.f32 %v1032, %v1586
  %v1588 = vld [vmem:[%s61] sm:$0xff]
  %v1589 = vld [vmem:[%s61 + $0x8] sm:$0xff]
  %v1590 = vld [vmem:[%s61 + $0x10] sm:$0xff]
  %v1591 = vld [vmem:[%s61 + $0x18] sm:$0xff]
  %v1592 = vld [vmem:[%s61 + $0x20] sm:$0xff]
  %v1593 = vld [vmem:[%s61 + $0x28] sm:$0xff]
  %v1594 = vld [vmem:[%s61 + $0x30] sm:$0xff]
  %v1595 = vld [vmem:[%s61 + $0x38] sm:$0xff]
  %v1596 = vld [vmem:[%s61 + $0x40] sm:$0xff]
  %v1597 = vld [vmem:[%s61 + $0x48] sm:$0xff]
  %v1598 = vld [vmem:[%s61 + $0x50] sm:$0xff]
  %v1599 = vld [vmem:[%s61 + $0x58] sm:$0xff]
  %v1600 = vld [vmem:[%s61 + $0x60] sm:$0xff]
  %v1601 = vld [vmem:[%s61 + $0x68] sm:$0xff]
  %v1602 = vld [vmem:[%s61 + $0x70] sm:$0xff]
  %v1603 = vld [vmem:[%s61 + $0x78] sm:$0xff]
  %v1604 = vld [vmem:[%s63] sm:$0x1]
  %v1606 = vlaneseq
  %v1607 = vshrl.u32 %v1606, 7
  %v1608 = vsub.s32 0, %v1607
  %v1609 = vrot.slane %v1604, %v1608
  %1611 = vmatprep.subr.mxu0 0.0
  %1612 = vmatpush1.msra.mxu0 %v1588
  %1613 = vmatprep.subr.mxu0 0.0
  %1614 = vmatpush1.msra.mxu0 %v1589
  %1615 = vmatprep.subr.mxu0 0.0
  %1616 = vmatpush1.msra.mxu0 %v1590
  %1617 = vmatprep.subr.mxu0 0.0
  %1618 = vmatpush1.msra.mxu0 %v1591
  %1619 = vmatprep.subr.mxu0 0.0
  %1620 = vmatpush1.msra.mxu0 %v1592
  %1621 = vmatprep.subr.mxu0 0.0
  %1622 = vmatpush1.msra.mxu0 %v1593
  %1623 = vmatprep.subr.mxu0 0.0
  %1624 = vmatpush1.msra.mxu0 %v1594
  %1625 = vmatprep.subr.mxu0 0.0
  %1626 = vmatpush1.msra.mxu0 %v1595
  %1627 = vmatprep.subr.mxu0 0.0
  %1628 = vmatpush1.msra.mxu0 %v1596
  %1629 = vmatprep.subr.mxu0 0.0
  %1630 = vmatpush1.msra.mxu0 %v1597
  %1631 = vmatprep.subr.mxu0 0.0
  %1632 = vmatpush1.msra.mxu0 %v1598
  %1633 = vmatprep.subr.mxu0 0.0
  %1634 = vmatpush1.msra.mxu0 %v1599
  %1635 = vmatprep.subr.mxu0 0.0
  %1636 = vmatpush1.msra.mxu0 %v1600
  %1637 = vmatprep.subr.mxu0 0.0
  %1638 = vmatpush1.msra.mxu0 %v1601
  %1639 = vmatprep.subr.mxu0 0.0
  %1640 = vmatpush1.msra.mxu0 %v1602
  %1641 = vmatprep.subr.mxu0 0.0
  %1642 = vmatpush1.msra.mxu0 %v1603
  %1643 = vmatprep.subr.mxu0 0.0
  %1644 = vmatpush1.msra.mxu0 0.0
  %1645 = vmatprep.subr.mxu0 0.0
  %1646 = vmatpush1.msra.mxu0 0.0
  %1647 = vmatprep.subr.mxu0 0.0
  %1648 = vmatpush1.msra.mxu0 0.0
  %1649 = vmatprep.subr.mxu0 0.0
  %1650 = vmatpush1.msra.mxu0 0.0
  %1651 = vmatprep.subr.mxu0 0.0
  %1652 = vmatpush1.msra.mxu0 0.0
  %1653 = vmatprep.subr.mxu0 0.0
  %1654 = vmatpush1.msra.mxu0 0.0
  %1655 = vmatprep.subr.mxu0 0.0
  %1656 = vmatpush1.msra.mxu0 0.0
  %1657 = vmatprep.subr.mxu0 0.0
  %1658 = vmatpush1.msra.mxu0 0.0
  %1659 = vmatprep.subr.mxu0 0.0
  %1660 = vmatpush1.msra.mxu0 0.0
  %1661 = vmatprep.subr.mxu0 0.0
  %1662 = vmatpush1.msra.mxu0 0.0
  %1663 = vmatprep.subr.mxu0 0.0
  %1664 = vmatpush1.msra.mxu0 0.0
  %1665 = vmatprep.subr.mxu0 0.0
  %1666 = vmatpush1.msra.mxu0 0.0
  %1667 = vmatprep.subr.mxu0 0.0
  %1668 = vmatpush1.msra.mxu0 0.0
  %1669 = vmatprep.subr.mxu0 0.0
  %1670 = vmatpush1.msra.mxu0 0.0
  %1671 = vmatprep.subr.mxu0 0.0
  %1672 = vmatpush1.msra.mxu0 0.0
  %1673 = vmatprep.subr.mxu0 0.0
  %1674 = vmatpush1.msra.mxu0 0.0
  %1675 = vmatprep.mubr.f32.mxu0 0.0
  %1676 = vmatmul.mubr.f32.gmra.mrb[0].mxu0 %v1587
  %v1677 = vpop.f32.mrb[0].mxu0
  %v1678 = vadd.f32 %v1609, %v1677
  %v1679 = vpop.f32.mrb[0].mxu0
  %1680 = vdwg.mxu0
  %v1681 = vmax.f32 %v1678, 0.0
  %v1682 = vand.u32 2147483647, %v1678
  %v1683 = vsub.f32 0.0, %v1682
  %v1684 = vmul.f32 %v1683, 1.442695
  %v1685 = vpow.pop %v1684
  %v1686 = vadd.f32 %v1685, 1.0
  %v1687 = vlog2.pop %v1686
  %v1688 = vmul.f32 %v1687, 0.6931472
  %v1689 = vadd.f32 %v1681, %v1688
  %v1690 = vsub.f32 %v1689, 0.6931472
  %v1691 = vld [vmem:[%s67] sm:$0x1]
  %v1693 = vlaneseq
  %v1694 = vshrl.u32 %v1693, 7
  %v1695 = vsub.s32 0, %v1694
  %v1696 = vrot.slane %v1691, %v1695
  %v1698 = vmul.f32 %v1690, %v1696
  %1699 = vadd.xlane.f32.xlu0 %v1698
  %v1700 = vpop.xlane.xlu0 %1699
  %v1701 = vld [vmem:[#allocation2] sm:$0x1]
  %v1703 = vlaneseq
  %v1704 = vshrl.u32 %v1703, 7
  %v1705 = vsub.s32 0, %v1704
  %v1706 = vrot.slane %v1701, %v1705
  %v1708 = vadd.f32 %v1700, %v1706
  %vm1709 = vcmp.ge.f32.partialorder %v1678, 0.0
  %v1710 = vrcp.pop %v1686
  %v1711 = vmul.f32 1.0, %v1710
  %v1712 = vmul.f32 %v1685, %v1710
  %v1713 = vsel %vm1709, %v1711, %v1712
  %v1714 = vmul.f32 %v1696, %v1713
  %v1715 = vld [vmem:[%s65] sm:$0xff]
  %v1716 = vld [vmem:[%s65 + $0x8] sm:$0xff]
  %v1717 = vld [vmem:[%s65 + $0x10] sm:$0xff]
  %v1718 = vld [vmem:[%s65 + $0x18] sm:$0xff]
  %v1719 = vld [vmem:[%s65 + $0x20] sm:$0xff]
  %v1720 = vld [vmem:[%s65 + $0x28] sm:$0xff]
  %v1721 = vld [vmem:[%s65 + $0x30] sm:$0xff]
  %v1722 = vld [vmem:[%s65 + $0x38] sm:$0xff]
  %v1723 = vld [vmem:[%s65 + $0x40] sm:$0xff]
  %v1724 = vld [vmem:[%s65 + $0x48] sm:$0xff]
  %v1725 = vld [vmem:[%s65 + $0x50] sm:$0xff]
  %v1726 = vld [vmem:[%s65 + $0x58] sm:$0xff]
  %v1727 = vld [vmem:[%s65 + $0x60] sm:$0xff]
  %v1728 = vld [vmem:[%s65 + $0x68] sm:$0xff]
  %v1729 = vld [vmem:[%s65 + $0x70] sm:$0xff]
  %v1730 = vld [vmem:[%s65 + $0x78] sm:$0xff]
  %1731 = vmatprep.subr.mxu0 0.0
  %1732 = vmatpush1.msra.mxu0 %v1715
  %1733 = vmatprep.subr.mxu0 0.0
  %1734 = vmatpush1.msra.mxu0 %v1716
  %1735 = vmatprep.subr.mxu0 0.0
  %1736 = vmatpush1.msra.mxu0 %v1717
  %1737 = vmatprep.subr.mxu0 0.0
  %1738 = vmatpush1.msra.mxu0 %v1718
  %1739 = vmatprep.subr.mxu0 0.0
  %1740 = vmatpush1.msra.mxu0 %v1719
  %1741 = vmatprep.subr.mxu0 0.0
  %1742 = vmatpush1.msra.mxu0 %v1720
  %1743 = vmatprep.subr.mxu0 0.0
  %1744 = vmatpush1.msra.mxu0 %v1721
  %1745 = vmatprep.subr.mxu0 0.0
  %1746 = vmatpush1.msra.mxu0 %v1722
  %1747 = vmatprep.subr.mxu0 0.0
  %1748 = vmatpush1.msra.mxu0 %v1723
  %1749 = vmatprep.subr.mxu0 0.0
  %1750 = vmatpush1.msra.mxu0 %v1724
  %1751 = vmatprep.subr.mxu0 0.0
  %1752 = vmatpush1.msra.mxu0 %v1725
  %1753 = vmatprep.subr.mxu0 0.0
  %1754 = vmatpush1.msra.mxu0 %v1726
  %1755 = vmatprep.subr.mxu0 0.0
  %1756 = vmatpush1.msra.mxu0 %v1727
  %1757 = vmatprep.subr.mxu0 0.0
  %1758 = vmatpush1.msra.mxu0 %v1728
  %1759 = vmatprep.subr.mxu0 0.0
  %1760 = vmatpush1.msra.mxu0 %v1729
  %1761 = vmatprep.subr.mxu0 0.0
  %1762 = vmatpush1.msra.mxu0 %v1730
  %1763 = vmatprep.subr.mxu0 0.0
  %1764 = vmatpush1.msra.mxu0 0.0
  %1765 = vmatprep.subr.mxu0 0.0
  %1766 = vmatpush1.msra.mxu0 0.0
  %1767 = vmatprep.subr.mxu0 0.0
  %1768 = vmatpush1.msra.mxu0 0.0
  %1769 = vmatprep.subr.mxu0 0.0
  %1770 = vmatpush1.msra.mxu0 0.0
  %1771 = vmatprep.subr.mxu0 0.0
  %1772 = vmatpush1.msra.mxu0 0.0
  %1773 = vmatprep.subr.mxu0 0.0
  %1774 = vmatpush1.msra.mxu0 0.0
  %1775 = vmatprep.subr.mxu0 0.0
  %1776 = vmatpush1.msra.mxu0 0.0
  %1777 = vmatprep.subr.mxu0 0.0
  %1778 = vmatpush1.msra.mxu0 0.0
  %1779 = vmatprep.subr.mxu0 0.0
  %1780 = vmatpush1.msra.mxu0 0.0
  %1781 = vmatprep.subr.mxu0 0.0
  %1782 = vmatpush1.msra.mxu0 0.0
  %1783 = vmatprep.subr.mxu0 0.0
  %1784 = vmatpush1.msra.mxu0 0.0
  %1785 = vmatprep.subr.mxu0 0.0
  %1786 = vmatpush1.msra.mxu0 0.0
  %1787 = vmatprep.subr.mxu0 0.0
  %1788 = vmatpush1.msra.mxu0 0.0
  %1789 = vmatprep.subr.mxu0 0.0
  %1790 = vmatpush1.msra.mxu0 0.0
  %1791 = vmatprep.subr.mxu0 0.0
  %1792 = vmatpush1.msra.mxu0 0.0
  %1793 = vmatprep.subr.mxu0 0.0
  %1794 = vmatpush1.msra.mxu0 0.0
  %1795 = vmatprep.mubr.f32.mxu0 0.0
  %1796 = vmatmul.mubr.f32.gmra.mrb[0].mxu0 %v1714
  %v1797 = vpop.f32.mrb[0].mxu0
  %v1798 = vadd.f32 0.0, %v1797
  %v1799 = vpop.f32.mrb[0].mxu0
  %1800 = vdwg.mxu0
  %vm1801 = vcmp.ge.f32.partialorder %v1574, 0.0
  %v1802 = vrcp.pop %v1582
  %v1803 = vmul.f32 1.0, %v1802
  %v1804 = vmul.f32 %v1581, %v1802
  %v1805 = vsel %vm1801, %v1803, %v1804
  %v1806 = vmul.f32 %v1798, %v1805
  %v1807 = vld [vmem:[%s59] sm:$0xff]
  %v1808 = vld [vmem:[%s59 + $0x8] sm:$0xff]
  %v1809 = vld [vmem:[%s59 + $0x10] sm:$0xff]
  %v1810 = vld [vmem:[%s59 + $0x18] sm:$0xff]
  %v1811 = vld [vmem:[%s59 + $0x20] sm:$0xff]
  %v1812 = vld [vmem:[%s59 + $0x28] sm:$0xff]
  %v1813 = vld [vmem:[%s59 + $0x30] sm:$0xff]
  %v1814 = vld [vmem:[%s59 + $0x38] sm:$0xff]
  %v1815 = vld [vmem:[%s59 + $0x40] sm:$0xff]
  %v1816 = vld [vmem:[%s59 + $0x48] sm:$0xff]
  %v1817 = vld [vmem:[%s59 + $0x50] sm:$0xff]
  %v1818 = vld [vmem:[%s59 + $0x58] sm:$0xff]
  %v1819 = vld [vmem:[%s59 + $0x60] sm:$0xff]
  %v1820 = vld [vmem:[%s59 + $0x68] sm:$0xff]
  %v1821 = vld [vmem:[%s59 + $0x70] sm:$0xff]
  %v1822 = vld [vmem:[%s59 + $0x78] sm:$0xff]
  %1823 = vmatprep.subr.mxu0 0.0
  %1824 = vmatpush1.msra.mxu0 %v1807
  %1825 = vmatprep.subr.mxu0 0.0
  %1826 = vmatpush1.msra.mxu0 %v1808
  %1827 = vmatprep.subr.mxu0 0.0
  %1828 = vmatpush1.msra.mxu0 %v1809
  %1829 = vmatprep.subr.mxu0 0.0
  %1830 = vmatpush1.msra.mxu0 %v1810
  %1831 = vmatprep.subr.mxu0 0.0
  %1832 = vmatpush1.msra.mxu0 %v1811
  %1833 = vmatprep.subr.mxu0 0.0
  %1834 = vmatpush1.msra.mxu0 %v1812
  %1835 = vmatprep.subr.mxu0 0.0
  %1836 = vmatpush1.msra.mxu0 %v1813
  %1837 = vmatprep.subr.mxu0 0.0
  %1838 = vmatpush1.msra.mxu0 %v1814
  %1839 = vmatprep.subr.mxu0 0.0
  %1840 = vmatpush1.msra.mxu0 %v1815
  %1841 = vmatprep.subr.mxu0 0.0
  %1842 = vmatpush1.msra.mxu0 %v1816
  %1843 = vmatprep.subr.mxu0 0.0
  %1844 = vmatpush1.msra.mxu0 %v1817
  %1845 = vmatprep.subr.mxu0 0.0
  %1846 = vmatpush1.msra.mxu0 %v1818
  %1847 = vmatprep.subr.mxu0 0.0
  %1848 = vmatpush1.msra.mxu0 %v1819
  %1849 = vmatprep.subr.mxu0 0.0
  %1850 = vmatpush1.msra.mxu0 %v1820
  %1851 = vmatprep.subr.mxu0 0.0
  %1852 = vmatpush1.msra.mxu0 %v1821
  %1853 = vmatprep.subr.mxu0 0.0
  %1854 = vmatpush1.msra.mxu0 %v1822
  %1855 = vmatprep.subr.mxu0 0.0
  %1856 = vmatpush1.msra.mxu0 0.0
  %1857 = vmatprep.subr.mxu0 0.0
  %1858 = vmatpush1.msra.mxu0 0.0
  %1859 = vmatprep.subr.mxu0 0.0
  %1860 = vmatpush1.msra.mxu0 0.0
  %1861 = vmatprep.subr.mxu0 0.0
  %1862 = vmatpush1.msra.mxu0 0.0
  %1863 = vmatprep.subr.mxu0 0.0
  %1864 = vmatpush1.msra.mxu0 0.0
  %1865 = vmatprep.subr.mxu0 0.0
  %1866 = vmatpush1.msra.mxu0 0.0
  %1867 = vmatprep.subr.mxu0 0.0
  %1868 = vmatpush1.msra.mxu0 0.0
  %1869 = vmatprep.subr.mxu0 0.0
  %1870 = vmatpush1.msra.mxu0 0.0
  %1871 = vmatprep.subr.mxu0 0.0
  %1872 = vmatpush1.msra.mxu0 0.0
  %1873 = vmatprep.subr.mxu0 0.0
  %1874 = vmatpush1.msra.mxu0 0.0
  %1875 = vmatprep.subr.mxu0 0.0
  %1876 = vmatpush1.msra.mxu0 0.0
  %1877 = vmatprep.subr.mxu0 0.0
  %1878 = vmatpush1.msra.mxu0 0.0
  %1879 = vmatprep.subr.mxu0 0.0
  %1880 = vmatpush1.msra.mxu0 0.0
  %1881 = vmatprep.subr.mxu0 0.0
  %1882 = vmatpush1.msra.mxu0 0.0
  %1883 = vmatprep.subr.mxu0 0.0
  %1884 = vmatpush1.msra.mxu0 0.0
  %1885 = vmatprep.subr.mxu0 0.0
  %1886 = vmatpush1.msra.mxu0 0.0
  %1887 = vmatprep.mubr.f32.mxu0 0.0
  %1888 = vmatmul.mubr.f32.gmra.mrb[0].mxu0 %v1806
  %v1889 = vpop.f32.mrb[0].mxu0
  %v1890 = vadd.f32 0.0, %v1889
  %v1891 = vpop.f32.mrb[0].mxu0
  %1892 = vdwg.mxu0
  %v1894 = vsel %vm771, %v185, 0
  %v1897 = vsel %vm771, %v186, 0
  %1899 = vmatprep.subr.mxu0 0.0
  %1900 = vmatpush1.msra.mxu0 %v1890
  %1901 = vmatprep.subr.mxu0 0.0
  %1902 = vmatpush1.msra.mxu0 0.0
  %1903 = vmatprep.subr.mxu0 0.0
  %1904 = vmatpush1.msra.mxu0 0.0
  %1905 = vmatprep.subr.mxu0 0.0
  %1906 = vmatpush1.msra.mxu0 0.0
  %1907 = vmatprep.subr.mxu0 0.0
  %1908 = vmatpush1.msra.mxu0 0.0
  %1909 = vmatprep.subr.mxu0 0.0
  %1910 = vmatpush1.msra.mxu0 0.0
  %1911 = vmatprep.subr.mxu0 0.0
  %1912 = vmatpush1.msra.mxu0 0.0
  %1913 = vmatprep.subr.mxu0 0.0
  %1914 = vmatpush1.msra.mxu0 0.0
  %1915 = vmatprep.subr.mxu0 0.0
  %1916 = vmatpush1.msra.mxu0 0.0
  %1917 = vmatprep.subr.mxu0 0.0
  %1918 = vmatpush1.msra.mxu0 0.0
  %1919 = vmatprep.subr.mxu0 0.0
  %1920 = vmatpush1.msra.mxu0 0.0
  %1921 = vmatprep.subr.mxu0 0.0
  %1922 = vmatpush1.msra.mxu0 0.0
  %1923 = vmatprep.subr.mxu0 0.0
  %1924 = vmatpush1.msra.mxu0 0.0
  %1925 = vmatprep.subr.mxu0 0.0
  %1926 = vmatpush1.msra.mxu0 0.0
  %1927 = vmatprep.subr.mxu0 0.0
  %1928 = vmatpush1.msra.mxu0 0.0
  %1929 = vmatprep.subr.mxu0 0.0
  %1930 = vmatpush1.msra.mxu0 0.0
  %1931 = vmatprep.subr.mxu0 0.0
  %1932 = vmatpush1.msra.mxu0 0.0
  %1933 = vmatprep.subr.mxu0 0.0
  %1934 = vmatpush1.msra.mxu0 0.0
  %1935 = vmatprep.subr.mxu0 0.0
  %1936 = vmatpush1.msra.mxu0 0.0
  %1937 = vmatprep.subr.mxu0 0.0
  %1938 = vmatpush1.msra.mxu0 0.0
  %1939 = vmatprep.subr.mxu0 0.0
  %1940 = vmatpush1.msra.mxu0 0.0
  %1941 = vmatprep.subr.mxu0 0.0
  %1942 = vmatpush1.msra.mxu0 0.0
  %1943 = vmatprep.subr.mxu0 0.0
  %1944 = vmatpush1.msra.mxu0 0.0
  %1945 = vmatprep.subr.mxu0 0.0
  %1946 = vmatpush1.msra.mxu0 0.0
  %1947 = vmatprep.subr.mxu0 0.0
  %1948 = vmatpush1.msra.mxu0 0.0
  %1949 = vmatprep.subr.mxu0 0.0
  %1950 = vmatpush1.msra.mxu0 0.0
  %1951 = vmatprep.subr.mxu0 0.0
  %1952 = vmatpush1.msra.mxu0 0.0
  %1953 = vmatprep.subr.mxu0 0.0
  %1954 = vmatpush1.msra.mxu0 0.0
  %1955 = vmatprep.subr.mxu0 0.0
  %1956 = vmatpush1.msra.mxu0 0.0
  %1957 = vmatprep.subr.mxu0 0.0
  %1958 = vmatpush1.msra.mxu0 0.0
  %1959 = vmatprep.subr.mxu0 0.0
  %1960 = vmatpush1.msra.mxu0 0.0
  %1961 = vmatprep.subr.mxu0 0.0
  %1962 = vmatpush1.msra.mxu0 0.0
  %1963 = vmatprep.mubr.f32.mxu0 0.0
  %1964 = vmatmul.mubr.f32.gmra.mrb[0].mxu0 %v1894
  %v1965 = vpop.f32.mrb[0].mxu0
  %v1966 = vadd.f32 0.0, %v1965
  %v1967 = vpop.f32.mrb[0].mxu0
  %1968 = vmatprep.mubr.f32.mxu0 0.0
  %1969 = vmatmul.mubr.f32.gmra.mrb[0].mxu0 %v1897
  %v1970 = vpop.f32.mrb[0].mxu0
  %v1971 = vadd.f32 0.0, %v1970
  %v1972 = vpop.f32.mrb[0].mxu0
  %1973 = vdwg.mxu0
  %v1974 = vmul.f32 %v1966, %v1404
  %v1975 = vmul.f32 %v1971, %v1409
  %v1976 = vmul.f32 %v1966, %v1249
  %v1977 = vmul.f32 %v1971, %v1250
  %v1979 = vsel %vm855, %v172, 0
  %1981 = vmatprep.subr.mxu0 0.0
  %1982 = vmatpush1.msra.mxu0 %v1976
  %1983 = vmatprep.subr.mxu0 0.0
  %1984 = vmatpush1.msra.mxu0 %v1977
  %1985 = vmatprep.subr.mxu0 0.0
  %1986 = vmatpush1.msra.mxu0 0.0
  %1987 = vmatprep.subr.mxu0 0.0
  %1988 = vmatpush1.msra.mxu0 0.0
  %1989 = vmatprep.subr.mxu0 0.0
  %1990 = vmatpush1.msra.mxu0 0.0
  %1991 = vmatprep.subr.mxu0 0.0
  %1992 = vmatpush1.msra.mxu0 0.0
  %1993 = vmatprep.subr.mxu0 0.0
  %1994 = vmatpush1.msra.mxu0 0.0
  %1995 = vmatprep.subr.mxu0 0.0
  %1996 = vmatpush1.msra.mxu0 0.0
  %1997 = vmatprep.subr.mxu0 0.0
  %1998 = vmatpush1.msra.mxu0 0.0
  %1999 = vmatprep.subr.mxu0 0.0
  %2000 = vmatpush1.msra.mxu0 0.0
  %2001 = vmatprep.subr.mxu0 0.0
  %2002 = vmatpush1.msra.mxu0 0.0
  %2003 = vmatprep.subr.mxu0 0.0
  %2004 = vmatpush1.msra.mxu0 0.0
  %2005 = vmatprep.subr.mxu0 0.0
  %2006 = vmatpush1.msra.mxu0 0.0
  %2007 = vmatprep.subr.mxu0 0.0
  %2008 = vmatpush1.msra.mxu0 0.0
  %2009 = vmatprep.subr.mxu0 0.0
  %2010 = vmatpush1.msra.mxu0 0.0
  %2011 = vmatprep.subr.mxu0 0.0
  %2012 = vmatpush1.msra.mxu0 0.0
  %2013 = vmatprep.subr.mxu0 0.0
  %2014 = vmatpush1.msra.mxu0 0.0
  %2015 = vmatprep.subr.mxu0 0.0
  %2016 = vmatpush1.msra.mxu0 0.0
  %2017 = vmatprep.subr.mxu0 0.0
  %2018 = vmatpush1.msra.mxu0 0.0
  %2019 = vmatprep.subr.mxu0 0.0
  %2020 = vmatpush1.msra.mxu0 0.0
  %2021 = vmatprep.subr.mxu0 0.0
  %2022 = vmatpush1.msra.mxu0 0.0
  %2023 = vmatprep.subr.mxu0 0.0
  %2024 = vmatpush1.msra.mxu0 0.0
  %2025 = vmatprep.subr.mxu0 0.0
  %2026 = vmatpush1.msra.mxu0 0.0
  %2027 = vmatprep.subr.mxu0 0.0
  %2028 = vmatpush1.msra.mxu0 0.0
  %2029 = vmatprep.subr.mxu0 0.0
  %2030 = vmatpush1.msra.mxu0 0.0
  %2031 = vmatprep.subr.mxu0 0.0
  %2032 = vmatpush1.msra.mxu0 0.0
  %2033 = vmatprep.subr.mxu0 0.0
  %2034 = vmatpush1.msra.mxu0 0.0
  %2035 = vmatprep.subr.mxu0 0.0
  %2036 = vmatpush1.msra.mxu0 0.0
  %2037 = vmatprep.subr.mxu0 0.0
  %2038 = vmatpush1.msra.mxu0 0.0
  %2039 = vmatprep.subr.mxu0 0.0
  %2040 = vmatpush1.msra.mxu0 0.0
  %2041 = vmatprep.subr.mxu0 0.0
  %2042 = vmatpush1.msra.mxu0 0.0
  %2043 = vmatprep.subr.mxu0 0.0
  %2044 = vmatpush1.msra.mxu0 0.0
  %2045 = vmatprep.mubr.f32.mxu0 0.0
  %2046 = vmatmul.mubr.f32.gmra.mrb[0].mxu0 %v1979
  %v2047 = vpop.f32.mrb[0].mxu0
  %v2048 = vadd.f32 0.0, %v2047
  %v2049 = vpop.f32.mrb[0].mxu0
  %2050 = vdwg.mxu0
  %v2051 = vld [vmem:[%s57] sm:$0xff]
  %v2052 = vld [vmem:[%s57 + $0x8] sm:$0xff]
  %v2053 = vld [vmem:[%s57 + $0x10] sm:$0xff]
  %v2054 = vld [vmem:[%s57 + $0x18] sm:$0xff]
  %v2055 = vld [vmem:[%s57 + $0x20] sm:$0xff]
  %v2056 = vld [vmem:[%s57 + $0x28] sm:$0xff]
  %v2057 = vld [vmem:[%s57 + $0x30] sm:$0xff]
  %v2058 = vld [vmem:[%s57 + $0x38] sm:$0xff]
  %v2059 = vld [vmem:[%s57 + $0x40] sm:$0xff]
  %v2060 = vld [vmem:[%s57 + $0x48] sm:$0xff]
  %v2061 = vld [vmem:[%s57 + $0x50] sm:$0xff]
  %v2062 = vld [vmem:[%s57 + $0x58] sm:$0xff]
  %v2063 = vld [vmem:[%s57 + $0x60] sm:$0xff]
  %v2064 = vld [vmem:[%s57 + $0x68] sm:$0xff]
  %v2065 = vld [vmem:[%s57 + $0x70] sm:$0xff]
  %v2066 = vld [vmem:[%s57 + $0x78] sm:$0xff]
  %2067 = vmatprep.subr.mxu0 0.0
  %2068 = vmatpush1.msra.mxu0 %v2051
  %2069 = vmatprep.subr.mxu0 0.0
  %2070 = vmatpush1.msra.mxu0 %v2052
  %2071 = vmatprep.subr.mxu0 0.0
  %2072 = vmatpush1.msra.mxu0 %v2053
  %2073 = vmatprep.subr.mxu0 0.0
  %2074 = vmatpush1.msra.mxu0 %v2054
  %2075 = vmatprep.subr.mxu0 0.0
  %2076 = vmatpush1.msra.mxu0 %v2055
  %2077 = vmatprep.subr.mxu0 0.0
  %2078 = vmatpush1.msra.mxu0 %v2056
  %2079 = vmatprep.subr.mxu0 0.0
  %2080 = vmatpush1.msra.mxu0 %v2057
  %2081 = vmatprep.subr.mxu0 0.0
  %2082 = vmatpush1.msra.mxu0 %v2058
  %2083 = vmatprep.subr.mxu0 0.0
  %2084 = vmatpush1.msra.mxu0 %v2059
  %2085 = vmatprep.subr.mxu0 0.0
  %2086 = vmatpush1.msra.mxu0 %v2060
  %2087 = vmatprep.subr.mxu0 0.0
  %2088 = vmatpush1.msra.mxu0 %v2061
  %2089 = vmatprep.subr.mxu0 0.0
  %2090 = vmatpush1.msra.mxu0 %v2062
  %2091 = vmatprep.subr.mxu0 0.0
  %2092 = vmatpush1.msra.mxu0 %v2063
  %2093 = vmatprep.subr.mxu0 0.0
  %2094 = vmatpush1.msra.mxu0 %v2064
  %2095 = vmatprep.subr.mxu0 0.0
  %2096 = vmatpush1.msra.mxu0 %v2065
  %2097 = vmatprep.subr.mxu0 0.0
  %2098 = vmatpush1.msra.mxu0 %v2066
  %2099 = vmatprep.subr.mxu0 0.0
  %2100 = vmatpush1.msra.mxu0 0.0
  %2101 = vmatprep.subr.mxu0 0.0
  %2102 = vmatpush1.msra.mxu0 0.0
  %2103 = vmatprep.subr.mxu0 0.0
  %2104 = vmatpush1.msra.mxu0 0.0
  %2105 = vmatprep.subr.mxu0 0.0
  %2106 = vmatpush1.msra.mxu0 0.0
  %2107 = vmatprep.subr.mxu0 0.0
  %2108 = vmatpush1.msra.mxu0 0.0
  %2109 = vmatprep.subr.mxu0 0.0
  %2110 = vmatpush1.msra.mxu0 0.0
  %2111 = vmatprep.subr.mxu0 0.0
  %2112 = vmatpush1.msra.mxu0 0.0
  %2113 = vmatprep.subr.mxu0 0.0
  %2114 = vmatpush1.msra.mxu0 0.0
  %2115 = vmatprep.subr.mxu0 0.0
  %2116 = vmatpush1.msra.mxu0 0.0
  %2117 = vmatprep.subr.mxu0 0.0
  %2118 = vmatpush1.msra.mxu0 0.0
  %2119 = vmatprep.subr.mxu0 0.0
  %2120 = vmatpush1.msra.mxu0 0.0
  %2121 = vmatprep.subr.mxu0 0.0
  %2122 = vmatpush1.msra.mxu0 0.0
  %2123 = vmatprep.subr.mxu0 0.0
  %2124 = vmatpush1.msra.mxu0 0.0
  %2125 = vmatprep.subr.mxu0 0.0
  %2126 = vmatpush1.msra.mxu0 0.0
  %2127 = vmatprep.subr.mxu0 0.0
  %2128 = vmatpush1.msra.mxu0 0.0
  %2129 = vmatprep.subr.mxu0 0.0
  %2130 = vmatpush1.msra.mxu0 0.0
  %2131 = vmatprep.mubr.f32.mxu0 0.0
  %2132 = vmatmul.mubr.f32.gmra.mrb[0].mxu0 %v2048
  %v2133 = vpop.f32.mrb[0].mxu0
  %v2134 = vadd.f32 0.0, %v2133
  %v2135 = vpop.f32.mrb[0].mxu0
  %2136 = vdwg.mxu0
  %v2137 = vadd.f32 %v1798, %v2134
  %v2138 = vmul.f32 %v1974, %v465
  %v2139 = vmul.f32 %v1975, %v466
  %v2140 = vmul.f32 %v1974, %v1241
  %v2141 = vmul.f32 %v1975, %v1246
  %2142 = vadd.xlane.f32.xlu0 %v2140
  %v2143 = vpop.xlane.xlu0 %2142
  %2144 = vadd.xlane.f32.xlu0 %v2141
  %v2145 = vpop.xlane.xlu0 %2144
  %v2146 = vadd.f32 %v2143, 0.0
  %v2147 = vadd.f32 %v2145, 0.0
  %v2148 = vld [vmem:[%s55] sm:$0xff]
  %v2149 = vld [vmem:[%s55 + $0x8] sm:$0xff]
  %v2150 = vld [vmem:[%s55 + $0x10] sm:$0xff]
  %v2151 = vld [vmem:[%s55 + $0x18] sm:$0xff]
  %v2152 = vld [vmem:[%s55 + $0x20] sm:$0xff]
  %v2153 = vld [vmem:[%s55 + $0x28] sm:$0xff]
  %v2154 = vld [vmem:[%s55 + $0x30] sm:$0xff]
  %v2155 = vld [vmem:[%s55 + $0x38] sm:$0xff]
  %v2156 = vld [vmem:[%s55 + $0x40] sm:$0xff]
  %v2157 = vld [vmem:[%s55 + $0x48] sm:$0xff]
  %v2158 = vld [vmem:[%s55 + $0x50] sm:$0xff]
  %v2159 = vld [vmem:[%s55 + $0x58] sm:$0xff]
  %v2160 = vld [vmem:[%s55 + $0x60] sm:$0xff]
  %v2161 = vld [vmem:[%s55 + $0x68] sm:$0xff]
  %v2162 = vld [vmem:[%s55 + $0x70] sm:$0xff]
  %v2163 = vld [vmem:[%s55 + $0x78] sm:$0xff]
  %2164 = vmatprep.subr.mxu0 0.0
  %2165 = vmatpush1.msra.mxu0 %v2148
  %2166 = vmatprep.subr.mxu0 0.0
  %2167 = vmatpush1.msra.mxu0 %v2149
  %2168 = vmatprep.subr.mxu0 0.0
  %2169 = vmatpush1.msra.mxu0 %v2150
  %2170 = vmatprep.subr.mxu0 0.0
  %2171 = vmatpush1.msra.mxu0 %v2151
  %2172 = vmatprep.subr.mxu0 0.0
  %2173 = vmatpush1.msra.mxu0 %v2152
  %2174 = vmatprep.subr.mxu0 0.0
  %2175 = vmatpush1.msra.mxu0 %v2153
  %2176 = vmatprep.subr.mxu0 0.0
  %2177 = vmatpush1.msra.mxu0 %v2154
  %2178 = vmatprep.subr.mxu0 0.0
  %2179 = vmatpush1.msra.mxu0 %v2155
  %2180 = vmatprep.subr.mxu0 0.0
  %2181 = vmatpush1.msra.mxu0 %v2156
  %2182 = vmatprep.subr.mxu0 0.0
  %2183 = vmatpush1.msra.mxu0 %v2157
  %2184 = vmatprep.subr.mxu0 0.0
  %2185 = vmatpush1.msra.mxu0 %v2158
  %2186 = vmatprep.subr.mxu0 0.0
  %2187 = vmatpush1.msra.mxu0 %v2159
  %2188 = vmatprep.subr.mxu0 0.0
  %2189 = vmatpush1.msra.mxu0 %v2160
  %2190 = vmatprep.subr.mxu0 0.0
  %2191 = vmatpush1.msra.mxu0 %v2161
  %2192 = vmatprep.subr.mxu0 0.0
  %2193 = vmatpush1.msra.mxu0 %v2162
  %2194 = vmatprep.subr.mxu0 0.0
  %2195 = vmatpush1.msra.mxu0 %v2163
  %2196 = vmatprep.subr.mxu0 0.0
  %2197 = vmatpush1.msra.mxu0 0.0
  %2198 = vmatprep.subr.mxu0 0.0
  %2199 = vmatpush1.msra.mxu0 0.0
  %2200 = vmatprep.subr.mxu0 0.0
  %2201 = vmatpush1.msra.mxu0 0.0
  %2202 = vmatprep.subr.mxu0 0.0
  %2203 = vmatpush1.msra.mxu0 0.0
  %2204 = vmatprep.subr.mxu0 0.0
  %2205 = vmatpush1.msra.mxu0 0.0
  %2206 = vmatprep.subr.mxu0 0.0
  %2207 = vmatpush1.msra.mxu0 0.0
  %2208 = vmatprep.subr.mxu0 0.0
  %2209 = vmatpush1.msra.mxu0 0.0
  %2210 = vmatprep.subr.mxu0 0.0
  %2211 = vmatpush1.msra.mxu0 0.0
  %2212 = vmatprep.subr.mxu0 0.0
  %2213 = vmatpush1.msra.mxu0 0.0
  %2214 = vmatprep.subr.mxu0 0.0
  %2215 = vmatpush1.msra.mxu0 0.0
  %2216 = vmatprep.subr.mxu0 0.0
  %2217 = vmatpush1.msra.mxu0 0.0
  %2218 = vmatprep.subr.mxu0 0.0
  %2219 = vmatpush1.msra.mxu0 0.0
  %2220 = vmatprep.subr.mxu0 0.0
  %2221 = vmatpush1.msra.mxu0 0.0
  %2222 = vmatprep.subr.mxu0 0.0
  %2223 = vmatpush1.msra.mxu0 0.0
  %2224 = vmatprep.subr.mxu0 0.0
  %2225 = vmatpush1.msra.mxu0 0.0
  %2226 = vmatprep.subr.mxu0 0.0
  %2227 = vmatpush1.msra.mxu0 0.0
  %2228 = vmatprep.mubr.f32.mxu0 0.0
  %2229 = vmatmul.mubr.f32.gmra.mrb[0].mxu0 %v2138
  %v2230 = vpop.f32.mrb[0].mxu0
  %v2231 = vadd.f32 0.0, %v2230
  %v2232 = vpop.f32.mrb[0].mxu0
  %2233 = vmatprep.mubr.f32.mxu0 0.0
  %2234 = vmatmul.mubr.f32.gmra.mrb[0].mxu0 %v2139
  %v2235 = vpop.f32.mrb[0].mxu0
  %v2236 = vadd.f32 0.0, %v2235
  %v2237 = vpop.f32.mrb[0].mxu0
  %2238 = vdwg.mxu0
  %vm2239 = vcmp.ge.f32.partialorder %v1123, 0.0
  %vm2240 = vcmp.ge.f32.partialorder %v1128, 0.0
  %v2241 = vrcp.pop %v1141
  %v2242 = vmul.f32 1.0, %v2241
  %v2243 = vrcp.pop %v1142
  %v2244 = vmul.f32 1.0, %v2243
  %v2245 = vmul.f32 %v1138, %v2241
  %v2246 = vmul.f32 %v1140, %v2243
  %v2247 = vsel %vm2239, %v2242, %v2245
  %v2248 = vsel %vm2240, %v2244, %v2246
  %v2249 = vmul.f32 %v2231, %v2247
  %v2250 = vmul.f32 %v2236, %v2248
  %v2251 = vld [vmem:[%s53] sm:$0xff]
  %v2252 = vld [vmem:[%s53 + $0x8] sm:$0xff]
  %v2253 = vld [vmem:[%s53 + $0x10] sm:$0xff]
  %v2254 = vld [vmem:[%s53 + $0x18] sm:$0xff]
  %v2255 = vld [vmem:[%s53 + $0x20] sm:$0xff]
  %v2256 = vld [vmem:[%s53 + $0x28] sm:$0xff]
  %v2257 = vld [vmem:[%s53 + $0x30] sm:$0xff]
  %v2258 = vld [vmem:[%s53 + $0x38] sm:$0xff]
  %v2259 = vld [vmem:[%s53 + $0x40] sm:$0xff]
  %v2260 = vld [vmem:[%s53 + $0x48] sm:$0xff]
  %v2261 = vld [vmem:[%s53 + $0x50] sm:$0xff]
  %v2262 = vld [vmem:[%s53 + $0x58] sm:$0xff]
  %v2263 = vld [vmem:[%s53 + $0x60] sm:$0xff]
  %v2264 = vld [vmem:[%s53 + $0x68] sm:$0xff]
  %v2265 = vld [vmem:[%s53 + $0x70] sm:$0xff]
  %v2266 = vld [vmem:[%s53 + $0x78] sm:$0xff]
  %vm2267 = vcmp.ge.f32.partialorder %v1019, 0.0
  %v2268 = vrcp.pop %v1027
  %v2269 = vmul.f32 1.0, %v2268
  %v2270 = vmul.f32 %v1026, %v2268
  %v2271 = vsel %vm2267, %v2269, %v2270
  %v2272 = vmul.f32 %v2137, %v2271
  %v2273 = vld [vmem:[%s37] sm:$0xff]
  %v2274 = vld [vmem:[%s37 + $0x8] sm:$0xff]
  %v2275 = vld [vmem:[%s37 + $0x10] sm:$0xff]
  %v2276 = vld [vmem:[%s37 + $0x18] sm:$0xff]
  %v2277 = vld [vmem:[%s37 + $0x20] sm:$0xff]
  %v2278 = vld [vmem:[%s37 + $0x28] sm:$0xff]
  %v2279 = vld [vmem:[%s37 + $0x30] sm:$0xff]
  %v2280 = vld [vmem:[%s37 + $0x38] sm:$0xff]
  %v2281 = vld [vmem:[%s37 + $0x40] sm:$0xff]
  %v2282 = vld [vmem:[%s37 + $0x48] sm:$0xff]
  %v2283 = vld [vmem:[%s37 + $0x50] sm:$0xff]
  %v2284 = vld [vmem:[%s37 + $0x58] sm:$0xff]
  %v2285 = vld [vmem:[%s37 + $0x60] sm:$0xff]
  %v2286 = vld [vmem:[%s37 + $0x68] sm:$0xff]
  %v2287 = vld [vmem:[%s37 + $0x70] sm:$0xff]
  %v2288 = vld [vmem:[%s37 + $0x78] sm:$0xff]
  %2289 = vmatprep.subr.mxu0 0.0
  %2290 = vmatpush1.msra.mxu0 %v2273
  %2291 = vmatprep.subr.mxu0 0.0
  %2292 = vmatpush1.msra.mxu0 %v2274
  %2293 = vmatprep.subr.mxu0 0.0
  %2294 = vmatpush1.msra.mxu0 %v2275
  %2295 = vmatprep.subr.mxu0 0.0
  %2296 = vmatpush1.msra.mxu0 %v2276
  %2297 = vmatprep.subr.mxu0 0.0
  %2298 = vmatpush1.msra.mxu0 %v2277
  %2299 = vmatprep.subr.mxu0 0.0
  %2300 = vmatpush1.msra.mxu0 %v2278
  %2301 = vmatprep.subr.mxu0 0.0
  %2302 = vmatpush1.msra.mxu0 %v2279
  %2303 = vmatprep.subr.mxu0 0.0
  %2304 = vmatpush1.msra.mxu0 %v2280
  %2305 = vmatprep.subr.mxu0 0.0
  %2306 = vmatpush1.msra.mxu0 %v2281
  %2307 = vmatprep.subr.mxu0 0.0
  %2308 = vmatpush1.msra.mxu0 %v2282
  %2309 = vmatprep.subr.mxu0 0.0
  %2310 = vmatpush1.msra.mxu0 %v2283
  %2311 = vmatprep.subr.mxu0 0.0
  %2312 = vmatpush1.msra.mxu0 %v2284
  %2313 = vmatprep.subr.mxu0 0.0
  %2314 = vmatpush1.msra.mxu0 %v2285
  %2315 = vmatprep.subr.mxu0 0.0
  %2316 = vmatpush1.msra.mxu0 %v2286
  %2317 = vmatprep.subr.mxu0 0.0
  %2318 = vmatpush1.msra.mxu0 %v2287
  %2319 = vmatprep.subr.mxu0 0.0
  %2320 = vmatpush1.msra.mxu0 %v2288
  %2321 = vmatprep.subr.mxu0 0.0
  %2322 = vmatpush1.msra.mxu0 0.0
  %2323 = vmatprep.subr.mxu0 0.0
  %2324 = vmatpush1.msra.mxu0 0.0
  %2325 = vmatprep.subr.mxu0 0.0
  %2326 = vmatpush1.msra.mxu0 0.0
  %2327 = vmatprep.subr.mxu0 0.0
  %2328 = vmatpush1.msra.mxu0 0.0
  %2329 = vmatprep.subr.mxu0 0.0
  %2330 = vmatpush1.msra.mxu0 0.0
  %2331 = vmatprep.subr.mxu0 0.0
  %2332 = vmatpush1.msra.mxu0 0.0
  %2333 = vmatprep.subr.mxu0 0.0
  %2334 = vmatpush1.msra.mxu0 0.0
  %2335 = vmatprep.subr.mxu0 0.0
  %2336 = vmatpush1.msra.mxu0 0.0
  %2337 = vmatprep.subr.mxu0 0.0
  %2338 = vmatpush1.msra.mxu0 0.0
  %2339 = vmatprep.subr.mxu0 0.0
  %2340 = vmatpush1.msra.mxu0 0.0
  %2341 = vmatprep.subr.mxu0 0.0
  %2342 = vmatpush1.msra.mxu0 0.0
  %2343 = vmatprep.subr.mxu0 0.0
  %2344 = vmatpush1.msra.mxu0 0.0
  %2345 = vmatprep.subr.mxu0 0.0
  %2346 = vmatpush1.msra.mxu0 0.0
  %2347 = vmatprep.subr.mxu0 0.0
  %2348 = vmatpush1.msra.mxu0 0.0
  %2349 = vmatprep.subr.mxu0 0.0
  %2350 = vmatpush1.msra.mxu0 0.0
  %2351 = vmatprep.subr.mxu0 0.0
  %2352 = vmatpush1.msra.mxu0 0.0
  %2353 = vmatprep.mubr.f32.mxu0 0.0
  %2354 = vmatmul.mubr.f32.gmra.mrb[0].mxu0 %v2272
  %v2355 = vpop.f32.mrb[0].mxu0
  %v2356 = vadd.f32 0.0, %v2355
  %v2357 = vpop.f32.mrb[0].mxu0
  %2358 = vdwg.mxu0
  %2359 = vmatprep.subr.mxu0 0.0
  %2360 = vmatpush1.msra.mxu0 %v2356
  %2361 = vmatprep.subr.mxu0 0.0
  %2362 = vmatpush1.msra.mxu0 0.0
  %2363 = vmatprep.subr.mxu0 0.0
  %2364 = vmatpush1.msra.mxu0 0.0
  %2365 = vmatprep.subr.mxu0 0.0
  %2366 = vmatpush1.msra.mxu0 0.0
  %2367 = vmatprep.subr.mxu0 0.0
  %2368 = vmatpush1.msra.mxu0 0.0
  %2369 = vmatprep.subr.mxu0 0.0
  %2370 = vmatpush1.msra.mxu0 0.0
  %2371 = vmatprep.subr.mxu0 0.0
  %2372 = vmatpush1.msra.mxu0 0.0
  %2373 = vmatprep.subr.mxu0 0.0
  %2374 = vmatpush1.msra.mxu0 0.0
  %2375 = vmatprep.subr.mxu0 0.0
  %2376 = vmatpush1.msra.mxu0 0.0
  %2377 = vmatprep.subr.mxu0 0.0
  %2378 = vmatpush1.msra.mxu0 0.0
  %2379 = vmatprep.subr.mxu0 0.0
  %2380 = vmatpush1.msra.mxu0 0.0
  %2381 = vmatprep.subr.mxu0 0.0
  %2382 = vmatpush1.msra.mxu0 0.0
  %2383 = vmatprep.subr.mxu0 0.0
  %2384 = vmatpush1.msra.mxu0 0.0
  %2385 = vmatprep.subr.mxu0 0.0
  %2386 = vmatpush1.msra.mxu0 0.0
  %2387 = vmatprep.subr.mxu0 0.0
  %2388 = vmatpush1.msra.mxu0 0.0
  %2389 = vmatprep.subr.mxu0 0.0
  %2390 = vmatpush1.msra.mxu0 0.0
  %2391 = vmatprep.subr.mxu0 0.0
  %2392 = vmatpush1.msra.mxu0 0.0
  %2393 = vmatprep.subr.mxu0 0.0
  %2394 = vmatpush1.msra.mxu0 0.0
  %2395 = vmatprep.subr.mxu0 0.0
  %2396 = vmatpush1.msra.mxu0 0.0
  %2397 = vmatprep.subr.mxu0 0.0
  %2398 = vmatpush1.msra.mxu0 0.0
  %2399 = vmatprep.subr.mxu0 0.0
  %2400 = vmatpush1.msra.mxu0 0.0
  %2401 = vmatprep.subr.mxu0 0.0
  %2402 = vmatpush1.msra.mxu0 0.0
  %2403 = vmatprep.subr.mxu0 0.0
  %2404 = vmatpush1.msra.mxu0 0.0
  %2405 = vmatprep.subr.mxu0 0.0
  %2406 = vmatpush1.msra.mxu0 0.0
  %2407 = vmatprep.subr.mxu0 0.0
  %2408 = vmatpush1.msra.mxu0 0.0
  %2409 = vmatprep.subr.mxu0 0.0
  %2410 = vmatpush1.msra.mxu0 0.0
  %2411 = vmatprep.subr.mxu0 0.0
  %2412 = vmatpush1.msra.mxu0 0.0
  %2413 = vmatprep.subr.mxu0 0.0
  %2414 = vmatpush1.msra.mxu0 0.0
  %2415 = vmatprep.subr.mxu0 0.0
  %2416 = vmatpush1.msra.mxu0 0.0
  %2417 = vmatprep.subr.mxu0 0.0
  %2418 = vmatpush1.msra.mxu0 0.0
  %2419 = vmatprep.subr.mxu0 0.0
  %2420 = vmatpush1.msra.mxu0 0.0
  %2421 = vmatprep.subr.mxu0 0.0
  %2422 = vmatpush1.msra.mxu0 0.0
  %2423 = vmatprep.mubr.f32.mxu0 0.0
  %2424 = vmatmul.mubr.f32.gmra.mrb[0].mxu0 %v1894
  %v2425 = vpop.f32.mrb[0].mxu0
  %v2426 = vadd.f32 0.0, %v2425
  %v2427 = vpop.f32.mrb[0].mxu0
  %2428 = vmatprep.mubr.f32.mxu0 0.0
  %2429 = vmatmul.mubr.f32.gmra.mrb[0].mxu0 %v1897
  %v2430 = vpop.f32.mrb[0].mxu0
  %v2431 = vadd.f32 0.0, %v2430
  %v2432 = vpop.f32.mrb[0].mxu0
  %2433 = vdwg.mxu0
  %v2434 = vmul.f32 %v2426, %v845
  %v2435 = vmul.f32 %v2431, %v850
  %v2436 = vmul.f32 %v2434, %v465
  %v2437 = vmul.f32 %v2435, %v466
  %v2438 = vmul.f32 %v2434, %v675
  %v2439 = vmul.f32 %v2435, %v680
  %2440 = vadd.xlane.f32.xlu0 %v2438
  %v2441 = vpop.xlane.xlu0 %2440
  %2442 = vadd.xlane.f32.xlu0 %v2439
  %v2443 = vpop.xlane.xlu0 %2442
  %v2444 = vadd.f32 %v2146, %v2441
  %v2445 = vadd.f32 %v2147, %v2443
  %v2446 = vld [vmem:[%s33] sm:$0xff]
  %v2447 = vld [vmem:[%s33 + $0x8] sm:$0xff]
  %v2448 = vld [vmem:[%s33 + $0x10] sm:$0xff]
  %v2449 = vld [vmem:[%s33 + $0x18] sm:$0xff]
  %v2450 = vld [vmem:[%s33 + $0x20] sm:$0xff]
  %v2451 = vld [vmem:[%s33 + $0x28] sm:$0xff]
  %v2452 = vld [vmem:[%s33 + $0x30] sm:$0xff]
  %v2453 = vld [vmem:[%s33 + $0x38] sm:$0xff]
  %v2454 = vld [vmem:[%s33 + $0x40] sm:$0xff]
  %v2455 = vld [vmem:[%s33 + $0x48] sm:$0xff]
  %v2456 = vld [vmem:[%s33 + $0x50] sm:$0xff]
  %v2457 = vld [vmem:[%s33 + $0x58] sm:$0xff]
  %v2458 = vld [vmem:[%s33 + $0x60] sm:$0xff]
  %v2459 = vld [vmem:[%s33 + $0x68] sm:$0xff]
  %v2460 = vld [vmem:[%s33 + $0x70] sm:$0xff]
  %v2461 = vld [vmem:[%s33 + $0x78] sm:$0xff]
  %2462 = vmatprep.subr.mxu0 0.0
  %2463 = vmatpush1.msra.mxu0 %v2446
  %2464 = vmatprep.subr.mxu0 0.0
  %2465 = vmatpush1.msra.mxu0 %v2447
  %2466 = vmatprep.subr.mxu0 0.0
  %2467 = vmatpush1.msra.mxu0 %v2448
  %2468 = vmatprep.subr.mxu0 0.0
  %2469 = vmatpush1.msra.mxu0 %v2449
  %2470 = vmatprep.subr.mxu0 0.0
  %2471 = vmatpush1.msra.mxu0 %v2450
  %2472 = vmatprep.subr.mxu0 0.0
  %2473 = vmatpush1.msra.mxu0 %v2451
  %2474 = vmatprep.subr.mxu0 0.0
  %2475 = vmatpush1.msra.mxu0 %v2452
  %2476 = vmatprep.subr.mxu0 0.0
  %2477 = vmatpush1.msra.mxu0 %v2453
  %2478 = vmatprep.subr.mxu0 0.0
  %2479 = vmatpush1.msra.mxu0 %v2454
  %2480 = vmatprep.subr.mxu0 0.0
  %2481 = vmatpush1.msra.mxu0 %v2455
  %2482 = vmatprep.subr.mxu0 0.0
  %2483 = vmatpush1.msra.mxu0 %v2456
  %2484 = vmatprep.subr.mxu0 0.0
  %2485 = vmatpush1.msra.mxu0 %v2457
  %2486 = vmatprep.subr.mxu0 0.0
  %2487 = vmatpush1.msra.mxu0 %v2458
  %2488 = vmatprep.subr.mxu0 0.0
  %2489 = vmatpush1.msra.mxu0 %v2459
  %2490 = vmatprep.subr.mxu0 0.0
  %2491 = vmatpush1.msra.mxu0 %v2460
  %2492 = vmatprep.subr.mxu0 0.0
  %2493 = vmatpush1.msra.mxu0 %v2461
  %2494 = vmatprep.subr.mxu0 0.0
  %2495 = vmatpush1.msra.mxu0 0.0
  %2496 = vmatprep.subr.mxu0 0.0
  %2497 = vmatpush1.msra.mxu0 0.0
  %2498 = vmatprep.subr.mxu0 0.0
  %2499 = vmatpush1.msra.mxu0 0.0
  %2500 = vmatprep.subr.mxu0 0.0
  %2501 = vmatpush1.msra.mxu0 0.0
  %2502 = vmatprep.subr.mxu0 0.0
  %2503 = vmatpush1.msra.mxu0 0.0
  %2504 = vmatprep.subr.mxu0 0.0
  %2505 = vmatpush1.msra.mxu0 0.0
  %2506 = vmatprep.subr.mxu0 0.0
  %2507 = vmatpush1.msra.mxu0 0.0
  %2508 = vmatprep.subr.mxu0 0.0
  %2509 = vmatpush1.msra.mxu0 0.0
  %2510 = vmatprep.subr.mxu0 0.0
  %2511 = vmatpush1.msra.mxu0 0.0
  %2512 = vmatprep.subr.mxu0 0.0
  %2513 = vmatpush1.msra.mxu0 0.0
  %2514 = vmatprep.subr.mxu0 0.0
  %2515 = vmatpush1.msra.mxu0 0.0
  %2516 = vmatprep.subr.mxu0 0.0
  %2517 = vmatpush1.msra.mxu0 0.0
  %2518 = vmatprep.subr.mxu0 0.0
  %2519 = vmatpush1.msra.mxu0 0.0
  %2520 = vmatprep.subr.mxu0 0.0
  %2521 = vmatpush1.msra.mxu0 0.0
  %2522 = vmatprep.subr.mxu0 0.0
  %2523 = vmatpush1.msra.mxu0 0.0
  %2524 = vmatprep.subr.mxu0 0.0
  %2525 = vmatpush1.msra.mxu0 0.0
  %2526 = vmatprep.mubr.f32.mxu0 0.0
  %2527 = vmatmul.mubr.f32.gmra.mrb[0].mxu0 %v2436
  %v2528 = vpop.f32.mrb[0].mxu0
  %v2529 = vadd.f32 0.0, %v2528
  %v2530 = vpop.f32.mrb[0].mxu0
  %2531 = vmatprep.mubr.f32.mxu0 0.0
  %2532 = vmatmul.mubr.f32.gmra.mrb[0].mxu0 %v2437
  %v2533 = vpop.f32.mrb[0].mxu0
  %v2534 = vadd.f32 0.0, %v2533
  %v2535 = vpop.f32.mrb[0].mxu0
  %2536 = vdwg.mxu0
  %vm2537 = vcmp.ge.f32.partialorder %v557, 0.0
  %vm2538 = vcmp.ge.f32.partialorder %v562, 0.0
  %v2539 = vrcp.pop %v575
  %v2540 = vmul.f32 1.0, %v2539
  %v2541 = vrcp.pop %v576
  %v2542 = vmul.f32 1.0, %v2541
  %v2543 = vmul.f32 %v572, %v2539
  %v2544 = vmul.f32 %v574, %v2541
  %v2545 = vsel %vm2537, %v2540, %v2543
  %v2546 = vsel %vm2538, %v2542, %v2544
  %v2547 = vmul.f32 %v2529, %v2545
  %v2548 = vmul.f32 %v2534, %v2546
  %v2549 = vld [vmem:[%s31] sm:$0xff]
  %v2550 = vld [vmem:[%s31 + $0x8] sm:$0xff]
  %v2551 = vld [vmem:[%s31 + $0x10] sm:$0xff]
  %v2552 = vld [vmem:[%s31 + $0x18] sm:$0xff]
  %v2553 = vld [vmem:[%s31 + $0x20] sm:$0xff]
  %v2554 = vld [vmem:[%s31 + $0x28] sm:$0xff]
  %v2555 = vld [vmem:[%s31 + $0x30] sm:$0xff]
  %v2556 = vld [vmem:[%s31 + $0x38] sm:$0xff]
  %v2557 = vld [vmem:[%s31 + $0x40] sm:$0xff]
  %v2558 = vld [vmem:[%s31 + $0x48] sm:$0xff]
  %v2559 = vld [vmem:[%s31 + $0x50] sm:$0xff]
  %v2560 = vld [vmem:[%s31 + $0x58] sm:$0xff]
  %v2561 = vld [vmem:[%s31 + $0x60] sm:$0xff]
  %v2562 = vld [vmem:[%s31 + $0x68] sm:$0xff]
  %v2563 = vld [vmem:[%s31 + $0x70] sm:$0xff]
  %v2564 = vld [vmem:[%s31 + $0x78] sm:$0xff]
  %2565 = vmatprep.subr.mxu0 0.0
  %2566 = vmatpush1.msra.mxu0 %v2549
  %2567 = vmatprep.subr.mxu0 0.0
  %2568 = vmatpush1.msra.mxu0 %v2550
  %2569 = vmatprep.subr.mxu0 0.0
  %2570 = vmatpush1.msra.mxu0 %v2551
  %2571 = vmatprep.subr.mxu0 0.0
  %2572 = vmatpush1.msra.mxu0 %v2552
  %2573 = vmatprep.subr.mxu0 0.0
  %2574 = vmatpush1.msra.mxu0 %v2553
  %2575 = vmatprep.subr.mxu0 0.0
  %2576 = vmatpush1.msra.mxu0 %v2554
  %2577 = vmatprep.subr.mxu0 0.0
  %2578 = vmatpush1.msra.mxu0 %v2555
  %2579 = vmatprep.subr.mxu0 0.0
  %2580 = vmatpush1.msra.mxu0 %v2556
  %2581 = vmatprep.subr.mxu0 0.0
  %2582 = vmatpush1.msra.mxu0 %v2557
  %2583 = vmatprep.subr.mxu0 0.0
  %2584 = vmatpush1.msra.mxu0 %v2558
  %2585 = vmatprep.subr.mxu0 0.0
  %2586 = vmatpush1.msra.mxu0 %v2559
  %2587 = vmatprep.subr.mxu0 0.0
  %2588 = vmatpush1.msra.mxu0 %v2560
  %2589 = vmatprep.subr.mxu0 0.0
  %2590 = vmatpush1.msra.mxu0 %v2561
  %2591 = vmatprep.subr.mxu0 0.0
  %2592 = vmatpush1.msra.mxu0 %v2562
  %2593 = vmatprep.subr.mxu0 0.0
  %2594 = vmatpush1.msra.mxu0 %v2563
  %2595 = vmatprep.subr.mxu0 0.0
  %2596 = vmatpush1.msra.mxu0 %v2564
  %2597 = vmatprep.subr.mxu0 0.0
  %2598 = vmatpush1.msra.mxu0 0.0
  %2599 = vmatprep.subr.mxu0 0.0
  %2600 = vmatpush1.msra.mxu0 0.0
  %2601 = vmatprep.subr.mxu0 0.0
  %2602 = vmatpush1.msra.mxu0 0.0
  %2603 = vmatprep.subr.mxu0 0.0
  %2604 = vmatpush1.msra.mxu0 0.0
  %2605 = vmatprep.subr.mxu0 0.0
  %2606 = vmatpush1.msra.mxu0 0.0
  %2607 = vmatprep.subr.mxu0 0.0
  %2608 = vmatpush1.msra.mxu0 0.0
  %2609 = vmatprep.subr.mxu0 0.0
  %2610 = vmatpush1.msra.mxu0 0.0
  %2611 = vmatprep.subr.mxu0 0.0
  %2612 = vmatpush1.msra.mxu0 0.0
  %2613 = vmatprep.subr.mxu0 0.0
  %2614 = vmatpush1.msra.mxu0 0.0
  %2615 = vmatprep.subr.mxu0 0.0
  %2616 = vmatpush1.msra.mxu0 0.0
  %2617 = vmatprep.subr.mxu0 0.0
  %2618 = vmatpush1.msra.mxu0 0.0
  %2619 = vmatprep.subr.mxu0 0.0
  %2620 = vmatpush1.msra.mxu0 0.0
  %2621 = vmatprep.subr.mxu0 0.0
  %2622 = vmatpush1.msra.mxu0 0.0
  %2623 = vmatprep.subr.mxu0 0.0
  %2624 = vmatpush1.msra.mxu0 0.0
  %2625 = vmatprep.subr.mxu0 0.0
  %2626 = vmatpush1.msra.mxu0 0.0
  %2627 = vmatprep.subr.mxu0 0.0
  %2628 = vmatpush1.msra.mxu0 0.0
  %2629 = vmatprep.mubr.f32.mxu0 0.0
  %2630 = vmatmul.mubr.f32.gmra.mrb[0].mxu0 %v2547
  %v2631 = vpop.f32.mrb[0].mxu0
  %v2632 = vadd.f32 0.0, %v2631
  %v2633 = vpop.f32.mrb[0].mxu0
  %2634 = vmatprep.mubr.f32.mxu0 0.0
  %2635 = vmatmul.mubr.f32.gmra.mrb[0].mxu0 %v2548
  %v2636 = vpop.f32.mrb[0].mxu0
  %v2637 = vadd.f32 0.0, %v2636
  %v2638 = vpop.f32.mrb[0].mxu0
  %2639 = vdwg.mxu0
  %2640 = vmatprep.subr.mxu0 0.0
  %2641 = vmatpush1.msra.mxu0 %v2251
  %2642 = vmatprep.subr.mxu0 0.0
  %2643 = vmatpush1.msra.mxu0 %v2252
  %2644 = vmatprep.subr.mxu0 0.0
  %2645 = vmatpush1.msra.mxu0 %v2253
  %2646 = vmatprep.subr.mxu0 0.0
  %2647 = vmatpush1.msra.mxu0 %v2254
  %2648 = vmatprep.subr.mxu0 0.0
  %2649 = vmatpush1.msra.mxu0 %v2255
  %2650 = vmatprep.subr.mxu0 0.0
  %2651 = vmatpush1.msra.mxu0 %v2256
  %2652 = vmatprep.subr.mxu0 0.0
  %2653 = vmatpush1.msra.mxu0 %v2257
  %2654 = vmatprep.subr.mxu0 0.0
  %2655 = vmatpush1.msra.mxu0 %v2258
  %2656 = vmatprep.subr.mxu0 0.0
  %2657 = vmatpush1.msra.mxu0 %v2259
  %2658 = vmatprep.subr.mxu0 0.0
  %2659 = vmatpush1.msra.mxu0 %v2260
  %2660 = vmatprep.subr.mxu0 0.0
  %2661 = vmatpush1.msra.mxu0 %v2261
  %2662 = vmatprep.subr.mxu0 0.0
  %2663 = vmatpush1.msra.mxu0 %v2262
  %2664 = vmatprep.subr.mxu0 0.0
  %2665 = vmatpush1.msra.mxu0 %v2263
  %2666 = vmatprep.subr.mxu0 0.0
  %2667 = vmatpush1.msra.mxu0 %v2264
  %2668 = vmatprep.subr.mxu0 0.0
  %2669 = vmatpush1.msra.mxu0 %v2265
  %2670 = vmatprep.subr.mxu0 0.0
  %2671 = vmatpush1.msra.mxu0 %v2266
  %2672 = vmatprep.subr.mxu0 0.0
  %2673 = vmatpush1.msra.mxu0 0.0
  %2674 = vmatprep.subr.mxu0 0.0
  %2675 = vmatpush1.msra.mxu0 0.0
  %2676 = vmatprep.subr.mxu0 0.0
  %2677 = vmatpush1.msra.mxu0 0.0
  %2678 = vmatprep.subr.mxu0 0.0
  %2679 = vmatpush1.msra.mxu0 0.0
  %2680 = vmatprep.subr.mxu0 0.0
  %2681 = vmatpush1.msra.mxu0 0.0
  %2682 = vmatprep.subr.mxu0 0.0
  %2683 = vmatpush1.msra.mxu0 0.0
  %2684 = vmatprep.subr.mxu0 0.0
  %2685 = vmatpush1.msra.mxu0 0.0
  %2686 = vmatprep.subr.mxu0 0.0
  %2687 = vmatpush1.msra.mxu0 0.0
  %2688 = vmatprep.subr.mxu0 0.0
  %2689 = vmatpush1.msra.mxu0 0.0
  %2690 = vmatprep.subr.mxu0 0.0
  %2691 = vmatpush1.msra.mxu0 0.0
  %2692 = vmatprep.subr.mxu0 0.0
  %2693 = vmatpush1.msra.mxu0 0.0
  %2694 = vmatprep.subr.mxu0 0.0
  %2695 = vmatpush1.msra.mxu0 0.0
  %2696 = vmatprep.subr.mxu0 0.0
  %2697 = vmatpush1.msra.mxu0 0.0
  %2698 = vmatprep.subr.mxu0 0.0
  %2699 = vmatpush1.msra.mxu0 0.0
  %2700 = vmatprep.subr.mxu0 0.0
  %2701 = vmatpush1.msra.mxu0 0.0
  %2702 = vmatprep.subr.mxu0 0.0
  %2703 = vmatpush1.msra.mxu0 0.0
  %2704 = vmatprep.mubr.f32.mxu0 0.0
  %2705 = vmatmul.mubr.f32.gmra.mrb[0].mxu0 %v2249
  %v2706 = vpop.f32.mrb[0].mxu0
  %v2707 = vadd.f32 %v2632, %v2706
  %v2708 = vpop.f32.mrb[0].mxu0
  %2709 = vmatprep.mubr.f32.mxu0 0.0
  %2710 = vmatmul.mubr.f32.gmra.mrb[0].mxu0 %v2250
  %v2711 = vpop.f32.mrb[0].mxu0
  %v2712 = vadd.f32 %v2637, %v2711
  %v2713 = vpop.f32.mrb[0].mxu0
  %2714 = vdwg.mxu0
  %v2715 = vmul.f32 %v2707, %v244
  %v2716 = vmul.f32 %v2712, %v246
  %v2717 = vsub.f32 0.0, %v230
  %v2718 = vsub.f32 0.0, %v231
  %v2720 = vlaneseq
  %v2721 = vshrl.u32 %v2720, 7
  %v2722 = vsub.s32 0, %v2721
  %v2723 = vrot.slane %v223, %v2722
  %v2725 = vmul.f32 %v2717, %v2723
  %v2726 = vmul.f32 %v2718, %v2723
  %v2727 = vmul.f32 %v2715, %v2725
  %v2728 = vmul.f32 %v2716, %v2726
  %2729 = vadd.xlane.f32.xlu0 %v2727
  %v2730 = vpop.xlane.xlu0 %2729
  %2731 = vadd.xlane.f32.xlu0 %v2728
  %v2732 = vpop.xlane.xlu0 %2731
  %v2733 = vand.u32 2147483647, %v253
  %vm2734 = vcmp.le.f32.partialorder %v2733, 0.7853982
  %vm2735 = vcmp.lt.s32.totalorder %v253, 0
  %v2736 = vand.u32 %v253, 2139095040
  %v2737 = vshrl.u32 %v2736, 23
  %v2738 = vsub.s32 %v2737, 127
  %v2739 = vand.u32 2147483647, %v253
  %v2740 = vand.u32 %v2739, 8388607
  %v2741 = vor.u32 %v2740, 8388608
  %v2742 = vsub.s32 0, %v2741
  %v2743 = vadd.s32 %v2738, 1
  %vm2744 = vcmp.gt.s32.totalorder %v2743, 0
  %v2745 = vsel %vm2744, %v2743, 0
  %v2746 = vshrl.u32 %v2745, 5
  %v2747 = vand.u32 %v2745, 31
  %v2748 = vsub.s32 32, %v2747
  %v2749 = vshrl.u32 683565275, %v2748
  %v2750 = vshll.u32 683565275, %v2747
  %v2751 = vshrl.u32 2475754826, %v2748
  %v2752 = vor.u32 %v2750, %v2751
  %v2753 = vshll.u32 2475754826, %v2747
  %v2754 = vshrl.u32 2131351028, %v2748
  %v2755 = vor.u32 %v2753, %v2754
  %v2756 = vshll.u32 2131351028, %v2747
  %v2757 = vshrl.u32 2102212464, %v2748
  %v2758 = vor.u32 %v2756, %v2757
  %v2759 = vshll.u32 2102212464, %v2747
  %v2760 = vshrl.u32 920167782, %v2748
  %v2761 = vor.u32 %v2759, %v2760
  %v2762 = vshll.u32 920167782, %v2747
  %v2763 = vshrl.u32 1326507024, %v2748
  %v2764 = vor.u32 %v2762, %v2763
  %vm2765 = vcmp.lt.s32.totalorder %v2746, 1
  %vm2766 = vcmp.lt.s32.totalorder %v2746, 2
  %vm2767 = vcmp.lt.s32.totalorder %v2746, 3
  %vm2768 = vcmp.lt.s32.totalorder %v2746, 4
  %v2769 = vsel %vm2765, %v2749, %v2752
  %v2770 = vsel %vm2768, %v2758, 2102212464
  %v2771 = vsel %vm2767, %v2755, %v2770
  %v2772 = vsel %vm2766, %v2769, %v2771
  %v2773 = vsel %vm2765, %v2752, %v2755
  %v2774 = vsel %vm2768, %v2761, 920167782
  %v2775 = vsel %vm2767, %v2758, %v2774
  %v2776 = vsel %vm2766, %v2773, %v2775
  %v2777 = vsel %vm2765, %v2755, %v2758
  %v2778 = vsel %vm2768, %v2764, 1326507024
  %v2779 = vsel %vm2767, %v2761, %v2778
  %v2780 = vsel %vm2766, %v2777, %v2779
  %v2781 = vshll.u32 %v2741, 8
  %v2782 = vmul.u32.u64.compose %v2781, %v2780
  %v2783 = vextract.low.u32 %v2782
  %v2784 = vextract.high.u32 %v2782
  %v2785 = vmul.u32.u64.compose %v2781, %v2776
  %v2786 = vextract.low.u32 %v2785
  %v2787 = vextract.high.u32 %v2785
  %v2788 = vmul.u32 %v2781, %v2772
  %v2789 = vadd.s32 %v2784, %v2786
  %vm2790 = vc.u32 %v2784, %v2786
  %v2791 = vadd.s32 %v2787, 1
  %v2792 = vsel %vm2790, %v2791, %v2787
  %v2793 = vadd.s32 %v2788, %v2792
  %v2794 = vadd.s32 %v2793, 536870912
  %v2795 = vshrl.u32 %v2794, 30
  %v2796 = vshll.u32 %v2795, 30
  %v2797 = vsub.s32 %v2793, %v2796
  %vm2798 = vcmp.lt.s32.totalorder %v2797, 0
  %v2799 = vsub.s32 0, %v2797
  %v2800 = vsel %vm2798, %v2799, %v2797
  %v2801 = vclz %v2800
  %v2802 = vsub.s32 %v2801, 2
  %vm2803 = vcmp.gt.s32.totalorder 0, %v2802
  %v2804 = vsel %vm2803, 0, %v2802
  %v2805 = vsub.s32 32, %v2804
  %v2806 = vshll.u32 %v2797, %v2804
  %v2807 = vshrl.u32 %v2789, %v2805
  %v2808 = vor.u32 %v2806, %v2807
  %v2809 = vsub.s32 4294967266, %v2804
  %v2810 = vadd.s32 %v2809, 127
  %v2811 = vshll.u32 %v2810, 23
  %v2812 = vor.u32 4788187, %v2811
  %v2813 = vand.u32 2147483647, %v2812
  %v2815 = vcvt.s32.f32 %v2808
  %v2816 = vmul.f32 %v2815, %v2813
  %v2817 = vxor.u32 %v2816, 2147483648
  %v2818 = vsel %vm2735, %v2817, %v2816
  %v2819 = vsub.s32 4, %v2795
  %v2820 = vsel %vm2735, %v2819, %v2795
  %v2821 = vsel %vm2734, %v253, %v2818
  %v2822 = vsel %vm2734, 0, %v2820
  %v2823 = vcosq.f32.pop %v2821
  %v2824 = vsinq.f32.pop %v2821
  %vm2825 = vweird.f32 %v253
  %v2826 = vadd.s32 %v2822, 3
  %v2827 = vand.u32 %v2826, 3
  %vm2828 = vcmp.lt.s32.totalorder %v2827, 2
  %vm2829 = vcmp.eq.s32.totalorder %v2827, 0
  %v2830 = vxor.u32 %v2824, 2147483648
  %v2831 = vsel %vm2829, %v2823, %v2830
  %vm2832 = vcmp.eq.s32.totalorder %v2827, 2
  %v2833 = vxor.u32 %v2823, 2147483648
  %v2834 = vsel %vm2832, %v2833, %v2824
  %v2835 = vsel %vm2828, %v2831, %v2834
  %v2836 = vsel %vm2825, nan, %v2835
  %v2837 = vand.u32 2147483647, %v254
  %vm2838 = vcmp.le.f32.partialorder %v2837, 0.7853982
  %vm2839 = vcmp.lt.s32.totalorder %v254, 0
  %v2840 = vand.u32 %v254, 2139095040
  %v2841 = vshrl.u32 %v2840, 23
  %v2842 = vsub.s32 %v2841, 127
  %v2843 = vand.u32 2147483647, %v254
  %v2844 = vand.u32 %v2843, 8388607
  %v2845 = vor.u32 %v2844, 8388608
  %v2846 = vsub.s32 0, %v2845
  %v2847 = vadd.s32 %v2842, 1
  %vm2848 = vcmp.gt.s32.totalorder %v2847, 0
  %v2849 = vsel %vm2848, %v2847, 0
  %v2850 = vshrl.u32 %v2849, 5
  %v2851 = vand.u32 %v2849, 31
  %v2852 = vsub.s32 32, %v2851
  %v2853 = vshrl.u32 683565275, %v2852
  %v2854 = vshll.u32 683565275, %v2851
  %v2855 = vshrl.u32 2475754826, %v2852
  %v2856 = vor.u32 %v2854, %v2855
  %v2857 = vshll.u32 2475754826, %v2851
  %v2858 = vshrl.u32 2131351028, %v2852
  %v2859 = vor.u32 %v2857, %v2858
  %v2860 = vshll.u32 2131351028, %v2851
  %v2861 = vshrl.u32 2102212464, %v2852
  %v2862 = vor.u32 %v2860, %v2861
  %v2863 = vshll.u32 2102212464, %v2851
  %v2864 = vshrl.u32 920167782, %v2852
  %v2865 = vor.u32 %v2863, %v2864
  %v2866 = vshll.u32 920167782, %v2851
  %v2867 = vshrl.u32 1326507024, %v2852
  %v2868 = vor.u32 %v2866, %v2867
  %vm2869 = vcmp.lt.s32.totalorder %v2850, 1
  %vm2870 = vcmp.lt.s32.totalorder %v2850, 2
  %vm2871 = vcmp.lt.s32.totalorder %v2850, 3
  %vm2872 = vcmp.lt.s32.totalorder %v2850, 4
  %v2873 = vsel %vm2869, %v2853, %v2856
  %v2874 = vsel %vm2872, %v2862, 2102212464
  %v2875 = vsel %vm2871, %v2859, %v2874
  %v2876 = vsel %vm2870, %v2873, %v2875
  %v2877 = vsel %vm2869, %v2856, %v2859
  %v2878 = vsel %vm2872, %v2865, 920167782
  %v2879 = vsel %vm2871, %v2862, %v2878
  %v2880 = vsel %vm2870, %v2877, %v2879
  %v2881 = vsel %vm2869, %v2859, %v2862
  %v2882 = vsel %vm2872, %v2868, 1326507024
  %v2883 = vsel %vm2871, %v2865, %v2882
  %v2884 = vsel %vm2870, %v2881, %v2883
  %v2885 = vshll.u32 %v2845, 8
  %v2886 = vmul.u32.u64.compose %v2885, %v2884
  %v2887 = vextract.low.u32 %v2886
  %v2888 = vextract.high.u32 %v2886
  %v2889 = vmul.u32.u64.compose %v2885, %v2880
  %v2890 = vextract.low.u32 %v2889
  %v2891 = vextract.high.u32 %v2889
  %v2892 = vmul.u32 %v2885, %v2876
  %v2893 = vadd.s32 %v2888, %v2890
  %vm2894 = vc.u32 %v2888, %v2890
  %v2895 = vadd.s32 %v2891, 1
  %v2896 = vsel %vm2894, %v2895, %v2891
  %v2897 = vadd.s32 %v2892, %v2896
  %v2898 = vadd.s32 %v2897, 536870912
  %v2899 = vshrl.u32 %v2898, 30
  %v2900 = vshll.u32 %v2899, 30
  %v2901 = vsub.s32 %v2897, %v2900
  %vm2902 = vcmp.lt.s32.totalorder %v2901, 0
  %v2903 = vsub.s32 0, %v2901
  %v2904 = vsel %vm2902, %v2903, %v2901
  %v2905 = vclz %v2904
  %v2906 = vsub.s32 %v2905, 2
  %vm2907 = vcmp.gt.s32.totalorder 0, %v2906
  %v2908 = vsel %vm2907, 0, %v2906
  %v2909 = vsub.s32 32, %v2908
  %v2910 = vshll.u32 %v2901, %v2908
  %v2911 = vshrl.u32 %v2893, %v2909
  %v2912 = vor.u32 %v2910, %v2911
  %v2913 = vsub.s32 4294967266, %v2908
  %v2914 = vadd.s32 %v2913, 127
  %v2915 = vshll.u32 %v2914, 23
  %v2916 = vor.u32 4788187, %v2915
  %v2917 = vand.u32 2147483647, %v2916
  %v2919 = vcvt.s32.f32 %v2912
  %v2920 = vmul.f32 %v2919, %v2917
  %v2921 = vxor.u32 %v2920, 2147483648
  %v2922 = vsel %vm2839, %v2921, %v2920
  %v2923 = vsub.s32 4, %v2899
  %v2924 = vsel %vm2839, %v2923, %v2899
  %v2925 = vsel %vm2838, %v254, %v2922
  %v2926 = vsel %vm2838, 0, %v2924
  %v2927 = vcosq.f32.pop %v2925
  %v2928 = vsinq.f32.pop %v2925
  %vm2929 = vweird.f32 %v254
  %v2930 = vadd.s32 %v2926, 3
  %v2931 = vand.u32 %v2930, 3
  %vm2932 = vcmp.lt.s32.totalorder %v2931, 2
  %vm2933 = vcmp.eq.s32.totalorder %v2931, 0
  %v2934 = vxor.u32 %v2928, 2147483648
  %v2935 = vsel %vm2933, %v2927, %v2934
  %vm2936 = vcmp.eq.s32.totalorder %v2931, 2
  %v2937 = vxor.u32 %v2927, 2147483648
  %v2938 = vsel %vm2936, %v2937, %v2928
  %v2939 = vsel %vm2932, %v2935, %v2938
  %v2940 = vsel %vm2929, nan, %v2939
  %v2941 = vmul.f32 %v2836, -0.31415927
  %v2942 = vmul.f32 %v2940, -0.31415927
  %v2943 = vmul.f32 %v2941, %v251
  %v2944 = vmul.f32 %v2942, %v252
  %v2945 = vmul.f32 %v2444, %v2943
  %v2946 = vmul.f32 %v2445, %v2944
  %v2947 = vadd.f32 %v2730, %v2945
  %v2948 = vadd.f32 %v2732, %v2946
  %vm2949 = vcmp.gt.f32.partialorder %v213, 0.0
  %vm2950 = vcmp.gt.f32.partialorder %v220, 0.0
  %v2951 = vrcp.pop %v213
  %v2952 = vmul.f32 1.0, %v2951
  %v2953 = vrcp.pop %v220
  %v2954 = vmul.f32 1.0, %v2953
  %v2955 = vsel %vm2949, %v2952, 0.0
  %v2956 = vsel %vm2950, %v2954, 0.0
  %v2957 = vmul.f32 %v2947, %v148
  %v2958 = vmul.f32 %v2948, %v149
  %v2959 = vmul.f32 %v2957, %v2955
  %v2960 = vmul.f32 %v2958, %v2956
  %2961 = vmatprep.subr.mxu0 0.0
  %2962 = vmatpush1.msra.mxu0 %v2959
  %2963 = vmatprep.subr.mxu0 0.0
  %2964 = vmatpush1.msra.mxu0 %v2960
  %2965 = vmatprep.subr.mxu0 0.0
  %2966 = vmatpush1.msra.mxu0 0.0
  %2967 = vmatprep.subr.mxu0 0.0
  %2968 = vmatpush1.msra.mxu0 0.0
  %2969 = vmatprep.subr.mxu0 0.0
  %2970 = vmatpush1.msra.mxu0 0.0
  %2971 = vmatprep.subr.mxu0 0.0
  %2972 = vmatpush1.msra.mxu0 0.0
  %2973 = vmatprep.subr.mxu0 0.0
  %2974 = vmatpush1.msra.mxu0 0.0
  %2975 = vmatprep.subr.mxu0 0.0
  %2976 = vmatpush1.msra.mxu0 0.0
  %2977 = vmatprep.subr.mxu0 0.0
  %2978 = vmatpush1.msra.mxu0 0.0
  %2979 = vmatprep.subr.mxu0 0.0
  %2980 = vmatpush1.msra.mxu0 0.0
  %2981 = vmatprep.subr.mxu0 0.0
  %2982 = vmatpush1.msra.mxu0 0.0
  %2983 = vmatprep.subr.mxu0 0.0
  %2984 = vmatpush1.msra.mxu0 0.0
  %2985 = vmatprep.subr.mxu0 0.0
  %2986 = vmatpush1.msra.mxu0 0.0
  %2987 = vmatprep.subr.mxu0 0.0
  %2988 = vmatpush1.msra.mxu0 0.0
  %2989 = vmatprep.subr.mxu0 0.0
  %2990 = vmatpush1.msra.mxu0 0.0
  %2991 = vmatprep.subr.mxu0 0.0
  %2992 = vmatpush1.msra.mxu0 0.0
  %2993 = vmatprep.subr.mxu0 0.0
  %2994 = vmatpush1.msra.mxu0 0.0
  %2995 = vmatprep.subr.mxu0 0.0
  %2996 = vmatpush1.msra.mxu0 0.0
  %2997 = vmatprep.subr.mxu0 0.0
  %2998 = vmatpush1.msra.mxu0 0.0
  %2999 = vmatprep.subr.mxu0 0.0
  %3000 = vmatpush1.msra.mxu0 0.0
  %3001 = vmatprep.subr.mxu0 0.0
  %3002 = vmatpush1.msra.mxu0 0.0
  %3003 = vmatprep.subr.mxu0 0.0
  %3004 = vmatpush1.msra.mxu0 0.0
  %3005 = vmatprep.subr.mxu0 0.0
  %3006 = vmatpush1.msra.mxu0 0.0
  %3007 = vmatprep.subr.mxu0 0.0
  %3008 = vmatpush1.msra.mxu0 0.0
  %3009 = vmatprep.subr.mxu0 0.0
  %3010 = vmatpush1.msra.mxu0 0.0
  %3011 = vmatprep.subr.mxu0 0.0
  %3012 = vmatpush1.msra.mxu0 0.0
  %3013 = vmatprep.subr.mxu0 0.0
  %3014 = vmatpush1.msra.mxu0 0.0
  %3015 = vmatprep.subr.mxu0 0.0
  %3016 = vmatpush1.msra.mxu0 0.0
  %3017 = vmatprep.subr.mxu0 0.0
  %3018 = vmatpush1.msra.mxu0 0.0
  %3019 = vmatprep.subr.mxu0 0.0
  %3020 = vmatpush1.msra.mxu0 0.0
  %3021 = vmatprep.subr.mxu0 0.0
  %3022 = vmatpush1.msra.mxu0 0.0
  %3023 = vmatprep.subr.mxu0 0.0
  %3024 = vmatpush1.msra.mxu0 0.0
  %3025 = vmatprep.mubr.f32.mxu0 0.0
  %3026 = vmatmul.mubr.f32.gmra.mrb[0].mxu0 %v857
  %v3027 = vpop.f32.mrb[0].mxu0
  %v3028 = vadd.f32 0.0, %v3027
  %v3029 = vpop.f32.mrb[0].mxu0
  %3030 = vdwg.mxu0
  %3031 = vmatprep.subr.mxu0 0.0
  %3032 = vmatpush1.msra.mxu0 %v2959
  %3033 = vmatprep.subr.mxu0 0.0
  %3034 = vmatpush1.msra.mxu0 %v2960
  %3035 = vmatprep.subr.mxu0 0.0
  %3036 = vmatpush1.msra.mxu0 0.0
  %3037 = vmatprep.subr.mxu0 0.0
  %3038 = vmatpush1.msra.mxu0 0.0
  %3039 = vmatprep.subr.mxu0 0.0
  %3040 = vmatpush1.msra.mxu0 0.0
  %3041 = vmatprep.subr.mxu0 0.0
  %3042 = vmatpush1.msra.mxu0 0.0
  %3043 = vmatprep.subr.mxu0 0.0
  %3044 = vmatpush1.msra.mxu0 0.0
  %3045 = vmatprep.subr.mxu0 0.0
  %3046 = vmatpush1.msra.mxu0 0.0
  %3047 = vmatprep.subr.mxu0 0.0
  %3048 = vmatpush1.msra.mxu0 0.0
  %3049 = vmatprep.subr.mxu0 0.0
  %3050 = vmatpush1.msra.mxu0 0.0
  %3051 = vmatprep.subr.mxu0 0.0
  %3052 = vmatpush1.msra.mxu0 0.0
  %3053 = vmatprep.subr.mxu0 0.0
  %3054 = vmatpush1.msra.mxu0 0.0
  %3055 = vmatprep.subr.mxu0 0.0
  %3056 = vmatpush1.msra.mxu0 0.0
  %3057 = vmatprep.subr.mxu0 0.0
  %3058 = vmatpush1.msra.mxu0 0.0
  %3059 = vmatprep.subr.mxu0 0.0
  %3060 = vmatpush1.msra.mxu0 0.0
  %3061 = vmatprep.subr.mxu0 0.0
  %3062 = vmatpush1.msra.mxu0 0.0
  %3063 = vmatprep.subr.mxu0 0.0
  %3064 = vmatpush1.msra.mxu0 0.0
  %3065 = vmatprep.subr.mxu0 0.0
  %3066 = vmatpush1.msra.mxu0 0.0
  %3067 = vmatprep.subr.mxu0 0.0
  %3068 = vmatpush1.msra.mxu0 0.0
  %3069 = vmatprep.subr.mxu0 0.0
  %3070 = vmatpush1.msra.mxu0 0.0
  %3071 = vmatprep.subr.mxu0 0.0
  %3072 = vmatpush1.msra.mxu0 0.0
  %3073 = vmatprep.subr.mxu0 0.0
  %3074 = vmatpush1.msra.mxu0 0.0
  %3075 = vmatprep.subr.mxu0 0.0
  %3076 = vmatpush1.msra.mxu0 0.0
  %3077 = vmatprep.subr.mxu0 0.0
  %3078 = vmatpush1.msra.mxu0 0.0
  %3079 = vmatprep.subr.mxu0 0.0
  %3080 = vmatpush1.msra.mxu0 0.0
  %3081 = vmatprep.subr.mxu0 0.0
  %3082 = vmatpush1.msra.mxu0 0.0
  %3083 = vmatprep.subr.mxu0 0.0
  %3084 = vmatpush1.msra.mxu0 0.0
  %3085 = vmatprep.subr.mxu0 0.0
  %3086 = vmatpush1.msra.mxu0 0.0
  %3087 = vmatprep.subr.mxu0 0.0
  %3088 = vmatpush1.msra.mxu0 0.0
  %3089 = vmatprep.subr.mxu0 0.0
  %3090 = vmatpush1.msra.mxu0 0.0
  %3091 = vmatprep.subr.mxu0 0.0
  %3092 = vmatpush1.msra.mxu0 0.0
  %3093 = vmatprep.subr.mxu0 0.0
  %3094 = vmatpush1.msra.mxu0 0.0
  %3095 = vmatprep.mubr.f32.mxu0 0.0
  %3096 = vmatmul.mubr.f32.gmra.mrb[0].mxu0 %v1979
  %v3097 = vpop.f32.mrb[0].mxu0
  %v3098 = vadd.f32 0.0, %v3097
  %v3099 = vpop.f32.mrb[0].mxu0
  %3100 = vdwg.mxu0
  %v3101 = vsub.f32 %v3028, %v3098
  %vm3102 = vcmp.eq.s32.totalorder %v156, 3
  %3104 = vset.pattern.permute.xlu0 0
  %3105 = vperm.xlu0 %3104, %v1708
  %v3106 = vpop.permute.xlu0 %3105
  %v3108 = vsel %vm3102, %v3106, 0.0
  %v3109 = vadd.f32 %v3101, %v3108
  %3110 = vst [vmem:[%s71] sm:$0xff] %v3109
  // Predicated region
  $region142: #{schnet_forward.1} parent=0 // pred_check
    _
  $region143: #{schnet_forward.1} parent=0 // pred_check_branch
    %3112 = sbr.rel (0) target = $region145
  $region144: #{schnet_forward.1} parent=0 // pred_region
    _
  $region145: #{schnet_forward.1} parent=0 // pred_fallthru
    _
  // Predicated region
  $region146: #{schnet_forward.1} parent=0 // pred_check
    _
  $region147: #{schnet_forward.1} parent=0 // pred_check_branch
    %3114 = sbr.rel (0) target = $region149
  $region148: #{schnet_forward.1} parent=0 // pred_region
    _
  $region149: #{schnet_forward.1} parent=0 // pred_fallthru
    _

</llo_original>
